<compile_context>
chip_gen: v7x
topology: tpu7x:2x2x1
jax: 0.10.0
libtpu: 0.0.40
codegen_flags: <defaults>
</compile_context>

<pallas_src>
import functools

import jax
import jax.numpy as jnp
from jax.experimental import pallas as pl
from jax.experimental.pallas import tpu as pltpu


def _layer_norm(x, w, b, eps=1e-5):
    # x: (T, H) f32, w/b: (1, H) f32.  Biased variance, matching torch.nn.LayerNorm.
    mean = jnp.mean(x, axis=-1, keepdims=True)
    var = jnp.mean(jnp.square(x - mean), axis=-1, keepdims=True)
    inv = jax.lax.rsqrt(var + eps)
    return (x - mean) * inv * w + b


def encoder_layer_kernel(
    x_ref, k_ref, v_ref, mask_ref,
    wq_ref, bq_ref, wo_ref, bo_ref,
    ln1_w_ref, ln1_b_ref,
    w1_ref, b1_ref, w2_ref, b2_ref,
    ln2_w_ref, ln2_b_ref,
    out_ref,
    ctx_scr,
    *, n_heads: int, head_dim: int, single_out_proj: bool,
):
    x = x_ref[0]                                   # (TQ, H) f32
    tq, hid = x.shape
    s_len = k_ref.shape[1]

    # ---- Q projection for this query tile; fold 1/sqrt(head_dim) in once ----
    q = jnp.dot(x.astype(jnp.bfloat16), wq_ref[...],
                preferred_element_type=jnp.float32) + bq_ref[...]
    qb = (q * (1.0 / float(head_dim) ** 0.5)).astype(jnp.bfloat16)   # (TQ, H)

    # additive f32 mask, broadcast hoisted out of the head loop
    neg = jnp.broadcast_to(mask_ref[0], (tq, s_len))                 # (TQ, S)

    # contract over head_dim without materializing a transpose of K
    dn = (((1,), (1,)), ((), ()))

    def head_attention(h):
        lo = h * head_dim
        kh = k_ref[0, :, lo:lo + head_dim]          # (S, hd) bf16 (ref slice)
        vh = v_ref[0, :, lo:lo + head_dim]          # (S, hd) bf16 (ref slice)
        e = jax.lax.dot_general(qb[:, lo:lo + head_dim], kh, dn,
                                preferred_element_type=jnp.float32)  # (TQ, S)
        e = e + neg
        e = e - jnp.max(e, axis=-1, keepdims=True)
        p = jnp.exp(e)
        p = p * pl.reciprocal(jnp.sum(p, axis=-1, keepdims=True), approx=True)
        return jnp.dot(p.astype(jnp.bfloat16), vh,
                       preferred_element_type=jnp.float32)           # (TQ, hd)

    if single_out_proj:
        # head_dim lane-aligned: stage per-head contexts in bf16 scratch, then
        # one full-depth (TQ,H) x (H,H) output projection on the MXU.
        for h in range(n_heads):
            lo = h * head_dim
            ctx_scr[:, lo:lo + head_dim] = head_attention(h).astype(jnp.bfloat16)
        attn = jnp.dot(ctx_scr[...], wo_ref[...],
                       preferred_element_type=jnp.float32) + bo_ref[...]
    else:
        # small head_dim: fuse the output projection into the head loop
        acc = jnp.zeros((tq, hid), jnp.float32)
        for h in range(n_heads):
            acc = acc + jnp.dot(head_attention(h).astype(jnp.bfloat16), wo_ref[h],
                                preferred_element_type=jnp.float32)  # (TQ, H)
        attn = acc + bo_ref[...]

    # ---- Add & Norm 1 (dropout = identity in eval) ----
    y = _layer_norm(x + attn, ln1_w_ref[...], ln1_b_ref[...])

    # ---- Positionwise feed-forward ----
    ff = jnp.dot(y.astype(jnp.bfloat16), w1_ref[...],
                 preferred_element_type=jnp.float32) + b1_ref[...]
    ff = jnp.maximum(ff, 0.0)
    ff = jnp.dot(ff.astype(jnp.bfloat16), w2_ref[...],
                 preferred_element_type=jnp.float32) + b2_ref[...]

    # ---- Add & Norm 2 ----
    out_ref[0] = _layer_norm(y + ff, ln2_w_ref[...], ln2_b_ref[...])


def encoder_layer(src, src_mask, params, *, n_heads):
    B, S, H = src.shape
    head_dim = H // n_heads
    pf_dim = params["w1"].shape[1]
    bf = jnp.bfloat16

    kind = ""
    try:
        kind = jax.devices()[0].device_kind.lower()
    except Exception:
        pass
    small_mxu = any(t in kind for t in ("v2", "v3", "v4", "v5"))   # 128-deep MXU
    is_v7 = "v7" in kind

    # ---- query-row tile + sequence padding (keeps (8,128)-aligned blocks) ----
    if S % 256 == 0 and not small_mxu:
        tq = 256
    elif S >= 128:
        tq = 128
    else:
        tq = -(-S // 8) * 8          # tiny sequence: single sublane-aligned tile
    S_pad = -(-S // tq) * tq
    num_q = S_pad // tq

    # ---- weights in bf16 (halves resident VMEM; accumulation stays f32) ----
    wq = params["wq"].astype(bf)
    wk = params["wk"].astype(bf)
    wv = params["wv"].astype(bf)
    w1 = params["w1"].astype(bf)
    w2 = params["w2"].astype(bf)
    single_out_proj = (head_dim % 128 == 0)
    if single_out_proj:
        wo = params["wo"].astype(bf)                                  # (H, H)
        wo_shape = (H, H)
    else:
        wo = params["wo"].astype(bf).reshape(n_heads, head_dim, H)    # per head
        wo_shape = (n_heads, head_dim, H)

    # ---- K/V projections hoisted out of the kernel (plain XLA matmuls) ----
    src_b = src.astype(bf)
    dnkv = (((2,), (0,)), ((), ()))
    k = (jax.lax.dot_general(src_b, wk, dnkv, preferred_element_type=jnp.float32)
         + params["bk"]).astype(bf)                                   # (B, S, H)
    v = (jax.lax.dot_general(src_b, wv, dnkv, preferred_element_type=jnp.float32)
         + params["bv"]).astype(bf)                                   # (B, S, H)

    # additive f32 mask: -1e10 where masked (== torch masked_fill semantics)
    add_mask = jnp.where(src_mask[:, 0, 0, :] == 0,
                         jnp.float32(-1e10), jnp.float32(0.0))[:, None, :]  # (B,1,S)

    # pad sequence axis: padded keys masked, padded query rows sliced off later
    if S_pad != S:
        pad3 = ((0, 0), (0, S_pad - S), (0, 0))
        src_in = jnp.pad(src, pad3)
        k = jnp.pad(k, pad3)
        v = jnp.pad(v, pad3)
        add_mask = jnp.pad(add_mask, ((0, 0), (0, 0), (0, S_pad - S)),
                           constant_values=-1e10)
    else:
        src_in = src

    kernel = functools.partial(encoder_layer_kernel, n_heads=n_heads,
                               head_dim=head_dim, single_out_proj=single_out_proj)

    # ---- VMEM budget (generation-aware cap) ----
    w_bytes = (2 * H * H + 2 * H * pf_dim) * 2            # bf16 weights
    kv_bytes = 2 * 2 * S_pad * H * 2                      # K,V bf16 double-buffered
    act_bytes = 2 * 2 * tq * H * 4                        # x tile + out tile
    inter_bytes = (3 * tq * S_pad + 2 * tq * pf_dim + 4 * tq * H) * 4
    est = 2 * w_bytes + kv_bytes + act_bytes + inter_bytes + tq * H * 2 + (8 << 20)
    cap = (52 << 20) if is_v7 else (100 << 20)
    vmem_limit = int(min(cap, max(32 << 20, est)))

    args = (src_in, k, v, add_mask,
            wq, params["bq"], wo, params["bo"],
            params["ln1_w"], params["ln1_b"],
            w1, params["b1"], w2, params["b2"],
            params["ln2_w"], params["ln2_b"])

    def build(single_buffer_weights):
        def rep(shape):
            # grid-invariant weights/biases: replicated, optionally single-buffered
            if single_buffer_weights:
                return pl.BlockSpec(shape, lambda b, q: (0,) * len(shape),
                                    pipeline_mode=pl.Buffered(1))
            return pl.BlockSpec(shape, lambda b, q: (0,) * len(shape))

        in_specs = [
            pl.BlockSpec((1, tq, H), lambda b, q: (b, q, 0)),     # src query tile
            pl.BlockSpec((1, S_pad, H), lambda b, q: (b, 0, 0)),  # K (bf16)
            pl.BlockSpec((1, S_pad, H), lambda b, q: (b, 0, 0)),  # V (bf16)
            pl.BlockSpec((1, 1, S_pad), lambda b, q: (b, 0, 0)),  # additive mask
            rep((H, H)), rep((1, H)),                             # wq, bq
            rep(wo_shape), rep((1, H)),                           # wo, bo
            rep((1, H)), rep((1, H)),                             # ln1 w, b
            rep((H, pf_dim)), rep((1, pf_dim)),                   # w1, b1
            rep((pf_dim, H)), rep((1, H)),                        # w2, b2
            rep((1, H)), rep((1, H)),                             # ln2 w, b
        ]
        out_spec = pl.BlockSpec((1, tq, H), lambda b, q: (b, q, 0))
        return pl.pallas_call(
            kernel,
            out_shape=jax.ShapeDtypeStruct((B, S_pad, H), jnp.float32),
            grid_spec=pltpu.PrefetchScalarGridSpec(
                num_scalar_prefetch=0,
                grid=(B, num_q),
                in_specs=in_specs,
                out_specs=out_spec,
                scratch_shapes=[pltpu.VMEM((tq, H), jnp.bfloat16)],  # ctx staging
            ),
            compiler_params=pltpu.CompilerParams(
                dimension_semantics=("parallel", "parallel"),
                vmem_limit_bytes=vmem_limit,
            ),
        )

    # TODO(synk): for very long sequences on v7x, stream K/V per key tile with a
    # flash-style online softmax and stream w1/w2 in pf_dim chunks to bound
    # VMEM to O(TQ*TK) instead of keeping full-S K/V and full FFN weights resident.
    try:
        out = build(True)(*args)     # single-buffered grid-invariant weights
    except Exception:
        out = build(False)(*args)    # fallback if pipeline_mode/Buffered unsupported

    return out[:, :S, :] if S_pad != S else out


def init_params(key, hid_dim, pf_dim):
    ks = jax.random.split(key, 8)
    s = 0.05
    p = {
        "wq": jax.random.normal(ks[0], (hid_dim, hid_dim), jnp.float32) * s,
        "bq": jnp.zeros((1, hid_dim), jnp.float32),
        "wk": jax.random.normal(ks[1], (hid_dim, hid_dim), jnp.float32) * s,
        "bk": jnp.zeros((1, hid_dim), jnp.float32),
        "wv": jax.random.normal(ks[2], (hid_dim, hid_dim), jnp.float32) * s,
        "bv": jnp.zeros((1, hid_dim), jnp.float32),
        "wo": jax.random.normal(ks[3], (hid_dim, hid_dim), jnp.float32) * s,
        "bo": jnp.zeros((1, hid_dim), jnp.float32),
        "ln1_w": jnp.ones((1, hid_dim), jnp.float32),
        "ln1_b": jnp.zeros((1, hid_dim), jnp.float32),
        "w1": jax.random.normal(ks[4], (hid_dim, pf_dim), jnp.float32) * s,
        "b1": jnp.zeros((1, pf_dim), jnp.float32),
        "w2": jax.random.normal(ks[5], (pf_dim, hid_dim), jnp.float32) * s,
        "b2": jnp.zeros((1, hid_dim), jnp.float32),
        "ln2_w": jnp.ones((1, hid_dim), jnp.float32),
        "ln2_b": jnp.zeros((1, hid_dim), jnp.float32),
    }
    return p


if __name__ == "__main__":
    B, S, H = 2, 8, 32
    n_heads, pf_dim = 4, 64

    key = jax.random.PRNGKey(0)
    k_src, k_params = jax.random.split(key)

    src = jax.random.normal(k_src, (B, S, H), jnp.float32)
    # src_mask: [B, 1, 1, S]; mask out the last 2 tokens of batch element 1
    mask = jnp.ones((B, 1, 1, S), jnp.int32)
    mask = mask.at[1, 0, 0, S - 2:].set(0)

    params = init_params(k_params, H, pf_dim)

    out = encoder_layer(src, mask, params, n_heads=n_heads)
    jax.block_until_ready(out)
    assert out.shape == (B, S, H)
    print("KERNEL_OK")
</pallas_src>

<mosaic_0001>
module attributes {stable_mosaic.version = 11 : i64} {
  func.func @encoder_layer_kernel(%arg0: i32, %arg1: i32, %arg2: memref<1x8x32xf32, #tpu.memory_space<vmem>>, %arg3: memref<1x8x32xbf16, #tpu.memory_space<vmem>>, %arg4: memref<1x8x32xbf16, #tpu.memory_space<vmem>>, %arg5: memref<1x1x8xf32, #tpu.memory_space<vmem>>, %arg6: memref<32x32xbf16, #tpu.memory_space<vmem>>, %arg7: memref<1x32xf32, #tpu.memory_space<vmem>>, %arg8: memref<4x8x32xbf16, #tpu.memory_space<vmem>>, %arg9: memref<1x32xf32, #tpu.memory_space<vmem>>, %arg10: memref<1x32xf32, #tpu.memory_space<vmem>>, %arg11: memref<1x32xf32, #tpu.memory_space<vmem>>, %arg12: memref<32x64xbf16, #tpu.memory_space<vmem>>, %arg13: memref<1x64xf32, #tpu.memory_space<vmem>>, %arg14: memref<64x32xbf16, #tpu.memory_space<vmem>>, %arg15: memref<1x32xf32, #tpu.memory_space<vmem>>, %arg16: memref<1x32xf32, #tpu.memory_space<vmem>>, %arg17: memref<1x32xf32, #tpu.memory_space<vmem>>, %arg18: memref<1x8x32xf32, #tpu.memory_space<vmem>>, %arg19: memref<8x32xbf16, #tpu.memory_space<vmem>>) attributes {dimension_semantics = [#tpu.dimension_semantics<parallel>, #tpu.dimension_semantics<parallel>], iteration_bounds = array<i64: 2, 1>, scalar_prefetch = 0 : i64, scratch_operands = 1 : i64, tpu.core_type = #tpu.core_type<tc>, window_params = [{transform_indices = @transform_0, window_bounds = array<i64: 1, 8, 32>}, {transform_indices = @transform_1, window_bounds = array<i64: 1, 8, 32>}, {transform_indices = @transform_2, window_bounds = array<i64: 1, 8, 32>}, {transform_indices = @transform_3, window_bounds = array<i64: 1, 1, 8>}, {pipeline_mode = #tpu.pipeline_mode<synchronous>, transform_indices = @transform_4, window_bounds = array<i64: 32, 32>}, {pipeline_mode = #tpu.pipeline_mode<synchronous>, transform_indices = @transform_5, window_bounds = array<i64: 1, 32>}, {pipeline_mode = #tpu.pipeline_mode<synchronous>, transform_indices = @transform_6, window_bounds = array<i64: 4, 8, 32>}, {pipeline_mode = #tpu.pipeline_mode<synchronous>, transform_indices = @transform_7, window_bounds = array<i64: 1, 32>}, {pipeline_mode = #tpu.pipeline_mode<synchronous>, transform_indices = @transform_8, window_bounds = array<i64: 1, 32>}, {pipeline_mode = #tpu.pipeline_mode<synchronous>, transform_indices = @transform_9, window_bounds = array<i64: 1, 32>}, {pipeline_mode = #tpu.pipeline_mode<synchronous>, transform_indices = @transform_10, window_bounds = array<i64: 32, 64>}, {pipeline_mode = #tpu.pipeline_mode<synchronous>, transform_indices = @transform_11, window_bounds = array<i64: 1, 64>}, {pipeline_mode = #tpu.pipeline_mode<synchronous>, transform_indices = @transform_12, window_bounds = array<i64: 64, 32>}, {pipeline_mode = #tpu.pipeline_mode<synchronous>, transform_indices = @transform_13, window_bounds = array<i64: 1, 32>}, {pipeline_mode = #tpu.pipeline_mode<synchronous>, transform_indices = @transform_14, window_bounds = array<i64: 1, 32>}, {pipeline_mode = #tpu.pipeline_mode<synchronous>, transform_indices = @transform_15, window_bounds = array<i64: 1, 32>}, {transform_indices = @transform_16, window_bounds = array<i64: 1, 8, 32>}]} {
    %c0 = arith.constant 0 : index
    %c0_0 = arith.constant 0 : index
    %c0_1 = arith.constant 0 : index
    %0 = vector.load %arg2[%c0, %c0_0, %c0_1] : memref<1x8x32xf32, #tpu.memory_space<vmem>>, vector<1x8x32xf32>
    %1 = vector.shape_cast %0 : vector<1x8x32xf32> to vector<8x32xf32>
    %2 = arith.truncf %1 : vector<8x32xf32> to vector<8x32xbf16>
    %c0_2 = arith.constant 0 : index
    %c0_3 = arith.constant 0 : index
    %3 = vector.load %arg6[%c0_2, %c0_3] : memref<32x32xbf16, #tpu.memory_space<vmem>>, vector<32x32xbf16>
    %cst = arith.constant dense<0.000000e+00> : vector<8x32xf32>
    %4 = tpu.matmul %2, %3, %cst {dimension_numbers = #tpu.dot_dimension_numbers<[1], [0], [0], [1], [0, 0, 1, 1], [], []>} : vector<8x32xbf16>, vector<32x32xbf16>, vector<8x32xf32> -> vector<8x32xf32>
    %c0_4 = arith.constant 0 : index
    %c0_5 = arith.constant 0 : index
    %5 = vector.load %arg7[%c0_4, %c0_5] : memref<1x32xf32, #tpu.memory_space<vmem>>, vector<1x32xf32>
    %6 = vector.broadcast %5 : vector<1x32xf32> to vector<8x32xf32>
    %7 = arith.addf %4, %6 : vector<8x32xf32>
    %cst_6 = arith.constant 0.353553385 : f32
    %8 = vector.broadcast %cst_6 : f32 to vector<8x32xf32>
    %9 = arith.mulf %7, %8 : vector<8x32xf32>
    %10 = arith.truncf %9 : vector<8x32xf32> to vector<8x32xbf16>
    %c0_7 = arith.constant 0 : index
    %c0_8 = arith.constant 0 : index
    %c0_9 = arith.constant 0 : index
    %11 = vector.load %arg5[%c0_7, %c0_8, %c0_9] : memref<1x1x8xf32, #tpu.memory_space<vmem>>, vector<1x1x8xf32>
    %12 = vector.shape_cast %11 : vector<1x1x8xf32> to vector<1x8xf32>
    %13 = vector.shape_cast %12 : vector<1x8xf32> to vector<1x8xf32>
    %14 = vector.broadcast %13 : vector<1x8xf32> to vector<8x8xf32>
    %cst_10 = arith.constant 0.000000e+00 : f32
    %15 = vector.broadcast %cst_10 : f32 to vector<8x32xf32>
    %c0_11 = arith.constant 0 : index
    %c0_12 = arith.constant 0 : index
    %c0_13 = arith.constant 0 : index
    %16 = vector.load %arg3[%c0_11, %c0_12, %c0_13] : memref<1x8x32xbf16, #tpu.memory_space<vmem>>, vector<1x8x8xbf16>
    %17 = vector.shape_cast %16 : vector<1x8x8xbf16> to vector<8x8xbf16>
    %c0_14 = arith.constant 0 : index
    %c0_15 = arith.constant 0 : index
    %c0_16 = arith.constant 0 : index
    %18 = vector.load %arg4[%c0_14, %c0_15, %c0_16] : memref<1x8x32xbf16, #tpu.memory_space<vmem>>, vector<1x8x8xbf16>
    %19 = vector.shape_cast %18 : vector<1x8x8xbf16> to vector<8x8xbf16>
    %20 = vector.extract_strided_slice %10 {offsets = [0, 0], sizes = [8, 8], strides = [1, 1]} : vector<8x32xbf16> to vector<8x8xbf16>
    %cst_17 = arith.constant dense<0.000000e+00> : vector<8x8xf32>
    %21 = tpu.matmul %20, %17, %cst_17 {dimension_numbers = #tpu.dot_dimension_numbers<[1], [1], [0], [0], [0, 0, 1, 0], [], []>} : vector<8x8xbf16>, vector<8x8xbf16>, vector<8x8xf32> -> vector<8x8xf32>
    %22 = arith.addf %21, %14 : vector<8x8xf32>
    %cst_18 = arith.constant dense<0xFF800000> : vector<8xf32>
    %23 = vector.multi_reduction <maximumf>, %22, %cst_18 [1] : vector<8x8xf32> to vector<8xf32>
    %24 = vector.shape_cast %23 : vector<8xf32> to vector<8x1xf32>
    %25 = vector.broadcast %24 : vector<8x1xf32> to vector<8x8xf32>
    %26 = arith.subf %22, %25 : vector<8x8xf32>
    %27 = math.exp %26 : vector<8x8xf32>
    %cst_19 = arith.constant dense<0.000000e+00> : vector<8xf32>
    %28 = vector.multi_reduction <add>, %27, %cst_19 [1] : vector<8x8xf32> to vector<8xf32>
    %29 = vector.shape_cast %28 : vector<8xf32> to vector<8x1xf32>
    %30 = tpu.reciprocal %29 {approx = true} : vector<8x1xf32> -> vector<8x1xf32>
    %31 = vector.broadcast %30 : vector<8x1xf32> to vector<8x8xf32>
    %32 = arith.mulf %27, %31 : vector<8x8xf32>
    %33 = arith.truncf %32 : vector<8x8xf32> to vector<8x8xbf16>
    %cst_20 = arith.constant dense<0.000000e+00> : vector<8x8xf32>
    %34 = tpu.matmul %33, %19, %cst_20 {dimension_numbers = #tpu.dot_dimension_numbers<[1], [0], [0], [1], [0, 0, 1, 1], [], []>} : vector<8x8xbf16>, vector<8x8xbf16>, vector<8x8xf32> -> vector<8x8xf32>
    %35 = arith.truncf %34 : vector<8x8xf32> to vector<8x8xbf16>
    %c0_21 = arith.constant 0 : index
    %c0_22 = arith.constant 0 : index
    %c0_23 = arith.constant 0 : index
    %36 = vector.load %arg8[%c0_21, %c0_22, %c0_23] : memref<4x8x32xbf16, #tpu.memory_space<vmem>>, vector<1x8x32xbf16>
    %37 = vector.shape_cast %36 : vector<1x8x32xbf16> to vector<8x32xbf16>
    %cst_24 = arith.constant dense<0.000000e+00> : vector<8x32xf32>
    %38 = tpu.matmul %35, %37, %cst_24 {dimension_numbers = #tpu.dot_dimension_numbers<[1], [0], [0], [1], [0, 0, 1, 1], [], []>} : vector<8x8xbf16>, vector<8x32xbf16>, vector<8x32xf32> -> vector<8x32xf32>
    %39 = arith.addf %15, %38 : vector<8x32xf32>
    %c0_25 = arith.constant 0 : index
    %c0_26 = arith.constant 0 : index
    %c8 = arith.constant 8 : index
    %40 = vector.load %arg3[%c0_25, %c0_26, %c8] : memref<1x8x32xbf16, #tpu.memory_space<vmem>>, vector<1x8x8xbf16>
    %41 = vector.shape_cast %40 : vector<1x8x8xbf16> to vector<8x8xbf16>
    %c0_27 = arith.constant 0 : index
    %c0_28 = arith.constant 0 : index
    %c8_29 = arith.constant 8 : index
    %42 = vector.load %arg4[%c0_27, %c0_28, %c8_29] : memref<1x8x32xbf16, #tpu.memory_space<vmem>>, vector<1x8x8xbf16>
    %43 = vector.shape_cast %42 : vector<1x8x8xbf16> to vector<8x8xbf16>
    %44 = vector.extract_strided_slice %10 {offsets = [0, 8], sizes = [8, 8], strides = [1, 1]} : vector<8x32xbf16> to vector<8x8xbf16>
    %cst_30 = arith.constant dense<0.000000e+00> : vector<8x8xf32>
    %45 = tpu.matmul %44, %41, %cst_30 {dimension_numbers = #tpu.dot_dimension_numbers<[1], [1], [0], [0], [0, 0, 1, 0], [], []>} : vector<8x8xbf16>, vector<8x8xbf16>, vector<8x8xf32> -> vector<8x8xf32>
    %46 = arith.addf %45, %14 : vector<8x8xf32>
    %cst_31 = arith.constant dense<0xFF800000> : vector<8xf32>
    %47 = vector.multi_reduction <maximumf>, %46, %cst_31 [1] : vector<8x8xf32> to vector<8xf32>
    %48 = vector.shape_cast %47 : vector<8xf32> to vector<8x1xf32>
    %49 = vector.broadcast %48 : vector<8x1xf32> to vector<8x8xf32>
    %50 = arith.subf %46, %49 : vector<8x8xf32>
    %51 = math.exp %50 : vector<8x8xf32>
    %cst_32 = arith.constant dense<0.000000e+00> : vector<8xf32>
    %52 = vector.multi_reduction <add>, %51, %cst_32 [1] : vector<8x8xf32> to vector<8xf32>
    %53 = vector.shape_cast %52 : vector<8xf32> to vector<8x1xf32>
    %54 = tpu.reciprocal %53 {approx = true} : vector<8x1xf32> -> vector<8x1xf32>
    %55 = vector.broadcast %54 : vector<8x1xf32> to vector<8x8xf32>
    %56 = arith.mulf %51, %55 : vector<8x8xf32>
    %57 = arith.truncf %56 : vector<8x8xf32> to vector<8x8xbf16>
    %cst_33 = arith.constant dense<0.000000e+00> : vector<8x8xf32>
    %58 = tpu.matmul %57, %43, %cst_33 {dimension_numbers = #tpu.dot_dimension_numbers<[1], [0], [0], [1], [0, 0, 1, 1], [], []>} : vector<8x8xbf16>, vector<8x8xbf16>, vector<8x8xf32> -> vector<8x8xf32>
    %59 = arith.truncf %58 : vector<8x8xf32> to vector<8x8xbf16>
    %c1 = arith.constant 1 : index
    %c0_34 = arith.constant 0 : index
    %c0_35 = arith.constant 0 : index
    %60 = vector.load %arg8[%c1, %c0_34, %c0_35] : memref<4x8x32xbf16, #tpu.memory_space<vmem>>, vector<1x8x32xbf16>
    %61 = vector.shape_cast %60 : vector<1x8x32xbf16> to vector<8x32xbf16>
    %cst_36 = arith.constant dense<0.000000e+00> : vector<8x32xf32>
    %62 = tpu.matmul %59, %61, %cst_36 {dimension_numbers = #tpu.dot_dimension_numbers<[1], [0], [0], [1], [0, 0, 1, 1], [], []>} : vector<8x8xbf16>, vector<8x32xbf16>, vector<8x32xf32> -> vector<8x32xf32>
    %63 = arith.addf %39, %62 : vector<8x32xf32>
    %c0_37 = arith.constant 0 : index
    %c0_38 = arith.constant 0 : index
    %c16 = arith.constant 16 : index
    %64 = vector.load %arg3[%c0_37, %c0_38, %c16] : memref<1x8x32xbf16, #tpu.memory_space<vmem>>, vector<1x8x8xbf16>
    %65 = vector.shape_cast %64 : vector<1x8x8xbf16> to vector<8x8xbf16>
    %c0_39 = arith.constant 0 : index
    %c0_40 = arith.constant 0 : index
    %c16_41 = arith.constant 16 : index
    %66 = vector.load %arg4[%c0_39, %c0_40, %c16_41] : memref<1x8x32xbf16, #tpu.memory_space<vmem>>, vector<1x8x8xbf16>
    %67 = vector.shape_cast %66 : vector<1x8x8xbf16> to vector<8x8xbf16>
    %68 = vector.extract_strided_slice %10 {offsets = [0, 16], sizes = [8, 8], strides = [1, 1]} : vector<8x32xbf16> to vector<8x8xbf16>
    %cst_42 = arith.constant dense<0.000000e+00> : vector<8x8xf32>
    %69 = tpu.matmul %68, %65, %cst_42 {dimension_numbers = #tpu.dot_dimension_numbers<[1], [1], [0], [0], [0, 0, 1, 0], [], []>} : vector<8x8xbf16>, vector<8x8xbf16>, vector<8x8xf32> -> vector<8x8xf32>
    %70 = arith.addf %69, %14 : vector<8x8xf32>
    %cst_43 = arith.constant dense<0xFF800000> : vector<8xf32>
    %71 = vector.multi_reduction <maximumf>, %70, %cst_43 [1] : vector<8x8xf32> to vector<8xf32>
    %72 = vector.shape_cast %71 : vector<8xf32> to vector<8x1xf32>
    %73 = vector.broadcast %72 : vector<8x1xf32> to vector<8x8xf32>
    %74 = arith.subf %70, %73 : vector<8x8xf32>
    %75 = math.exp %74 : vector<8x8xf32>
    %cst_44 = arith.constant dense<0.000000e+00> : vector<8xf32>
    %76 = vector.multi_reduction <add>, %75, %cst_44 [1] : vector<8x8xf32> to vector<8xf32>
    %77 = vector.shape_cast %76 : vector<8xf32> to vector<8x1xf32>
    %78 = tpu.reciprocal %77 {approx = true} : vector<8x1xf32> -> vector<8x1xf32>
    %79 = vector.broadcast %78 : vector<8x1xf32> to vector<8x8xf32>
    %80 = arith.mulf %75, %79 : vector<8x8xf32>
    %81 = arith.truncf %80 : vector<8x8xf32> to vector<8x8xbf16>
    %cst_45 = arith.constant dense<0.000000e+00> : vector<8x8xf32>
    %82 = tpu.matmul %81, %67, %cst_45 {dimension_numbers = #tpu.dot_dimension_numbers<[1], [0], [0], [1], [0, 0, 1, 1], [], []>} : vector<8x8xbf16>, vector<8x8xbf16>, vector<8x8xf32> -> vector<8x8xf32>
    %83 = arith.truncf %82 : vector<8x8xf32> to vector<8x8xbf16>
    %c2 = arith.constant 2 : index
    %c0_46 = arith.constant 0 : index
    %c0_47 = arith.constant 0 : index
    %84 = vector.load %arg8[%c2, %c0_46, %c0_47] : memref<4x8x32xbf16, #tpu.memory_space<vmem>>, vector<1x8x32xbf16>
    %85 = vector.shape_cast %84 : vector<1x8x32xbf16> to vector<8x32xbf16>
    %cst_48 = arith.constant dense<0.000000e+00> : vector<8x32xf32>
    %86 = tpu.matmul %83, %85, %cst_48 {dimension_numbers = #tpu.dot_dimension_numbers<[1], [0], [0], [1], [0, 0, 1, 1], [], []>} : vector<8x8xbf16>, vector<8x32xbf16>, vector<8x32xf32> -> vector<8x32xf32>
    %87 = arith.addf %63, %86 : vector<8x32xf32>
    %c0_49 = arith.constant 0 : index
    %c0_50 = arith.constant 0 : index
    %c24 = arith.constant 24 : index
    %88 = vector.load %arg3[%c0_49, %c0_50, %c24] : memref<1x8x32xbf16, #tpu.memory_space<vmem>>, vector<1x8x8xbf16>
    %89 = vector.shape_cast %88 : vector<1x8x8xbf16> to vector<8x8xbf16>
    %c0_51 = arith.constant 0 : index
    %c0_52 = arith.constant 0 : index
    %c24_53 = arith.constant 24 : index
    %90 = vector.load %arg4[%c0_51, %c0_52, %c24_53] : memref<1x8x32xbf16, #tpu.memory_space<vmem>>, vector<1x8x8xbf16>
    %91 = vector.shape_cast %90 : vector<1x8x8xbf16> to vector<8x8xbf16>
    %92 = vector.extract_strided_slice %10 {offsets = [0, 24], sizes = [8, 8], strides = [1, 1]} : vector<8x32xbf16> to vector<8x8xbf16>
    %cst_54 = arith.constant dense<0.000000e+00> : vector<8x8xf32>
    %93 = tpu.matmul %92, %89, %cst_54 {dimension_numbers = #tpu.dot_dimension_numbers<[1], [1], [0], [0], [0, 0, 1, 0], [], []>} : vector<8x8xbf16>, vector<8x8xbf16>, vector<8x8xf32> -> vector<8x8xf32>
    %94 = arith.addf %93, %14 : vector<8x8xf32>
    %cst_55 = arith.constant dense<0xFF800000> : vector<8xf32>
    %95 = vector.multi_reduction <maximumf>, %94, %cst_55 [1] : vector<8x8xf32> to vector<8xf32>
    %96 = vector.shape_cast %95 : vector<8xf32> to vector<8x1xf32>
    %97 = vector.broadcast %96 : vector<8x1xf32> to vector<8x8xf32>
    %98 = arith.subf %94, %97 : vector<8x8xf32>
    %99 = math.exp %98 : vector<8x8xf32>
    %cst_56 = arith.constant dense<0.000000e+00> : vector<8xf32>
    %100 = vector.multi_reduction <add>, %99, %cst_56 [1] : vector<8x8xf32> to vector<8xf32>
    %101 = vector.shape_cast %100 : vector<8xf32> to vector<8x1xf32>
    %102 = tpu.reciprocal %101 {approx = true} : vector<8x1xf32> -> vector<8x1xf32>
    %103 = vector.broadcast %102 : vector<8x1xf32> to vector<8x8xf32>
    %104 = arith.mulf %99, %103 : vector<8x8xf32>
    %105 = arith.truncf %104 : vector<8x8xf32> to vector<8x8xbf16>
    %cst_57 = arith.constant dense<0.000000e+00> : vector<8x8xf32>
    %106 = tpu.matmul %105, %91, %cst_57 {dimension_numbers = #tpu.dot_dimension_numbers<[1], [0], [0], [1], [0, 0, 1, 1], [], []>} : vector<8x8xbf16>, vector<8x8xbf16>, vector<8x8xf32> -> vector<8x8xf32>
    %107 = arith.truncf %106 : vector<8x8xf32> to vector<8x8xbf16>
    %c3 = arith.constant 3 : index
    %c0_58 = arith.constant 0 : index
    %c0_59 = arith.constant 0 : index
    %108 = vector.load %arg8[%c3, %c0_58, %c0_59] : memref<4x8x32xbf16, #tpu.memory_space<vmem>>, vector<1x8x32xbf16>
    %109 = vector.shape_cast %108 : vector<1x8x32xbf16> to vector<8x32xbf16>
    %cst_60 = arith.constant dense<0.000000e+00> : vector<8x32xf32>
    %110 = tpu.matmul %107, %109, %cst_60 {dimension_numbers = #tpu.dot_dimension_numbers<[1], [0], [0], [1], [0, 0, 1, 1], [], []>} : vector<8x8xbf16>, vector<8x32xbf16>, vector<8x32xf32> -> vector<8x32xf32>
    %111 = arith.addf %87, %110 : vector<8x32xf32>
    %c0_61 = arith.constant 0 : index
    %c0_62 = arith.constant 0 : index
    %112 = vector.load %arg9[%c0_61, %c0_62] : memref<1x32xf32, #tpu.memory_space<vmem>>, vector<1x32xf32>
    %113 = vector.broadcast %112 : vector<1x32xf32> to vector<8x32xf32>
    %114 = arith.addf %111, %113 : vector<8x32xf32>
    %115 = arith.addf %1, %114 : vector<8x32xf32>
    %c0_63 = arith.constant 0 : index
    %c0_64 = arith.constant 0 : index
    %116 = vector.load %arg10[%c0_63, %c0_64] : memref<1x32xf32, #tpu.memory_space<vmem>>, vector<1x32xf32>
    %c0_65 = arith.constant 0 : index
    %c0_66 = arith.constant 0 : index
    %117 = vector.load %arg11[%c0_65, %c0_66] : memref<1x32xf32, #tpu.memory_space<vmem>>, vector<1x32xf32>
    %cst_67 = arith.constant dense<0.000000e+00> : vector<8xf32>
    %118 = vector.multi_reduction <add>, %115, %cst_67 [1] : vector<8x32xf32> to vector<8xf32>
    %119 = vector.shape_cast %118 : vector<8xf32> to vector<8x1xf32>
    %cst_68 = arith.constant 3.200000e+01 : f32
    %120 = vector.broadcast %cst_68 : f32 to vector<8x1xf32>
    %121 = arith.divf %119, %120 : vector<8x1xf32>
    %122 = vector.broadcast %121 : vector<8x1xf32> to vector<8x32xf32>
    %123 = arith.subf %115, %122 : vector<8x32xf32>
    %124 = arith.mulf %123, %123 : vector<8x32xf32>
    %cst_69 = arith.constant dense<0.000000e+00> : vector<8xf32>
    %125 = vector.multi_reduction <add>, %124, %cst_69 [1] : vector<8x32xf32> to vector<8xf32>
    %126 = vector.shape_cast %125 : vector<8xf32> to vector<8x1xf32>
    %cst_70 = arith.constant 3.200000e+01 : f32
    %127 = vector.broadcast %cst_70 : f32 to vector<8x1xf32>
    %128 = arith.divf %126, %127 : vector<8x1xf32>
    %cst_71 = arith.constant 9.99999974E-6 : f32
    %129 = vector.broadcast %cst_71 : f32 to vector<8x1xf32>
    %130 = arith.addf %128, %129 : vector<8x1xf32>
    %131 = math.rsqrt %130 : vector<8x1xf32>
    %132 = vector.broadcast %121 : vector<8x1xf32> to vector<8x32xf32>
    %133 = arith.subf %115, %132 : vector<8x32xf32>
    %134 = vector.broadcast %131 : vector<8x1xf32> to vector<8x32xf32>
    %135 = arith.mulf %133, %134 : vector<8x32xf32>
    %136 = vector.broadcast %116 : vector<1x32xf32> to vector<8x32xf32>
    %137 = arith.mulf %135, %136 : vector<8x32xf32>
    %138 = vector.broadcast %117 : vector<1x32xf32> to vector<8x32xf32>
    %139 = arith.addf %137, %138 : vector<8x32xf32>
    %140 = arith.truncf %139 : vector<8x32xf32> to vector<8x32xbf16>
    %c0_72 = arith.constant 0 : index
    %c0_73 = arith.constant 0 : index
    %141 = vector.load %arg12[%c0_72, %c0_73] : memref<32x64xbf16, #tpu.memory_space<vmem>>, vector<32x64xbf16>
    %cst_74 = arith.constant dense<0.000000e+00> : vector<8x64xf32>
    %142 = tpu.matmul %140, %141, %cst_74 {dimension_numbers = #tpu.dot_dimension_numbers<[1], [0], [0], [1], [0, 0, 1, 1], [], []>} : vector<8x32xbf16>, vector<32x64xbf16>, vector<8x64xf32> -> vector<8x64xf32>
    %c0_75 = arith.constant 0 : index
    %c0_76 = arith.constant 0 : index
    %143 = vector.load %arg13[%c0_75, %c0_76] : memref<1x64xf32, #tpu.memory_space<vmem>>, vector<1x64xf32>
    %144 = vector.broadcast %143 : vector<1x64xf32> to vector<8x64xf32>
    %145 = arith.addf %142, %144 : vector<8x64xf32>
    %cst_77 = arith.constant 0.000000e+00 : f32
    %146 = vector.broadcast %cst_77 : f32 to vector<8x64xf32>
    %147 = arith.maximumf %145, %146 : vector<8x64xf32>
    %148 = arith.truncf %147 : vector<8x64xf32> to vector<8x64xbf16>
    %c0_78 = arith.constant 0 : index
    %c0_79 = arith.constant 0 : index
    %149 = vector.load %arg14[%c0_78, %c0_79] : memref<64x32xbf16, #tpu.memory_space<vmem>>, vector<64x32xbf16>
    %cst_80 = arith.constant dense<0.000000e+00> : vector<8x32xf32>
    %150 = tpu.matmul %148, %149, %cst_80 {dimension_numbers = #tpu.dot_dimension_numbers<[1], [0], [0], [1], [0, 0, 1, 1], [], []>} : vector<8x64xbf16>, vector<64x32xbf16>, vector<8x32xf32> -> vector<8x32xf32>
    %c0_81 = arith.constant 0 : index
    %c0_82 = arith.constant 0 : index
    %151 = vector.load %arg15[%c0_81, %c0_82] : memref<1x32xf32, #tpu.memory_space<vmem>>, vector<1x32xf32>
    %152 = vector.broadcast %151 : vector<1x32xf32> to vector<8x32xf32>
    %153 = arith.addf %150, %152 : vector<8x32xf32>
    %154 = arith.addf %139, %153 : vector<8x32xf32>
    %c0_83 = arith.constant 0 : index
    %c0_84 = arith.constant 0 : index
    %155 = vector.load %arg16[%c0_83, %c0_84] : memref<1x32xf32, #tpu.memory_space<vmem>>, vector<1x32xf32>
    %c0_85 = arith.constant 0 : index
    %c0_86 = arith.constant 0 : index
    %156 = vector.load %arg17[%c0_85, %c0_86] : memref<1x32xf32, #tpu.memory_space<vmem>>, vector<1x32xf32>
    %cst_87 = arith.constant dense<0.000000e+00> : vector<8xf32>
    %157 = vector.multi_reduction <add>, %154, %cst_87 [1] : vector<8x32xf32> to vector<8xf32>
    %158 = vector.shape_cast %157 : vector<8xf32> to vector<8x1xf32>
    %cst_88 = arith.constant 3.200000e+01 : f32
    %159 = vector.broadcast %cst_88 : f32 to vector<8x1xf32>
    %160 = arith.divf %158, %159 : vector<8x1xf32>
    %161 = vector.broadcast %160 : vector<8x1xf32> to vector<8x32xf32>
    %162 = arith.subf %154, %161 : vector<8x32xf32>
    %163 = arith.mulf %162, %162 : vector<8x32xf32>
    %cst_89 = arith.constant dense<0.000000e+00> : vector<8xf32>
    %164 = vector.multi_reduction <add>, %163, %cst_89 [1] : vector<8x32xf32> to vector<8xf32>
    %165 = vector.shape_cast %164 : vector<8xf32> to vector<8x1xf32>
    %cst_90 = arith.constant 3.200000e+01 : f32
    %166 = vector.broadcast %cst_90 : f32 to vector<8x1xf32>
    %167 = arith.divf %165, %166 : vector<8x1xf32>
    %cst_91 = arith.constant 9.99999974E-6 : f32
    %168 = vector.broadcast %cst_91 : f32 to vector<8x1xf32>
    %169 = arith.addf %167, %168 : vector<8x1xf32>
    %170 = math.rsqrt %169 : vector<8x1xf32>
    %171 = vector.broadcast %160 : vector<8x1xf32> to vector<8x32xf32>
    %172 = arith.subf %154, %171 : vector<8x32xf32>
    %173 = vector.broadcast %170 : vector<8x1xf32> to vector<8x32xf32>
    %174 = arith.mulf %172, %173 : vector<8x32xf32>
    %175 = vector.broadcast %155 : vector<1x32xf32> to vector<8x32xf32>
    %176 = arith.mulf %174, %175 : vector<8x32xf32>
    %177 = vector.broadcast %156 : vector<1x32xf32> to vector<8x32xf32>
    %178 = arith.addf %176, %177 : vector<8x32xf32>
    %c0_92 = arith.constant 0 : index
    %c0_93 = arith.constant 0 : index
    %c0_94 = arith.constant 0 : index
    %179 = vector.load %arg18[%c0_92, %c0_93, %c0_94] : memref<1x8x32xf32, #tpu.memory_space<vmem>>, vector<1x8x32xf32>
    %180 = vector.shape_cast %179 : vector<1x8x32xf32> to vector<8x32xf32>
    %181 = vector.shape_cast %178 : vector<8x32xf32> to vector<1x8x32xf32>
    tpu.vector_store %arg18[%c0_92, %c0_93, %c0_94], %181 {strides = array<i32>} : memref<1x8x32xf32, #tpu.memory_space<vmem>>, vector<1x8x32xf32>,
    return
  }
  func.func @transform_0(%arg0: i32, %arg1: i32) -> (i32, i32, i32) {
    %c0_i32 = arith.constant 0 : i32
    %c0_i32_0 = arith.constant 0 : i32
    return %arg0, %arg1, %c0_i32 : i32, i32, i32
  }
  func.func @transform_1(%arg0: i32, %arg1: i32) -> (i32, i32, i32) {
    %c0_i32 = arith.constant 0 : i32
    %c0_i32_0 = arith.constant 0 : i32
    %c0_i32_1 = arith.constant 0 : i32
    return %arg0, %c0_i32, %c0_i32_0 : i32, i32, i32
  }
  func.func @transform_2(%arg0: i32, %arg1: i32) -> (i32, i32, i32) {
    %c0_i32 = arith.constant 0 : i32
    %c0_i32_0 = arith.constant 0 : i32
    %c0_i32_1 = arith.constant 0 : i32
    return %arg0, %c0_i32, %c0_i32_0 : i32, i32, i32
  }
  func.func @transform_3(%arg0: i32, %arg1: i32) -> (i32, i32, i32) {
    %c0_i32 = arith.constant 0 : i32
    %c0_i32_0 = arith.constant 0 : i32
    %c0_i32_1 = arith.constant 0 : i32
    return %arg0, %c0_i32, %c0_i32_0 : i32, i32, i32
  }
  func.func @transform_4(%arg0: i32, %arg1: i32) -> (i32, i32) {
    %c0_i32 = arith.constant 0 : i32
    %c0_i32_0 = arith.constant 0 : i32
    %c0_i32_1 = arith.constant 0 : i32
    return %c0_i32, %c0_i32_0 : i32, i32
  }
  func.func @transform_5(%arg0: i32, %arg1: i32) -> (i32, i32) {
    %c0_i32 = arith.constant 0 : i32
    %c0_i32_0 = arith.constant 0 : i32
    %c0_i32_1 = arith.constant 0 : i32
    return %c0_i32, %c0_i32_0 : i32, i32
  }
  func.func @transform_6(%arg0: i32, %arg1: i32) -> (i32, i32, i32) {
    %c0_i32 = arith.constant 0 : i32
    %c0_i32_0 = arith.constant 0 : i32
    %c0_i32_1 = arith.constant 0 : i32
    %c0_i32_2 = arith.constant 0 : i32
    return %c0_i32, %c0_i32_0, %c0_i32_1 : i32, i32, i32
  }
  func.func @transform_7(%arg0: i32, %arg1: i32) -> (i32, i32) {
    %c0_i32 = arith.constant 0 : i32
    %c0_i32_0 = arith.constant 0 : i32
    %c0_i32_1 = arith.constant 0 : i32
    return %c0_i32, %c0_i32_0 : i32, i32
  }
  func.func @transform_8(%arg0: i32, %arg1: i32) -> (i32, i32) {
    %c0_i32 = arith.constant 0 : i32
    %c0_i32_0 = arith.constant 0 : i32
    %c0_i32_1 = arith.constant 0 : i32
    return %c0_i32, %c0_i32_0 : i32, i32
  }
  func.func @transform_9(%arg0: i32, %arg1: i32) -> (i32, i32) {
    %c0_i32 = arith.constant 0 : i32
    %c0_i32_0 = arith.constant 0 : i32
    %c0_i32_1 = arith.constant 0 : i32
    return %c0_i32, %c0_i32_0 : i32, i32
  }
  func.func @transform_10(%arg0: i32, %arg1: i32) -> (i32, i32) {
    %c0_i32 = arith.constant 0 : i32
    %c0_i32_0 = arith.constant 0 : i32
    %c0_i32_1 = arith.constant 0 : i32
    return %c0_i32, %c0_i32_0 : i32, i32
  }
  func.func @transform_11(%arg0: i32, %arg1: i32) -> (i32, i32) {
    %c0_i32 = arith.constant 0 : i32
    %c0_i32_0 = arith.constant 0 : i32
    %c0_i32_1 = arith.constant 0 : i32
    return %c0_i32, %c0_i32_0 : i32, i32
  }
  func.func @transform_12(%arg0: i32, %arg1: i32) -> (i32, i32) {
    %c0_i32 = arith.constant 0 : i32
    %c0_i32_0 = arith.constant 0 : i32
    %c0_i32_1 = arith.constant 0 : i32
    return %c0_i32, %c0_i32_0 : i32, i32
  }
  func.func @transform_13(%arg0: i32, %arg1: i32) -> (i32, i32) {
    %c0_i32 = arith.constant 0 : i32
    %c0_i32_0 = arith.constant 0 : i32
    %c0_i32_1 = arith.constant 0 : i32
    return %c0_i32, %c0_i32_0 : i32, i32
  }
  func.func @transform_14(%arg0: i32, %arg1: i32) -> (i32, i32) {
    %c0_i32 = arith.constant 0 : i32
    %c0_i32_0 = arith.constant 0 : i32
    %c0_i32_1 = arith.constant 0 : i32
    return %c0_i32, %c0_i32_0 : i32, i32
  }
  func.func @transform_15(%arg0: i32, %arg1: i32) -> (i32, i32) {
    %c0_i32 = arith.constant 0 : i32
    %c0_i32_0 = arith.constant 0 : i32
    %c0_i32_1 = arith.constant 0 : i32
    return %c0_i32, %c0_i32_0 : i32, i32
  }
  func.func @transform_16(%arg0: i32, %arg1: i32) -> (i32, i32, i32) {
    %c0_i32 = arith.constant 0 : i32
    %c0_i32_0 = arith.constant 0 : i32
    return %arg0, %arg1, %c0_i32 : i32, i32, i32
  }
}

module attributes {stable_mosaic.version = 11 : i64} {
  func.func @encoder_layer_kernel(%arg0: i32, %arg1: i32, %arg2: memref<1x8x32xf32, #tpu.memory_space<vmem>>, %arg3: memref<1x8x32xbf16, #tpu.memory_space<vmem>>, %arg4: memref<1x8x32xbf16, #tpu.memory_space<vmem>>, %arg5: memref<1x1x8xf32, #tpu.memory_space<vmem>>, %arg6: memref<32x32xbf16, #tpu.memory_space<vmem>>, %arg7: memref<1x32xf32, #tpu.memory_space<vmem>>, %arg8: memref<4x8x32xbf16, #tpu.memory_space<vmem>>, %arg9: memref<1x32xf32, #tpu.memory_space<vmem>>, %arg10: memref<1x32xf32, #tpu.memory_space<vmem>>, %arg11: memref<1x32xf32, #tpu.memory_space<vmem>>, %arg12: memref<32x64xbf16, #tpu.memory_space<vmem>>, %arg13: memref<1x64xf32, #tpu.memory_space<vmem>>, %arg14: memref<64x32xbf16, #tpu.memory_space<vmem>>, %arg15: memref<1x32xf32, #tpu.memory_space<vmem>>, %arg16: memref<1x32xf32, #tpu.memory_space<vmem>>, %arg17: memref<1x32xf32, #tpu.memory_space<vmem>>, %arg18: memref<1x8x32xf32, #tpu.memory_space<vmem>>, %arg19: memref<8x32xbf16, #tpu.memory_space<vmem>>) attributes {dimension_semantics = [#tpu.dimension_semantics<parallel>, #tpu.dimension_semantics<parallel>], iteration_bounds = array<i64: 2, 1>, scalar_prefetch = 0 : i64, scratch_operands = 1 : i64, tpu.core_type = #tpu.core_type<tc>, window_params = [{transform_indices = @transform_0, window_bounds = array<i64: 1, 8, 32>}, {transform_indices = @transform_1, window_bounds = array<i64: 1, 8, 32>}, {transform_indices = @transform_2, window_bounds = array<i64: 1, 8, 32>}, {transform_indices = @transform_3, window_bounds = array<i64: 1, 1, 8>}, {pipeline_mode = #tpu.pipeline_mode<synchronous>, transform_indices = @transform_4, window_bounds = array<i64: 32, 32>}, {pipeline_mode = #tpu.pipeline_mode<synchronous>, transform_indices = @transform_5, window_bounds = array<i64: 1, 32>}, {pipeline_mode = #tpu.pipeline_mode<synchronous>, transform_indices = @transform_6, window_bounds = array<i64: 4, 8, 32>}, {pipeline_mode = #tpu.pipeline_mode<synchronous>, transform_indices = @transform_7, window_bounds = array<i64: 1, 32>}, {pipeline_mode = #tpu.pipeline_mode<synchronous>, transform_indices = @transform_8, window_bounds = array<i64: 1, 32>}, {pipeline_mode = #tpu.pipeline_mode<synchronous>, transform_indices = @transform_9, window_bounds = array<i64: 1, 32>}, {pipeline_mode = #tpu.pipeline_mode<synchronous>, transform_indices = @transform_10, window_bounds = array<i64: 32, 64>}, {pipeline_mode = #tpu.pipeline_mode<synchronous>, transform_indices = @transform_11, window_bounds = array<i64: 1, 64>}, {pipeline_mode = #tpu.pipeline_mode<synchronous>, transform_indices = @transform_12, window_bounds = array<i64: 64, 32>}, {pipeline_mode = #tpu.pipeline_mode<synchronous>, transform_indices = @transform_13, window_bounds = array<i64: 1, 32>}, {pipeline_mode = #tpu.pipeline_mode<synchronous>, transform_indices = @transform_14, window_bounds = array<i64: 1, 32>}, {pipeline_mode = #tpu.pipeline_mode<synchronous>, transform_indices = @transform_15, window_bounds = array<i64: 1, 32>}, {transform_indices = @transform_16, window_bounds = array<i64: 1, 8, 32>}]} {
    %c0 = arith.constant 0 : index
    %c0_0 = arith.constant 0 : index
    %c0_1 = arith.constant 0 : index
    %0 = vector.load %arg2[%c0, %c0_0, %c0_1] : memref<1x8x32xf32, #tpu.memory_space<vmem>>, vector<1x8x32xf32>
    %1 = vector.shape_cast %0 : vector<1x8x32xf32> to vector<8x32xf32>
    %2 = arith.truncf %1 : vector<8x32xf32> to vector<8x32xbf16>
    %c0_2 = arith.constant 0 : index
    %c0_3 = arith.constant 0 : index
    %3 = vector.load %arg6[%c0_2, %c0_3] : memref<32x32xbf16, #tpu.memory_space<vmem>>, vector<32x32xbf16>
    %cst = arith.constant dense<0.000000e+00> : vector<8x32xf32>
    %4 = tpu.matmul %2, %3, %cst {dimension_numbers = #tpu.dot_dimension_numbers<[1], [0], [0], [1], [0, 0, 1, 1], [], []>} : vector<8x32xbf16>, vector<32x32xbf16>, vector<8x32xf32> -> vector<8x32xf32>
    %c0_4 = arith.constant 0 : index
    %c0_5 = arith.constant 0 : index
    %5 = vector.load %arg7[%c0_4, %c0_5] : memref<1x32xf32, #tpu.memory_space<vmem>>, vector<1x32xf32>
    %6 = vector.broadcast %5 : vector<1x32xf32> to vector<8x32xf32>
    %7 = arith.addf %4, %6 : vector<8x32xf32>
    %cst_6 = arith.constant 0.353553385 : f32
    %8 = vector.broadcast %cst_6 : f32 to vector<8x32xf32>
    %9 = arith.mulf %7, %8 : vector<8x32xf32>
    %10 = arith.truncf %9 : vector<8x32xf32> to vector<8x32xbf16>
    %c0_7 = arith.constant 0 : index
    %c0_8 = arith.constant 0 : index
    %c0_9 = arith.constant 0 : index
    %11 = vector.load %arg5[%c0_7, %c0_8, %c0_9] : memref<1x1x8xf32, #tpu.memory_space<vmem>>, vector<1x1x8xf32>
    %12 = vector.shape_cast %11 : vector<1x1x8xf32> to vector<1x8xf32>
    %13 = vector.shape_cast %12 : vector<1x8xf32> to vector<1x8xf32>
    %14 = vector.broadcast %13 : vector<1x8xf32> to vector<8x8xf32>
    %cst_10 = arith.constant 0.000000e+00 : f32
    %15 = vector.broadcast %cst_10 : f32 to vector<8x32xf32>
    %c0_11 = arith.constant 0 : index
    %c0_12 = arith.constant 0 : index
    %c0_13 = arith.constant 0 : index
    %16 = vector.load %arg3[%c0_11, %c0_12, %c0_13] : memref<1x8x32xbf16, #tpu.memory_space<vmem>>, vector<1x8x8xbf16>
    %17 = vector.shape_cast %16 : vector<1x8x8xbf16> to vector<8x8xbf16>
    %c0_14 = arith.constant 0 : index
    %c0_15 = arith.constant 0 : index
    %c0_16 = arith.constant 0 : index
    %18 = vector.load %arg4[%c0_14, %c0_15, %c0_16] : memref<1x8x32xbf16, #tpu.memory_space<vmem>>, vector<1x8x8xbf16>
    %19 = vector.shape_cast %18 : vector<1x8x8xbf16> to vector<8x8xbf16>
    %20 = vector.extract_strided_slice %10 {offsets = [0, 0], sizes = [8, 8], strides = [1, 1]} : vector<8x32xbf16> to vector<8x8xbf16>
    %cst_17 = arith.constant dense<0.000000e+00> : vector<8x8xf32>
    %21 = tpu.matmul %20, %17, %cst_17 {dimension_numbers = #tpu.dot_dimension_numbers<[1], [1], [0], [0], [0, 0, 1, 0], [], []>} : vector<8x8xbf16>, vector<8x8xbf16>, vector<8x8xf32> -> vector<8x8xf32>
    %22 = arith.addf %21, %14 : vector<8x8xf32>
    %cst_18 = arith.constant dense<0xFF800000> : vector<8xf32>
    %23 = vector.multi_reduction <maximumf>, %22, %cst_18 [1] : vector<8x8xf32> to vector<8xf32>
    %24 = vector.shape_cast %23 : vector<8xf32> to vector<8x1xf32>
    %25 = vector.broadcast %24 : vector<8x1xf32> to vector<8x8xf32>
    %26 = arith.subf %22, %25 : vector<8x8xf32>
    %27 = math.exp %26 : vector<8x8xf32>
    %cst_19 = arith.constant dense<0.000000e+00> : vector<8xf32>
    %28 = vector.multi_reduction <add>, %27, %cst_19 [1] : vector<8x8xf32> to vector<8xf32>
    %29 = vector.shape_cast %28 : vector<8xf32> to vector<8x1xf32>
    %30 = tpu.reciprocal %29 {approx = true} : vector<8x1xf32> -> vector<8x1xf32>
    %31 = vector.broadcast %30 : vector<8x1xf32> to vector<8x8xf32>
    %32 = arith.mulf %27, %31 : vector<8x8xf32>
    %33 = arith.truncf %32 : vector<8x8xf32> to vector<8x8xbf16>
    %cst_20 = arith.constant dense<0.000000e+00> : vector<8x8xf32>
    %34 = tpu.matmul %33, %19, %cst_20 {dimension_numbers = #tpu.dot_dimension_numbers<[1], [0], [0], [1], [0, 0, 1, 1], [], []>} : vector<8x8xbf16>, vector<8x8xbf16>, vector<8x8xf32> -> vector<8x8xf32>
    %35 = arith.truncf %34 : vector<8x8xf32> to vector<8x8xbf16>
    %c0_21 = arith.constant 0 : index
    %c0_22 = arith.constant 0 : index
    %c0_23 = arith.constant 0 : index
    %36 = vector.load %arg8[%c0_21, %c0_22, %c0_23] : memref<4x8x32xbf16, #tpu.memory_space<vmem>>, vector<1x8x32xbf16>
    %37 = vector.shape_cast %36 : vector<1x8x32xbf16> to vector<8x32xbf16>
    %cst_24 = arith.constant dense<0.000000e+00> : vector<8x32xf32>
    %38 = tpu.matmul %35, %37, %cst_24 {dimension_numbers = #tpu.dot_dimension_numbers<[1], [0], [0], [1], [0, 0, 1, 1], [], []>} : vector<8x8xbf16>, vector<8x32xbf16>, vector<8x32xf32> -> vector<8x32xf32>
    %39 = arith.addf %15, %38 : vector<8x32xf32>
    %c0_25 = arith.constant 0 : index
    %c0_26 = arith.constant 0 : index
    %c8 = arith.constant 8 : index
    %40 = vector.load %arg3[%c0_25, %c0_26, %c8] : memref<1x8x32xbf16, #tpu.memory_space<vmem>>, vector<1x8x8xbf16>
    %41 = vector.shape_cast %40 : vector<1x8x8xbf16> to vector<8x8xbf16>
    %c0_27 = arith.constant 0 : index
    %c0_28 = arith.constant 0 : index
    %c8_29 = arith.constant 8 : index
    %42 = vector.load %arg4[%c0_27, %c0_28, %c8_29] : memref<1x8x32xbf16, #tpu.memory_space<vmem>>, vector<1x8x8xbf16>
    %43 = vector.shape_cast %42 : vector<1x8x8xbf16> to vector<8x8xbf16>
    %44 = vector.extract_strided_slice %10 {offsets = [0, 8], sizes = [8, 8], strides = [1, 1]} : vector<8x32xbf16> to vector<8x8xbf16>
    %cst_30 = arith.constant dense<0.000000e+00> : vector<8x8xf32>
    %45 = tpu.matmul %44, %41, %cst_30 {dimension_numbers = #tpu.dot_dimension_numbers<[1], [1], [0], [0], [0, 0, 1, 0], [], []>} : vector<8x8xbf16>, vector<8x8xbf16>, vector<8x8xf32> -> vector<8x8xf32>
    %46 = arith.addf %45, %14 : vector<8x8xf32>
    %cst_31 = arith.constant dense<0xFF800000> : vector<8xf32>
    %47 = vector.multi_reduction <maximumf>, %46, %cst_31 [1] : vector<8x8xf32> to vector<8xf32>
    %48 = vector.shape_cast %47 : vector<8xf32> to vector<8x1xf32>
    %49 = vector.broadcast %48 : vector<8x1xf32> to vector<8x8xf32>
    %50 = arith.subf %46, %49 : vector<8x8xf32>
    %51 = math.exp %50 : vector<8x8xf32>
    %cst_32 = arith.constant dense<0.000000e+00> : vector<8xf32>
    %52 = vector.multi_reduction <add>, %51, %cst_32 [1] : vector<8x8xf32> to vector<8xf32>
    %53 = vector.shape_cast %52 : vector<8xf32> to vector<8x1xf32>
    %54 = tpu.reciprocal %53 {approx = true} : vector<8x1xf32> -> vector<8x1xf32>
    %55 = vector.broadcast %54 : vector<8x1xf32> to vector<8x8xf32>
    %56 = arith.mulf %51, %55 : vector<8x8xf32>
    %57 = arith.truncf %56 : vector<8x8xf32> to vector<8x8xbf16>
    %cst_33 = arith.constant dense<0.000000e+00> : vector<8x8xf32>
    %58 = tpu.matmul %57, %43, %cst_33 {dimension_numbers = #tpu.dot_dimension_numbers<[1], [0], [0], [1], [0, 0, 1, 1], [], []>} : vector<8x8xbf16>, vector<8x8xbf16>, vector<8x8xf32> -> vector<8x8xf32>
    %59 = arith.truncf %58 : vector<8x8xf32> to vector<8x8xbf16>
    %c1 = arith.constant 1 : index
    %c0_34 = arith.constant 0 : index
    %c0_35 = arith.constant 0 : index
    %60 = vector.load %arg8[%c1, %c0_34, %c0_35] : memref<4x8x32xbf16, #tpu.memory_space<vmem>>, vector<1x8x32xbf16>
    %61 = vector.shape_cast %60 : vector<1x8x32xbf16> to vector<8x32xbf16>
    %cst_36 = arith.constant dense<0.000000e+00> : vector<8x32xf32>
    %62 = tpu.matmul %59, %61, %cst_36 {dimension_numbers = #tpu.dot_dimension_numbers<[1], [0], [0], [1], [0, 0, 1, 1], [], []>} : vector<8x8xbf16>, vector<8x32xbf16>, vector<8x32xf32> -> vector<8x32xf32>
    %63 = arith.addf %39, %62 : vector<8x32xf32>
    %c0_37 = arith.constant 0 : index
    %c0_38 = arith.constant 0 : index
    %c16 = arith.constant 16 : index
    %64 = vector.load %arg3[%c0_37, %c0_38, %c16] : memref<1x8x32xbf16, #tpu.memory_space<vmem>>, vector<1x8x8xbf16>
    %65 = vector.shape_cast %64 : vector<1x8x8xbf16> to vector<8x8xbf16>
    %c0_39 = arith.constant 0 : index
    %c0_40 = arith.constant 0 : index
    %c16_41 = arith.constant 16 : index
    %66 = vector.load %arg4[%c0_39, %c0_40, %c16_41] : memref<1x8x32xbf16, #tpu.memory_space<vmem>>, vector<1x8x8xbf16>
    %67 = vector.shape_cast %66 : vector<1x8x8xbf16> to vector<8x8xbf16>
    %68 = vector.extract_strided_slice %10 {offsets = [0, 16], sizes = [8, 8], strides = [1, 1]} : vector<8x32xbf16> to vector<8x8xbf16>
    %cst_42 = arith.constant dense<0.000000e+00> : vector<8x8xf32>
    %69 = tpu.matmul %68, %65, %cst_42 {dimension_numbers = #tpu.dot_dimension_numbers<[1], [1], [0], [0], [0, 0, 1, 0], [], []>} : vector<8x8xbf16>, vector<8x8xbf16>, vector<8x8xf32> -> vector<8x8xf32>
    %70 = arith.addf %69, %14 : vector<8x8xf32>
    %cst_43 = arith.constant dense<0xFF800000> : vector<8xf32>
    %71 = vector.multi_reduction <maximumf>, %70, %cst_43 [1] : vector<8x8xf32> to vector<8xf32>
    %72 = vector.shape_cast %71 : vector<8xf32> to vector<8x1xf32>
    %73 = vector.broadcast %72 : vector<8x1xf32> to vector<8x8xf32>
    %74 = arith.subf %70, %73 : vector<8x8xf32>
    %75 = math.exp %74 : vector<8x8xf32>
    %cst_44 = arith.constant dense<0.000000e+00> : vector<8xf32>
    %76 = vector.multi_reduction <add>, %75, %cst_44 [1] : vector<8x8xf32> to vector<8xf32>
    %77 = vector.shape_cast %76 : vector<8xf32> to vector<8x1xf32>
    %78 = tpu.reciprocal %77 {approx = true} : vector<8x1xf32> -> vector<8x1xf32>
    %79 = vector.broadcast %78 : vector<8x1xf32> to vector<8x8xf32>
    %80 = arith.mulf %75, %79 : vector<8x8xf32>
    %81 = arith.truncf %80 : vector<8x8xf32> to vector<8x8xbf16>
    %cst_45 = arith.constant dense<0.000000e+00> : vector<8x8xf32>
    %82 = tpu.matmul %81, %67, %cst_45 {dimension_numbers = #tpu.dot_dimension_numbers<[1], [0], [0], [1], [0, 0, 1, 1], [], []>} : vector<8x8xbf16>, vector<8x8xbf16>, vector<8x8xf32> -> vector<8x8xf32>
    %83 = arith.truncf %82 : vector<8x8xf32> to vector<8x8xbf16>
    %c2 = arith.constant 2 : index
    %c0_46 = arith.constant 0 : index
    %c0_47 = arith.constant 0 : index
    %84 = vector.load %arg8[%c2, %c0_46, %c0_47] : memref<4x8x32xbf16, #tpu.memory_space<vmem>>, vector<1x8x32xbf16>
    %85 = vector.shape_cast %84 : vector<1x8x32xbf16> to vector<8x32xbf16>
    %cst_48 = arith.constant dense<0.000000e+00> : vector<8x32xf32>
    %86 = tpu.matmul %83, %85, %cst_48 {dimension_numbers = #tpu.dot_dimension_numbers<[1], [0], [0], [1], [0, 0, 1, 1], [], []>} : vector<8x8xbf16>, vector<8x32xbf16>, vector<8x32xf32> -> vector<8x32xf32>
    %87 = arith.addf %63, %86 : vector<8x32xf32>
    %c0_49 = arith.constant 0 : index
    %c0_50 = arith.constant 0 : index
    %c24 = arith.constant 24 : index
    %88 = vector.load %arg3[%c0_49, %c0_50, %c24] : memref<1x8x32xbf16, #tpu.memory_space<vmem>>, vector<1x8x8xbf16>
    %89 = vector.shape_cast %88 : vector<1x8x8xbf16> to vector<8x8xbf16>
    %c0_51 = arith.constant 0 : index
    %c0_52 = arith.constant 0 : index
    %c24_53 = arith.constant 24 : index
    %90 = vector.load %arg4[%c0_51, %c0_52, %c24_53] : memref<1x8x32xbf16, #tpu.memory_space<vmem>>, vector<1x8x8xbf16>
    %91 = vector.shape_cast %90 : vector<1x8x8xbf16> to vector<8x8xbf16>
    %92 = vector.extract_strided_slice %10 {offsets = [0, 24], sizes = [8, 8], strides = [1, 1]} : vector<8x32xbf16> to vector<8x8xbf16>
    %cst_54 = arith.constant dense<0.000000e+00> : vector<8x8xf32>
    %93 = tpu.matmul %92, %89, %cst_54 {dimension_numbers = #tpu.dot_dimension_numbers<[1], [1], [0], [0], [0, 0, 1, 0], [], []>} : vector<8x8xbf16>, vector<8x8xbf16>, vector<8x8xf32> -> vector<8x8xf32>
    %94 = arith.addf %93, %14 : vector<8x8xf32>
    %cst_55 = arith.constant dense<0xFF800000> : vector<8xf32>
    %95 = vector.multi_reduction <maximumf>, %94, %cst_55 [1] : vector<8x8xf32> to vector<8xf32>
    %96 = vector.shape_cast %95 : vector<8xf32> to vector<8x1xf32>
    %97 = vector.broadcast %96 : vector<8x1xf32> to vector<8x8xf32>
    %98 = arith.subf %94, %97 : vector<8x8xf32>
    %99 = math.exp %98 : vector<8x8xf32>
    %cst_56 = arith.constant dense<0.000000e+00> : vector<8xf32>
    %100 = vector.multi_reduction <add>, %99, %cst_56 [1] : vector<8x8xf32> to vector<8xf32>
    %101 = vector.shape_cast %100 : vector<8xf32> to vector<8x1xf32>
    %102 = tpu.reciprocal %101 {approx = true} : vector<8x1xf32> -> vector<8x1xf32>
    %103 = vector.broadcast %102 : vector<8x1xf32> to vector<8x8xf32>
    %104 = arith.mulf %99, %103 : vector<8x8xf32>
    %105 = arith.truncf %104 : vector<8x8xf32> to vector<8x8xbf16>
    %cst_57 = arith.constant dense<0.000000e+00> : vector<8x8xf32>
    %106 = tpu.matmul %105, %91, %cst_57 {dimension_numbers = #tpu.dot_dimension_numbers<[1], [0], [0], [1], [0, 0, 1, 1], [], []>} : vector<8x8xbf16>, vector<8x8xbf16>, vector<8x8xf32> -> vector<8x8xf32>
    %107 = arith.truncf %106 : vector<8x8xf32> to vector<8x8xbf16>
    %c3 = arith.constant 3 : index
    %c0_58 = arith.constant 0 : index
    %c0_59 = arith.constant 0 : index
    %108 = vector.load %arg8[%c3, %c0_58, %c0_59] : memref<4x8x32xbf16, #tpu.memory_space<vmem>>, vector<1x8x32xbf16>
    %109 = vector.shape_cast %108 : vector<1x8x32xbf16> to vector<8x32xbf16>
    %cst_60 = arith.constant dense<0.000000e+00> : vector<8x32xf32>
    %110 = tpu.matmul %107, %109, %cst_60 {dimension_numbers = #tpu.dot_dimension_numbers<[1], [0], [0], [1], [0, 0, 1, 1], [], []>} : vector<8x8xbf16>, vector<8x32xbf16>, vector<8x32xf32> -> vector<8x32xf32>
    %111 = arith.addf %87, %110 : vector<8x32xf32>
    %c0_61 = arith.constant 0 : index
    %c0_62 = arith.constant 0 : index
    %112 = vector.load %arg9[%c0_61, %c0_62] : memref<1x32xf32, #tpu.memory_space<vmem>>, vector<1x32xf32>
    %113 = vector.broadcast %112 : vector<1x32xf32> to vector<8x32xf32>
    %114 = arith.addf %111, %113 : vector<8x32xf32>
    %115 = arith.addf %1, %114 : vector<8x32xf32>
    %c0_63 = arith.constant 0 : index
    %c0_64 = arith.constant 0 : index
    %116 = vector.load %arg10[%c0_63, %c0_64] : memref<1x32xf32, #tpu.memory_space<vmem>>, vector<1x32xf32>
    %c0_65 = arith.constant 0 : index
    %c0_66 = arith.constant 0 : index
    %117 = vector.load %arg11[%c0_65, %c0_66] : memref<1x32xf32, #tpu.memory_space<vmem>>, vector<1x32xf32>
    %cst_67 = arith.constant dense<0.000000e+00> : vector<8xf32>
    %118 = vector.multi_reduction <add>, %115, %cst_67 [1] : vector<8x32xf32> to vector<8xf32>
    %119 = vector.shape_cast %118 : vector<8xf32> to vector<8x1xf32>
    %cst_68 = arith.constant 3.200000e+01 : f32
    %120 = vector.broadcast %cst_68 : f32 to vector<8x1xf32>
    %121 = arith.divf %119, %120 : vector<8x1xf32>
    %122 = vector.broadcast %121 : vector<8x1xf32> to vector<8x32xf32>
    %123 = arith.subf %115, %122 : vector<8x32xf32>
    %124 = arith.mulf %123, %123 : vector<8x32xf32>
    %cst_69 = arith.constant dense<0.000000e+00> : vector<8xf32>
    %125 = vector.multi_reduction <add>, %124, %cst_69 [1] : vector<8x32xf32> to vector<8xf32>
    %126 = vector.shape_cast %125 : vector<8xf32> to vector<8x1xf32>
    %cst_70 = arith.constant 3.200000e+01 : f32
    %127 = vector.broadcast %cst_70 : f32 to vector<8x1xf32>
    %128 = arith.divf %126, %127 : vector<8x1xf32>
    %cst_71 = arith.constant 9.99999974E-6 : f32
    %129 = vector.broadcast %cst_71 : f32 to vector<8x1xf32>
    %130 = arith.addf %128, %129 : vector<8x1xf32>
    %131 = math.rsqrt %130 : vector<8x1xf32>
    %132 = vector.broadcast %121 : vector<8x1xf32> to vector<8x32xf32>
    %133 = arith.subf %115, %132 : vector<8x32xf32>
    %134 = vector.broadcast %131 : vector<8x1xf32> to vector<8x32xf32>
    %135 = arith.mulf %133, %134 : vector<8x32xf32>
    %136 = vector.broadcast %116 : vector<1x32xf32> to vector<8x32xf32>
    %137 = arith.mulf %135, %136 : vector<8x32xf32>
    %138 = vector.broadcast %117 : vector<1x32xf32> to vector<8x32xf32>
    %139 = arith.addf %137, %138 : vector<8x32xf32>
    %140 = arith.truncf %139 : vector<8x32xf32> to vector<8x32xbf16>
    %c0_72 = arith.constant 0 : index
    %c0_73 = arith.constant 0 : index
    %141 = vector.load %arg12[%c0_72, %c0_73] : memref<32x64xbf16, #tpu.memory_space<vmem>>, vector<32x64xbf16>
    %cst_74 = arith.constant dense<0.000000e+00> : vector<8x64xf32>
    %142 = tpu.matmul %140, %141, %cst_74 {dimension_numbers = #tpu.dot_dimension_numbers<[1], [0], [0], [1], [0, 0, 1, 1], [], []>} : vector<8x32xbf16>, vector<32x64xbf16>, vector<8x64xf32> -> vector<8x64xf32>
    %c0_75 = arith.constant 0 : index
    %c0_76 = arith.constant 0 : index
    %143 = vector.load %arg13[%c0_75, %c0_76] : memref<1x64xf32, #tpu.memory_space<vmem>>, vector<1x64xf32>
    %144 = vector.broadcast %143 : vector<1x64xf32> to vector<8x64xf32>
    %145 = arith.addf %142, %144 : vector<8x64xf32>
    %cst_77 = arith.constant 0.000000e+00 : f32
    %146 = vector.broadcast %cst_77 : f32 to vector<8x64xf32>
    %147 = arith.maximumf %145, %146 : vector<8x64xf32>
    %148 = arith.truncf %147 : vector<8x64xf32> to vector<8x64xbf16>
    %c0_78 = arith.constant 0 : index
    %c0_79 = arith.constant 0 : index
    %149 = vector.load %arg14[%c0_78, %c0_79] : memref<64x32xbf16, #tpu.memory_space<vmem>>, vector<64x32xbf16>
    %cst_80 = arith.constant dense<0.000000e+00> : vector<8x32xf32>
    %150 = tpu.matmul %148, %149, %cst_80 {dimension_numbers = #tpu.dot_dimension_numbers<[1], [0], [0], [1], [0, 0, 1, 1], [], []>} : vector<8x64xbf16>, vector<64x32xbf16>, vector<8x32xf32> -> vector<8x32xf32>
    %c0_81 = arith.constant 0 : index
    %c0_82 = arith.constant 0 : index
    %151 = vector.load %arg15[%c0_81, %c0_82] : memref<1x32xf32, #tpu.memory_space<vmem>>, vector<1x32xf32>
    %152 = vector.broadcast %151 : vector<1x32xf32> to vector<8x32xf32>
    %153 = arith.addf %150, %152 : vector<8x32xf32>
    %154 = arith.addf %139, %153 : vector<8x32xf32>
    %c0_83 = arith.constant 0 : index
    %c0_84 = arith.constant 0 : index
    %155 = vector.load %arg16[%c0_83, %c0_84] : memref<1x32xf32, #tpu.memory_space<vmem>>, vector<1x32xf32>
    %c0_85 = arith.constant 0 : index
    %c0_86 = arith.constant 0 : index
    %156 = vector.load %arg17[%c0_85, %c0_86] : memref<1x32xf32, #tpu.memory_space<vmem>>, vector<1x32xf32>
    %cst_87 = arith.constant dense<0.000000e+00> : vector<8xf32>
    %157 = vector.multi_reduction <add>, %154, %cst_87 [1] : vector<8x32xf32> to vector<8xf32>
    %158 = vector.shape_cast %157 : vector<8xf32> to vector<8x1xf32>
    %cst_88 = arith.constant 3.200000e+01 : f32
    %159 = vector.broadcast %cst_88 : f32 to vector<8x1xf32>
    %160 = arith.divf %158, %159 : vector<8x1xf32>
    %161 = vector.broadcast %160 : vector<8x1xf32> to vector<8x32xf32>
    %162 = arith.subf %154, %161 : vector<8x32xf32>
    %163 = arith.mulf %162, %162 : vector<8x32xf32>
    %cst_89 = arith.constant dense<0.000000e+00> : vector<8xf32>
    %164 = vector.multi_reduction <add>, %163, %cst_89 [1] : vector<8x32xf32> to vector<8xf32>
    %165 = vector.shape_cast %164 : vector<8xf32> to vector<8x1xf32>
    %cst_90 = arith.constant 3.200000e+01 : f32
    %166 = vector.broadcast %cst_90 : f32 to vector<8x1xf32>
    %167 = arith.divf %165, %166 : vector<8x1xf32>
    %cst_91 = arith.constant 9.99999974E-6 : f32
    %168 = vector.broadcast %cst_91 : f32 to vector<8x1xf32>
    %169 = arith.addf %167, %168 : vector<8x1xf32>
    %170 = math.rsqrt %169 : vector<8x1xf32>
    %171 = vector.broadcast %160 : vector<8x1xf32> to vector<8x32xf32>
    %172 = arith.subf %154, %171 : vector<8x32xf32>
    %173 = vector.broadcast %170 : vector<8x1xf32> to vector<8x32xf32>
    %174 = arith.mulf %172, %173 : vector<8x32xf32>
    %175 = vector.broadcast %155 : vector<1x32xf32> to vector<8x32xf32>
    %176 = arith.mulf %174, %175 : vector<8x32xf32>
    %177 = vector.broadcast %156 : vector<1x32xf32> to vector<8x32xf32>
    %178 = arith.addf %176, %177 : vector<8x32xf32>
    %c0_92 = arith.constant 0 : index
    %c0_93 = arith.constant 0 : index
    %c0_94 = arith.constant 0 : index
    %179 = vector.load %arg18[%c0_92, %c0_93, %c0_94] : memref<1x8x32xf32, #tpu.memory_space<vmem>>, vector<1x8x32xf32>
    %180 = vector.shape_cast %179 : vector<1x8x32xf32> to vector<8x32xf32>
    %181 = vector.shape_cast %178 : vector<8x32xf32> to vector<1x8x32xf32>
    tpu.vector_store %arg18[%c0_92, %c0_93, %c0_94], %181 {strides = array<i32>} : memref<1x8x32xf32, #tpu.memory_space<vmem>>, vector<1x8x32xf32>,
    return
  }
  func.func @transform_0(%arg0: i32, %arg1: i32) -> (i32, i32, i32) {
    %c0_i32 = arith.constant 0 : i32
    %c0_i32_0 = arith.constant 0 : i32
    return %arg0, %arg1, %c0_i32 : i32, i32, i32
  }
  func.func @transform_1(%arg0: i32, %arg1: i32) -> (i32, i32, i32) {
    %c0_i32 = arith.constant 0 : i32
    %c0_i32_0 = arith.constant 0 : i32
    %c0_i32_1 = arith.constant 0 : i32
    return %arg0, %c0_i32, %c0_i32_0 : i32, i32, i32
  }
  func.func @transform_2(%arg0: i32, %arg1: i32) -> (i32, i32, i32) {
    %c0_i32 = arith.constant 0 : i32
    %c0_i32_0 = arith.constant 0 : i32
    %c0_i32_1 = arith.constant 0 : i32
    return %arg0, %c0_i32, %c0_i32_0 : i32, i32, i32
  }
  func.func @transform_3(%arg0: i32, %arg1: i32) -> (i32, i32, i32) {
    %c0_i32 = arith.constant 0 : i32
    %c0_i32_0 = arith.constant 0 : i32
    %c0_i32_1 = arith.constant 0 : i32
    return %arg0, %c0_i32, %c0_i32_0 : i32, i32, i32
  }
  func.func @transform_4(%arg0: i32, %arg1: i32) -> (i32, i32) {
    %c0_i32 = arith.constant 0 : i32
    %c0_i32_0 = arith.constant 0 : i32
    %c0_i32_1 = arith.constant 0 : i32
    return %c0_i32, %c0_i32_0 : i32, i32
  }
  func.func @transform_5(%arg0: i32, %arg1: i32) -> (i32, i32) {
    %c0_i32 = arith.constant 0 : i32
    %c0_i32_0 = arith.constant 0 : i32
    %c0_i32_1 = arith.constant 0 : i32
    return %c0_i32, %c0_i32_0 : i32, i32
  }
  func.func @transform_6(%arg0: i32, %arg1: i32) -> (i32, i32, i32) {
    %c0_i32 = arith.constant 0 : i32
    %c0_i32_0 = arith.constant 0 : i32
    %c0_i32_1 = arith.constant 0 : i32
    %c0_i32_2 = arith.constant 0 : i32
    return %c0_i32, %c0_i32_0, %c0_i32_1 : i32, i32, i32
  }
  func.func @transform_7(%arg0: i32, %arg1: i32) -> (i32, i32) {
    %c0_i32 = arith.constant 0 : i32
    %c0_i32_0 = arith.constant 0 : i32
    %c0_i32_1 = arith.constant 0 : i32
    return %c0_i32, %c0_i32_0 : i32, i32
  }
  func.func @transform_8(%arg0: i32, %arg1: i32) -> (i32, i32) {
    %c0_i32 = arith.constant 0 : i32
    %c0_i32_0 = arith.constant 0 : i32
    %c0_i32_1 = arith.constant 0 : i32
    return %c0_i32, %c0_i32_0 : i32, i32
  }
  func.func @transform_9(%arg0: i32, %arg1: i32) -> (i32, i32) {
    %c0_i32 = arith.constant 0 : i32
    %c0_i32_0 = arith.constant 0 : i32
    %c0_i32_1 = arith.constant 0 : i32
    return %c0_i32, %c0_i32_0 : i32, i32
  }
  func.func @transform_10(%arg0: i32, %arg1: i32) -> (i32, i32) {
    %c0_i32 = arith.constant 0 : i32
    %c0_i32_0 = arith.constant 0 : i32
    %c0_i32_1 = arith.constant 0 : i32
    return %c0_i32, %c0_i32_0 : i32, i32
  }
  func.func @transform_11(%arg0: i32, %arg1: i32) -> (i32, i32) {
    %c0_i32 = arith.constant 0 : i32
    %c0_i32_0 = arith.constant 0 : i32
    %c0_i32_1 = arith.constant 0 : i32
    return %c0_i32, %c0_i32_0 : i32, i32
  }
  func.func @transform_12(%arg0: i32, %arg1: i32) -> (i32, i32) {
    %c0_i32 = arith.constant 0 : i32
    %c0_i32_0 = arith.constant 0 : i32
    %c0_i32_1 = arith.constant 0 : i32
    return %c0_i32, %c0_i32_0 : i32, i32
  }
  func.func @transform_13(%arg0: i32, %arg1: i32) -> (i32, i32) {
    %c0_i32 = arith.constant 0 : i32
    %c0_i32_0 = arith.constant 0 : i32
    %c0_i32_1 = arith.constant 0 : i32
    return %c0_i32, %c0_i32_0 : i32, i32
  }
  func.func @transform_14(%arg0: i32, %arg1: i32) -> (i32, i32) {
    %c0_i32 = arith.constant 0 : i32
    %c0_i32_0 = arith.constant 0 : i32
    %c0_i32_1 = arith.constant 0 : i32
    return %c0_i32, %c0_i32_0 : i32, i32
  }
  func.func @transform_15(%arg0: i32, %arg1: i32) -> (i32, i32) {
    %c0_i32 = arith.constant 0 : i32
    %c0_i32_0 = arith.constant 0 : i32
    %c0_i32_1 = arith.constant 0 : i32
    return %c0_i32, %c0_i32_0 : i32, i32
  }
  func.func @transform_16(%arg0: i32, %arg1: i32) -> (i32, i32, i32) {
    %c0_i32 = arith.constant 0 : i32
    %c0_i32_0 = arith.constant 0 : i32
    return %arg0, %arg1, %c0_i32 : i32, i32, i32
  }
}

</mosaic_0001>

<llo_original>
// kernel: tpu_custom_call.1
$region0: #{tpu_custom_call.1}
  #allocation0 [shape = 'u32[]', space=smem, size = 0x4, offset = 0x4, fixed_abs, tag = 'smem constant byte address 0x4 - core index']
  #allocation1 [shape = 'u32[144,128]{1,0:T(1,128)}', space=vmem, size = 0x12000, scoped, tag = 'internal scratch']
  #allocation2 [shape = 'bf16[8,32]{1,0:T(8,128)(2,1)}', space=vmem, size = 0x800, scoped, tag = 'scratch operand']
  %s0 = inlined_call_operand.vmem [shape: f32[2,8,32], index: 0, kind: input, shape index: {}]
  %s1 = inlined_call_operand.hbm [shape: bf16[2,8,32], index: 1, kind: input, shape index: {}]
  %s2 = inlined_call_operand.hbm [shape: bf16[2,8,32], index: 2, kind: input, shape index: {}]
  %s3 = inlined_call_operand.vmem [shape: f32[2,1,8], index: 3, kind: input, shape index: {}]
  %s4 = inlined_call_operand.vmem [shape: bf16[32,32], index: 4, kind: input, shape index: {}]
  %s5 = inlined_call_operand.hbm [shape: f32[1,32], index: 5, kind: input, shape index: {}]
  %s6 = inlined_call_operand.vmem [shape: bf16[4,8,32], index: 6, kind: input, shape index: {}]
  %s7 = inlined_call_operand.hbm [shape: f32[1,32], index: 7, kind: input, shape index: {}]
  %s8 = inlined_call_operand.hbm [shape: f32[1,32], index: 8, kind: input, shape index: {}]
  %s9 = inlined_call_operand.hbm [shape: f32[1,32], index: 9, kind: input, shape index: {}]
  %s10 = inlined_call_operand.vmem [shape: bf16[32,64], index: 10, kind: input, shape index: {}]
  %s11 = inlined_call_operand.vmem [shape: f32[1,64], index: 11, kind: input, shape index: {}]
  %s12 = inlined_call_operand.vmem [shape: bf16[64,32], index: 12, kind: input, shape index: {}]
  %s13 = inlined_call_operand.vmem [shape: f32[1,32], index: 13, kind: input, shape index: {}]
  %s14 = inlined_call_operand.vmem [shape: f32[1,32], index: 14, kind: input, shape index: {}]
  %s15 = inlined_call_operand.vmem [shape: f32[1,32], index: 15, kind: input, shape index: {}]
  %s16 = inlined_call_operand.hbm [shape: f32[2,8,32], index: 16, kind: output, shape index: {}]
  %s17 = sld [smem:[#allocation0]]
  $region121: #{tpu_custom_call.1} parent=0
    _
  %s19 = ssub.s32 1, %s17
  %s20 = scalar_select 0, %s19, %s17
  $region1: #{tpu_custom_call.1} parent=0
    #allocation3 [shape = 'u8[4096]{0}', space=vmem, size = 0x1000, scoped, tag = 'input window, operand 1']
    #allocation4 [shape = 's32[2]{0}', space=sflag, size = 0x8, scoped, tag = 'scoped memory for tpu_custom_call.1']
    #allocation5 [shape = 's32[2]{0}', space=sflag, size = 0x8, scoped, tag = 'scoped memory for tpu_custom_call.1']
    #allocation6 [shape = 'u8[4096]{0}', space=vmem, size = 0x1000, scoped, tag = 'input window, operand 2']
    #allocation7 [shape = 's32[2]{0}', space=sflag, size = 0x8, scoped, tag = 'scoped memory for tpu_custom_call.1']
    #allocation8 [shape = 'u8[512]{0}', space=vmem, size = 0x400, scoped, tag = 'input window, operand 5, single buffered']
    #allocation9 [shape = 'u8[512]{0}', space=vmem, size = 0x400, scoped, tag = 'input window, operand 7, single buffered']
    #allocation10 [shape = 's32[1]{0}', space=sflag, size = 0x4, scoped, tag = 'scoped memory for tpu_custom_call.1']
    #allocation11 [shape = 'u8[512]{0}', space=vmem, size = 0x400, scoped, tag = 'input window, operand 8, single buffered']
    #allocation12 [shape = 'u8[512]{0}', space=vmem, size = 0x400, scoped, tag = 'input window, operand 9, single buffered']
    #allocation13 [shape = 's32[1]{0}', space=sflag, size = 0x4, scoped, tag = 'scoped memory for tpu_custom_call.1']
    #allocation14 [shape = 'u8[8192]{0}', space=vmem, size = 0x2000, scoped, tag = 'output window, operand 0']
    %21 = vsyncpa [#allocation4], 0
    %s22 = scalar_lea.sflag [#allocation4], 1
    %23 = vsyncpa %s22, 0
    %24 = vsyncpa [#allocation7], 0
    %s25 = scalar_lea.sflag [#allocation7], 1
    %26 = vsyncpa %s25, 0
    %27 = vsyncpa [#allocation10], 0
    %28 = vsyncpa [#allocation13], 0
    %29 = vsyncpa [#allocation5], 0
    %s30 = scalar_lea.sflag [#allocation5], 1
    %31 = vsyncpa %s30, 0
    loop: start=0, step=1, limit=4
    $region2: #{tpu_custom_call.1} parent=1 // loop_pre_header
      _
    $region3: #{tpu_custom_call.1} parent=1 // loop_header
      %s33 = sphi 0, %s37
      %p34 = scmp.ge.s32.totalorder %s33, 4
      %s40 = sphi 0, %s52
      %s41 = sphi 0, %s48
      %s42 = sphi 0, %s40
      %s43 = sphi 0, %s41
      %s44 = sphi 0, %s42
      %s45 = sphi 0, %s43
      %s57 = sphi 0, %s59
      %s60 = sphi 0, %s57
      %s61 = sphi 0, %s60
      %s77 = sphi 0, %s61
      %s83 = sphi 0, %s85
      %s86 = sphi 0, %s83
      %s87 = sphi 0, %s86
      %s103 = sphi 0, %s87
      %s109 = sphi 0, %s111
      %s112 = sphi 0, %s109
      %s113 = sphi 0, %s112
      %s129 = sphi 0, %s113
      %s135 = sphi 0, %s137
      %s138 = sphi 0, %s135
      %s139 = sphi 0, %s138
      %s155 = sphi 0, %s139
      %s159 = sphi 0, %s159
      %s161 = sphi 0, %s159
      %s162 = sphi 0, %s161
      %s176 = sphi 0, %s162
      %s180 = sphi 0, %s180
      %s182 = sphi 0, %s180
      %s183 = sphi 0, %s182
      %s197 = sphi 0, %s183
      %s201 = sphi 0, %s201
      %s203 = sphi 0, %s201
      %s204 = sphi 0, %s203
      %s218 = sphi 0, %s204
      %s222 = sphi 0, %s222
      %s224 = sphi 0, %s222
      %s225 = sphi 0, %s224
      %s239 = sphi 0, %s225
      %s243 = sphi 0, %s243
      %s245 = sphi 0, %s243
      %s246 = sphi 0, %s245
      %s260 = sphi 0, %s246
      %s264 = sphi 0, %s264
      %s266 = sphi 0, %s264
      %s267 = sphi 0, %s266
      %s281 = sphi 0, %s267
      %s285 = sphi 0, %s285
      %s287 = sphi 0, %s285
      %s288 = sphi 0, %s287
      %s302 = sphi 0, %s288
      %s306 = sphi 0, %s306
      %s308 = sphi 0, %s306
      %s309 = sphi 0, %s308
      %s323 = sphi 0, %s309
      %s327 = sphi 0, %s327
      %s329 = sphi 0, %s327
      %s330 = sphi 0, %s329
      %s344 = sphi 0, %s330
      %s348 = sphi 0, %s348
      %s350 = sphi 0, %s348
      %s351 = sphi 0, %s350
      %s365 = sphi 0, %s351
      %s369 = sphi 0, %s369
      %s371 = sphi 0, %s369
      %s372 = sphi 0, %s371
      %s386 = sphi 0, %s372
      %s390 = sphi 0, %s390
      %s392 = sphi 0, %s390
      %s393 = sphi 0, %s392
      %s407 = sphi 0, %s393
      %s415 = sphi 0, %s417
      %s418 = sphi 0, %s415
      %s419 = sphi 0, %s418
      %s435 = sphi 0, %s419
    $region4: #{tpu_custom_call.1} parent=1 // loop_header_branch
      %36 = sbr.rel (%p34) target = $region8
    $region5: #{tpu_custom_call.1} parent=1 // loop_body
      %s38 = ssub.s32 %s33, 1
      %s39 = ssub.s32 %s33, 2
      %s46 = sadd.s32 1, %s41
      %p47 = scmp.ge.s32.totalorder %s46, 1
      %s48 = scalar_select %p47, 0, %s46
      %s49 = sadd.s32 1, %s40
      %s50 = scalar_select %p47, %s49, %s40
      %p51 = scmp.ge.s32.totalorder %s50, 2
      %s52 = scalar_select %p51, 0, %s50
      %s53 = ssub.s32 %s40, %s52
      %s54 = ssub.s32 %s41, %s48
      %s55 = sor.u32 %s53, %s54
      %p56 = scmp.eq.s32.totalorder %s55, 0
      %s58 = sadd.s32 %s57, 1
      %s59 = scalar_select %p56, %s57, %s58
      %p62 = pneg %p56
      %p63 = scmp.eq.s32.totalorder %s33, 1
      %p64 = por %p62, %p63
      %p65 = scmp.ne.s32.totalorder %s57, %s60
      %p66 = scmp.eq.s32.totalorder %s33, 0
      %p67 = por %p65, %p66
      %p68 = scmp.ne.s32.totalorder %s57, %s60
      %p69 = scmp.eq.s32.totalorder %s38, 1
      %p70 = por %p68, %p69
      %p71 = scmp.ne.s32.totalorder %s60, %s61
      %p72 = scmp.eq.s32.totalorder %s38, 0
      %p73 = por %p71, %p72
      %p74 = scmp.ne.s32.totalorder %s60, %s61
      %p75 = scmp.eq.s32.totalorder %s39, 1
      %p76 = por %p74, %p75
      %p78 = scmp.ne.s32.totalorder %s61, %s77
      %p79 = scmp.eq.s32.totalorder %s39, 0
      %p80 = por %p78, %p79
      %s81 = ssub.s32 %s40, %s52
      %p82 = scmp.eq.s32.totalorder %s81, 0
      %s84 = sadd.s32 %s83, 1
      %s85 = scalar_select %p82, %s83, %s84
      %p88 = pneg %p82
      %p89 = scmp.eq.s32.totalorder %s33, 1
      %p90 = por %p88, %p89
      %p91 = scmp.ne.s32.totalorder %s83, %s86
      %p92 = scmp.eq.s32.totalorder %s33, 0
      %p93 = por %p91, %p92
      %p94 = scmp.ne.s32.totalorder %s83, %s86
      %p95 = scmp.eq.s32.totalorder %s38, 1
      %p96 = por %p94, %p95
      %p97 = scmp.ne.s32.totalorder %s86, %s87
      %p98 = scmp.eq.s32.totalorder %s38, 0
      %p99 = por %p97, %p98
      %p100 = scmp.ne.s32.totalorder %s86, %s87
      %p101 = scmp.eq.s32.totalorder %s39, 1
      %p102 = por %p100, %p101
      %p104 = scmp.ne.s32.totalorder %s87, %s103
      %p105 = scmp.eq.s32.totalorder %s39, 0
      %p106 = por %p104, %p105
      %s107 = ssub.s32 %s40, %s52
      %p108 = scmp.eq.s32.totalorder %s107, 0
      %s110 = sadd.s32 %s109, 1
      %s111 = scalar_select %p108, %s109, %s110
      %p114 = pneg %p108
      %p115 = scmp.eq.s32.totalorder %s33, 1
      %p116 = por %p114, %p115
      %p117 = scmp.ne.s32.totalorder %s109, %s112
      %p118 = scmp.eq.s32.totalorder %s33, 0
      %p119 = por %p117, %p118
      %p120 = scmp.ne.s32.totalorder %s109, %s112
      %p121 = scmp.eq.s32.totalorder %s38, 1
      %p122 = por %p120, %p121
      %p123 = scmp.ne.s32.totalorder %s112, %s113
      %p124 = scmp.eq.s32.totalorder %s38, 0
      %p125 = por %p123, %p124
      %p126 = scmp.ne.s32.totalorder %s112, %s113
      %p127 = scmp.eq.s32.totalorder %s39, 1
      %p128 = por %p126, %p127
      %p130 = scmp.ne.s32.totalorder %s113, %s129
      %p131 = scmp.eq.s32.totalorder %s39, 0
      %p132 = por %p130, %p131
      %s133 = ssub.s32 %s40, %s52
      %p134 = scmp.eq.s32.totalorder %s133, 0
      %s136 = sadd.s32 %s135, 1
      %s137 = scalar_select %p134, %s135, %s136
      %p140 = pneg %p134
      %p141 = scmp.eq.s32.totalorder %s33, 1
      %p142 = por %p140, %p141
      %p143 = scmp.ne.s32.totalorder %s135, %s138
      %p144 = scmp.eq.s32.totalorder %s33, 0
      %p145 = por %p143, %p144
      %p146 = scmp.ne.s32.totalorder %s135, %s138
      %p147 = scmp.eq.s32.totalorder %s38, 1
      %p148 = por %p146, %p147
      %p149 = scmp.ne.s32.totalorder %s138, %s139
      %p150 = scmp.eq.s32.totalorder %s38, 0
      %p151 = por %p149, %p150
      %p152 = scmp.ne.s32.totalorder %s138, %s139
      %p153 = scmp.eq.s32.totalorder %s39, 1
      %p154 = por %p152, %p153
      %p156 = scmp.ne.s32.totalorder %s139, %s155
      %p157 = scmp.eq.s32.totalorder %s39, 0
      %p158 = por %p156, %p157
      %s160 = sadd.s32 %s159, 1
      %p163 = scmp.eq.s32.totalorder %s33, 1
      %p164 = scmp.ne.s32.totalorder %s159, %s161
      %p165 = scmp.eq.s32.totalorder %s33, 0
      %p166 = por %p164, %p165
      %p167 = scmp.ne.s32.totalorder %s159, %s161
      %p168 = scmp.eq.s32.totalorder %s38, 1
      %p169 = por %p167, %p168
      %p170 = scmp.ne.s32.totalorder %s161, %s162
      %p171 = scmp.eq.s32.totalorder %s38, 0
      %p172 = por %p170, %p171
      %p173 = scmp.ne.s32.totalorder %s161, %s162
      %p174 = scmp.eq.s32.totalorder %s39, 1
      %p175 = por %p173, %p174
      %p177 = scmp.ne.s32.totalorder %s162, %s176
      %p178 = scmp.eq.s32.totalorder %s39, 0
      %p179 = por %p177, %p178
      %s181 = sadd.s32 %s180, 1
      %p184 = scmp.eq.s32.totalorder %s33, 1
      %p185 = scmp.ne.s32.totalorder %s180, %s182
      %p186 = scmp.eq.s32.totalorder %s33, 0
      %p187 = por %p185, %p186
      %p188 = scmp.ne.s32.totalorder %s180, %s182
      %p189 = scmp.eq.s32.totalorder %s38, 1
      %p190 = por %p188, %p189
      %p191 = scmp.ne.s32.totalorder %s182, %s183
      %p192 = scmp.eq.s32.totalorder %s38, 0
      %p193 = por %p191, %p192
      %p194 = scmp.ne.s32.totalorder %s182, %s183
      %p195 = scmp.eq.s32.totalorder %s39, 1
      %p196 = por %p194, %p195
      %p198 = scmp.ne.s32.totalorder %s183, %s197
      %p199 = scmp.eq.s32.totalorder %s39, 0
      %p200 = por %p198, %p199
      %s202 = sadd.s32 %s201, 1
      %p205 = scmp.eq.s32.totalorder %s33, 1
      %p206 = scmp.ne.s32.totalorder %s201, %s203
      %p207 = scmp.eq.s32.totalorder %s33, 0
      %p208 = por %p206, %p207
      %p209 = scmp.ne.s32.totalorder %s201, %s203
      %p210 = scmp.eq.s32.totalorder %s38, 1
      %p211 = por %p209, %p210
      %p212 = scmp.ne.s32.totalorder %s203, %s204
      %p213 = scmp.eq.s32.totalorder %s38, 0
      %p214 = por %p212, %p213
      %p215 = scmp.ne.s32.totalorder %s203, %s204
      %p216 = scmp.eq.s32.totalorder %s39, 1
      %p217 = por %p215, %p216
      %p219 = scmp.ne.s32.totalorder %s204, %s218
      %p220 = scmp.eq.s32.totalorder %s39, 0
      %p221 = por %p219, %p220
      %s223 = sadd.s32 %s222, 1
      %p226 = scmp.eq.s32.totalorder %s33, 1
      %p227 = scmp.ne.s32.totalorder %s222, %s224
      %p228 = scmp.eq.s32.totalorder %s33, 0
      %p229 = por %p227, %p228
      %p230 = scmp.ne.s32.totalorder %s222, %s224
      %p231 = scmp.eq.s32.totalorder %s38, 1
      %p232 = por %p230, %p231
      %p233 = scmp.ne.s32.totalorder %s224, %s225
      %p234 = scmp.eq.s32.totalorder %s38, 0
      %p235 = por %p233, %p234
      %p236 = scmp.ne.s32.totalorder %s224, %s225
      %p237 = scmp.eq.s32.totalorder %s39, 1
      %p238 = por %p236, %p237
      %p240 = scmp.ne.s32.totalorder %s225, %s239
      %p241 = scmp.eq.s32.totalorder %s39, 0
      %p242 = por %p240, %p241
      %s244 = sadd.s32 %s243, 1
      %p247 = scmp.eq.s32.totalorder %s33, 1
      %p248 = scmp.ne.s32.totalorder %s243, %s245
      %p249 = scmp.eq.s32.totalorder %s33, 0
      %p250 = por %p248, %p249
      %p251 = scmp.ne.s32.totalorder %s243, %s245
      %p252 = scmp.eq.s32.totalorder %s38, 1
      %p253 = por %p251, %p252
      %p254 = scmp.ne.s32.totalorder %s245, %s246
      %p255 = scmp.eq.s32.totalorder %s38, 0
      %p256 = por %p254, %p255
      %p257 = scmp.ne.s32.totalorder %s245, %s246
      %p258 = scmp.eq.s32.totalorder %s39, 1
      %p259 = por %p257, %p258
      %p261 = scmp.ne.s32.totalorder %s246, %s260
      %p262 = scmp.eq.s32.totalorder %s39, 0
      %p263 = por %p261, %p262
      %s265 = sadd.s32 %s264, 1
      %p268 = scmp.eq.s32.totalorder %s33, 1
      %p269 = scmp.ne.s32.totalorder %s264, %s266
      %p270 = scmp.eq.s32.totalorder %s33, 0
      %p271 = por %p269, %p270
      %p272 = scmp.ne.s32.totalorder %s264, %s266
      %p273 = scmp.eq.s32.totalorder %s38, 1
      %p274 = por %p272, %p273
      %p275 = scmp.ne.s32.totalorder %s266, %s267
      %p276 = scmp.eq.s32.totalorder %s38, 0
      %p277 = por %p275, %p276
      %p278 = scmp.ne.s32.totalorder %s266, %s267
      %p279 = scmp.eq.s32.totalorder %s39, 1
      %p280 = por %p278, %p279
      %p282 = scmp.ne.s32.totalorder %s267, %s281
      %p283 = scmp.eq.s32.totalorder %s39, 0
      %p284 = por %p282, %p283
      %s286 = sadd.s32 %s285, 1
      %p289 = scmp.eq.s32.totalorder %s33, 1
      %p290 = scmp.ne.s32.totalorder %s285, %s287
      %p291 = scmp.eq.s32.totalorder %s33, 0
      %p292 = por %p290, %p291
      %p293 = scmp.ne.s32.totalorder %s285, %s287
      %p294 = scmp.eq.s32.totalorder %s38, 1
      %p295 = por %p293, %p294
      %p296 = scmp.ne.s32.totalorder %s287, %s288
      %p297 = scmp.eq.s32.totalorder %s38, 0
      %p298 = por %p296, %p297
      %p299 = scmp.ne.s32.totalorder %s287, %s288
      %p300 = scmp.eq.s32.totalorder %s39, 1
      %p301 = por %p299, %p300
      %p303 = scmp.ne.s32.totalorder %s288, %s302
      %p304 = scmp.eq.s32.totalorder %s39, 0
      %p305 = por %p303, %p304
      %s307 = sadd.s32 %s306, 1
      %p310 = scmp.eq.s32.totalorder %s33, 1
      %p311 = scmp.ne.s32.totalorder %s306, %s308
      %p312 = scmp.eq.s32.totalorder %s33, 0
      %p313 = por %p311, %p312
      %p314 = scmp.ne.s32.totalorder %s306, %s308
      %p315 = scmp.eq.s32.totalorder %s38, 1
      %p316 = por %p314, %p315
      %p317 = scmp.ne.s32.totalorder %s308, %s309
      %p318 = scmp.eq.s32.totalorder %s38, 0
      %p319 = por %p317, %p318
      %p320 = scmp.ne.s32.totalorder %s308, %s309
      %p321 = scmp.eq.s32.totalorder %s39, 1
      %p322 = por %p320, %p321
      %p324 = scmp.ne.s32.totalorder %s309, %s323
      %p325 = scmp.eq.s32.totalorder %s39, 0
      %p326 = por %p324, %p325
      %s328 = sadd.s32 %s327, 1
      %p331 = scmp.eq.s32.totalorder %s33, 1
      %p332 = scmp.ne.s32.totalorder %s327, %s329
      %p333 = scmp.eq.s32.totalorder %s33, 0
      %p334 = por %p332, %p333
      %p335 = scmp.ne.s32.totalorder %s327, %s329
      %p336 = scmp.eq.s32.totalorder %s38, 1
      %p337 = por %p335, %p336
      %p338 = scmp.ne.s32.totalorder %s329, %s330
      %p339 = scmp.eq.s32.totalorder %s38, 0
      %p340 = por %p338, %p339
      %p341 = scmp.ne.s32.totalorder %s329, %s330
      %p342 = scmp.eq.s32.totalorder %s39, 1
      %p343 = por %p341, %p342
      %p345 = scmp.ne.s32.totalorder %s330, %s344
      %p346 = scmp.eq.s32.totalorder %s39, 0
      %p347 = por %p345, %p346
      %s349 = sadd.s32 %s348, 1
      %p352 = scmp.eq.s32.totalorder %s33, 1
      %p353 = scmp.ne.s32.totalorder %s348, %s350
      %p354 = scmp.eq.s32.totalorder %s33, 0
      %p355 = por %p353, %p354
      %p356 = scmp.ne.s32.totalorder %s348, %s350
      %p357 = scmp.eq.s32.totalorder %s38, 1
      %p358 = por %p356, %p357
      %p359 = scmp.ne.s32.totalorder %s350, %s351
      %p360 = scmp.eq.s32.totalorder %s38, 0
      %p361 = por %p359, %p360
      %p362 = scmp.ne.s32.totalorder %s350, %s351
      %p363 = scmp.eq.s32.totalorder %s39, 1
      %p364 = por %p362, %p363
      %p366 = scmp.ne.s32.totalorder %s351, %s365
      %p367 = scmp.eq.s32.totalorder %s39, 0
      %p368 = por %p366, %p367
      %s370 = sadd.s32 %s369, 1
      %p373 = scmp.eq.s32.totalorder %s33, 1
      %p374 = scmp.ne.s32.totalorder %s369, %s371
      %p375 = scmp.eq.s32.totalorder %s33, 0
      %p376 = por %p374, %p375
      %p377 = scmp.ne.s32.totalorder %s369, %s371
      %p378 = scmp.eq.s32.totalorder %s38, 1
      %p379 = por %p377, %p378
      %p380 = scmp.ne.s32.totalorder %s371, %s372
      %p381 = scmp.eq.s32.totalorder %s38, 0
      %p382 = por %p380, %p381
      %p383 = scmp.ne.s32.totalorder %s371, %s372
      %p384 = scmp.eq.s32.totalorder %s39, 1
      %p385 = por %p383, %p384
      %p387 = scmp.ne.s32.totalorder %s372, %s386
      %p388 = scmp.eq.s32.totalorder %s39, 0
      %p389 = por %p387, %p388
      %s391 = sadd.s32 %s390, 1
      %p394 = scmp.eq.s32.totalorder %s33, 1
      %p395 = scmp.ne.s32.totalorder %s390, %s392
      %p396 = scmp.eq.s32.totalorder %s33, 0
      %p397 = por %p395, %p396
      %p398 = scmp.ne.s32.totalorder %s390, %s392
      %p399 = scmp.eq.s32.totalorder %s38, 1
      %p400 = por %p398, %p399
      %p401 = scmp.ne.s32.totalorder %s392, %s393
      %p402 = scmp.eq.s32.totalorder %s38, 0
      %p403 = por %p401, %p402
      %p404 = scmp.ne.s32.totalorder %s392, %s393
      %p405 = scmp.eq.s32.totalorder %s39, 1
      %p406 = por %p404, %p405
      %p408 = scmp.ne.s32.totalorder %s393, %s407
      %p409 = scmp.eq.s32.totalorder %s39, 0
      %p410 = por %p408, %p409
      %s411 = ssub.s32 %s40, %s52
      %s412 = ssub.s32 %s41, %s48
      %s413 = sor.u32 %s411, %s412
      %p414 = scmp.eq.s32.totalorder %s413, 0
      %s416 = sadd.s32 %s415, 1
      %s417 = scalar_select %p414, %s415, %s416
      %p420 = pneg %p414
      %p421 = scmp.eq.s32.totalorder %s33, 1
      %p422 = por %p420, %p421
      %p423 = scmp.ne.s32.totalorder %s415, %s418
      %p424 = scmp.eq.s32.totalorder %s33, 0
      %p425 = por %p423, %p424
      %p426 = scmp.ne.s32.totalorder %s415, %s418
      %p427 = scmp.eq.s32.totalorder %s38, 1
      %p428 = por %p426, %p427
      %p429 = scmp.ne.s32.totalorder %s418, %s419
      %p430 = scmp.eq.s32.totalorder %s38, 0
      %p431 = por %p429, %p430
      %p432 = scmp.ne.s32.totalorder %s418, %s419
      %p433 = scmp.eq.s32.totalorder %s39, 1
      %p434 = por %p432, %p433
      %p436 = scmp.ne.s32.totalorder %s419, %s435
      %p437 = scmp.eq.s32.totalorder %s39, 0
      %p438 = por %p436, %p437
      %p439 = scmp.le.s32.totalorder 1, %s33
      %p440 = scmp.lt.s32.totalorder %s33, 3
      %p441 = pnand %p439, %p440
      %p442 = pneg %p441
      // Predicated region
      $region9: #{tpu_custom_call.1} parent=5 // pred_check
        _
      $region10: #{tpu_custom_call.1} parent=5 // pred_check_branch
        %444 = sbr.rel (%p441) target = $region12
      $region11: #{tpu_custom_call.1} parent=5 // pred_region
        %s445 = ssub.s32 %s33, 1
        // Predicated region
        $region13: #{tpu_custom_call.1} parent=11 // pred_check
          %p446 = pneg %p172
        $region14: #{tpu_custom_call.1} parent=11 // pred_check_branch
          %448 = sbr.rel (%p446) target = $region16
        $region15: #{tpu_custom_call.1} parent=11 // pred_region
          _
        $region16: #{tpu_custom_call.1} parent=11 // pred_fallthru
          _
        // Predicated region
        $region17: #{tpu_custom_call.1} parent=11 // pred_check
          %p449 = pneg %p193
        $region18: #{tpu_custom_call.1} parent=11 // pred_check_branch
          %451 = sbr.rel (%p449) target = $region20
        $region19: #{tpu_custom_call.1} parent=11 // pred_region
          %s453 = ssub.s32 16, 16
          %454 = vsyncadd [#allocation7], %s453
          %s456 = sshll.u32 [#allocation8], 4
          %s457 = int_to_ptr.vmem [resolvable:$true] %s456
          %459 = dma.hbm_to_vmem [thread:$0]  %s5, 16, %s457, [#allocation7]
        $region20: #{tpu_custom_call.1} parent=11 // pred_fallthru
          _
        // Predicated region
        $region21: #{tpu_custom_call.1} parent=11 // pred_check
          %p460 = pneg %p214
        $region22: #{tpu_custom_call.1} parent=11 // pred_check_branch
          %462 = sbr.rel (%p460) target = $region24
        $region23: #{tpu_custom_call.1} parent=11 // pred_region
          _
        $region24: #{tpu_custom_call.1} parent=11 // pred_fallthru
          _
        // Predicated region
        $region25: #{tpu_custom_call.1} parent=11 // pred_check
          %p463 = pneg %p235
        $region26: #{tpu_custom_call.1} parent=11 // pred_check_branch
          %465 = sbr.rel (%p463) target = $region28
        $region27: #{tpu_custom_call.1} parent=11 // pred_region
          %s467 = ssub.s32 16, 16
          %468 = vsyncadd [#allocation10], %s467
          %s470 = sshll.u32 [#allocation9], 4
          %s471 = int_to_ptr.vmem [resolvable:$true] %s470
          %473 = dma.hbm_to_vmem [thread:$0]  %s7, 16, %s471, [#allocation10]
        $region28: #{tpu_custom_call.1} parent=11 // pred_fallthru
          _
        // Predicated region
        $region29: #{tpu_custom_call.1} parent=11 // pred_check
          %p474 = pneg %p256
        $region30: #{tpu_custom_call.1} parent=11 // pred_check_branch
          %476 = sbr.rel (%p474) target = $region32
        $region31: #{tpu_custom_call.1} parent=11 // pred_region
          %s478 = ssub.s32 16, 16
          %479 = vsyncadd [#allocation10], %s478
          %s481 = sshll.u32 [#allocation11], 4
          %s482 = int_to_ptr.vmem [resolvable:$true] %s481
          %484 = dma.hbm_to_vmem [thread:$0]  %s8, 16, %s482, [#allocation10]
        $region32: #{tpu_custom_call.1} parent=11 // pred_fallthru
          _
        // Predicated region
        $region33: #{tpu_custom_call.1} parent=11 // pred_check
          %p485 = pneg %p277
        $region34: #{tpu_custom_call.1} parent=11 // pred_check_branch
          %487 = sbr.rel (%p485) target = $region36
        $region35: #{tpu_custom_call.1} parent=11 // pred_region
          %s489 = ssub.s32 16, 16
          %490 = vsyncadd [#allocation13], %s489
          %s492 = sshll.u32 [#allocation12], 4
          %s493 = int_to_ptr.vmem [resolvable:$true] %s492
          %495 = dma.hbm_to_vmem [thread:$0]  %s9, 16, %s493, [#allocation13]
        $region36: #{tpu_custom_call.1} parent=11 // pred_fallthru
          _
        // Predicated region
        $region37: #{tpu_custom_call.1} parent=11 // pred_check
          %p496 = pneg %p298
        $region38: #{tpu_custom_call.1} parent=11 // pred_check_branch
          %498 = sbr.rel (%p496) target = $region40
        $region39: #{tpu_custom_call.1} parent=11 // pred_region
          _
        $region40: #{tpu_custom_call.1} parent=11 // pred_fallthru
          _
        // Predicated region
        $region41: #{tpu_custom_call.1} parent=11 // pred_check
          %p499 = pneg %p319
        $region42: #{tpu_custom_call.1} parent=11 // pred_check_branch
          %501 = sbr.rel (%p499) target = $region44
        $region43: #{tpu_custom_call.1} parent=11 // pred_region
          _
        $region44: #{tpu_custom_call.1} parent=11 // pred_fallthru
          _
        // Predicated region
        $region45: #{tpu_custom_call.1} parent=11 // pred_check
          %p502 = pneg %p340
        $region46: #{tpu_custom_call.1} parent=11 // pred_check_branch
          %504 = sbr.rel (%p502) target = $region48
        $region47: #{tpu_custom_call.1} parent=11 // pred_region
          _
        $region48: #{tpu_custom_call.1} parent=11 // pred_fallthru
          _
        // Predicated region
        $region49: #{tpu_custom_call.1} parent=11 // pred_check
          %p505 = pneg %p361
        $region50: #{tpu_custom_call.1} parent=11 // pred_check_branch
          %507 = sbr.rel (%p505) target = $region52
        $region51: #{tpu_custom_call.1} parent=11 // pred_region
          _
        $region52: #{tpu_custom_call.1} parent=11 // pred_fallthru
          _
        // Predicated region
        $region53: #{tpu_custom_call.1} parent=11 // pred_check
          %p508 = pneg %p382
        $region54: #{tpu_custom_call.1} parent=11 // pred_check_branch
          %510 = sbr.rel (%p508) target = $region56
        $region55: #{tpu_custom_call.1} parent=11 // pred_region
          _
        $region56: #{tpu_custom_call.1} parent=11 // pred_fallthru
          _
        // Predicated region
        $region57: #{tpu_custom_call.1} parent=11 // pred_check
          %p511 = pneg %p403
        $region58: #{tpu_custom_call.1} parent=11 // pred_check_branch
          %513 = sbr.rel (%p511) target = $region60
        $region59: #{tpu_custom_call.1} parent=11 // pred_region
          _
        $region60: #{tpu_custom_call.1} parent=11 // pred_fallthru
          _
      $region12: #{tpu_custom_call.1} parent=5 // pred_fallthru
        _
      %p514 = scmp.lt.s32.totalorder %s33, 2
      // Predicated region
      $region61: #{tpu_custom_call.1} parent=5 // pred_check
        %p515 = pneg %p514
      $region62: #{tpu_custom_call.1} parent=5 // pred_check_branch
        %517 = sbr.rel (%p515) target = $region64
      $region63: #{tpu_custom_call.1} parent=5 // pred_region
        // Predicated region
        $region65: #{tpu_custom_call.1} parent=63 // pred_check
          %p518 = pneg %p67
        $region66: #{tpu_custom_call.1} parent=63 // pred_check_branch
          %520 = sbr.rel (%p518) target = $region68
        $region67: #{tpu_custom_call.1} parent=63 // pred_region
          %p521 = scmp.lt.s32.totalorder %s40, 1
          %s522 = scalar_select %p521, %s40, 1
          %p523 = scmp.lt.s32.totalorder %s41, 0
          %s524 = scalar_select %p523, %s41, 0
          %s525 = sadd.s32 %s524, %s522
          %s526 = smul.addr %s525, 8
          %s527 = scalar_lea.vmem %s0, %s526
        $region68: #{tpu_custom_call.1} parent=63 // pred_fallthru
          _
        // Predicated region
        $region69: #{tpu_custom_call.1} parent=63 // pred_check
          %p528 = pneg %p93
        $region70: #{tpu_custom_call.1} parent=63 // pred_check_branch
          %530 = sbr.rel (%p528) target = $region72
        $region71: #{tpu_custom_call.1} parent=63 // pred_region
          %s531 = sand.u32 %s83, 1
          %s532 = scalar_lea.sflag [#allocation4], %s531
          %s533 = sand.u32 %s83, 1
          %s534 = smul.addr %s533, 4
          %s535 = scalar_lea.vmem [#allocation3], %s534
          %s537 = ssub.s32 64, 64
          %538 = vsyncadd %s532, %s537
          %s539 = smul.addr %s40, 64
          %s540 = scalar_lea.hbm %s1, %s539
          %s542 = sshll.u32 %s535, 4
          %s543 = int_to_ptr.vmem [resolvable:$true] %s542
          %545 = dma.hbm_to_vmem [thread:$0]  %s540, 64, %s543, %s532
        $region72: #{tpu_custom_call.1} parent=63 // pred_fallthru
          _
        // Predicated region
        $region73: #{tpu_custom_call.1} parent=63 // pred_check
          %p546 = pneg %p119
        $region74: #{tpu_custom_call.1} parent=63 // pred_check_branch
          %548 = sbr.rel (%p546) target = $region76
        $region75: #{tpu_custom_call.1} parent=63 // pred_region
          %s549 = sand.u32 %s33, 1
          %s550 = scalar_lea.sflag [#allocation7], %s549
          %s551 = sand.u32 %s109, 1
          %s552 = smul.addr %s551, 4
          %s553 = scalar_lea.vmem [#allocation6], %s552
          %s555 = ssub.s32 64, 64
          %556 = vsyncadd %s550, %s555
          %s557 = smul.addr %s40, 64
          %s558 = scalar_lea.hbm %s2, %s557
          %s560 = sshll.u32 %s553, 4
          %s561 = int_to_ptr.vmem [resolvable:$true] %s560
          %563 = dma.hbm_to_vmem [thread:$0]  %s558, 64, %s561, %s550
        $region76: #{tpu_custom_call.1} parent=63 // pred_fallthru
          _
        // Predicated region
        $region77: #{tpu_custom_call.1} parent=63 // pred_check
          %p564 = pneg %p145
        $region78: #{tpu_custom_call.1} parent=63 // pred_check_branch
          %566 = sbr.rel (%p564) target = $region80
        $region79: #{tpu_custom_call.1} parent=63 // pred_region
          %p567 = scmp.lt.s32.totalorder %s40, 1
          %s568 = scalar_select %p567, %s40, 1
          %s569 = scalar_lea.vmem %s3, %s568
        $region80: #{tpu_custom_call.1} parent=63 // pred_fallthru
          _
      $region64: #{tpu_custom_call.1} parent=5 // pred_fallthru
        _
      %p570 = scmp.le.s32.totalorder 1, %s33
      %p571 = scmp.lt.s32.totalorder %s33, 3
      %p572 = pnand %p570, %p571
      %p573 = pneg %p572
      // Predicated region
      $region81: #{tpu_custom_call.1} parent=5 // pred_check
        _
      $region82: #{tpu_custom_call.1} parent=5 // pred_check_branch
        %575 = sbr.rel (%p572) target = $region84
      $region83: #{tpu_custom_call.1} parent=5 // pred_region
        %s576 = ssub.s32 %s33, 1
        %s577 = sand.u32 %s86, 1
        %s578 = scalar_lea.sflag [#allocation4], %s577
        %s579 = sand.u32 %s86, 1
        %s580 = smul.addr %s579, 4
        %s581 = scalar_lea.vmem [#allocation3], %s580
        // Predicated region
        $region85: #{tpu_custom_call.1} parent=83 // pred_check
          %p582 = pneg %p99
        $region86: #{tpu_custom_call.1} parent=83 // pred_check_branch
          %584 = sbr.rel (%p582) target = $region88
        $region87: #{tpu_custom_call.1} parent=83 // pred_region
          %585 = dma.done %s578, 64
        $region88: #{tpu_custom_call.1} parent=83 // pred_fallthru
          _
        %s586 = sand.u32 %s38, 1
        %s587 = scalar_lea.sflag [#allocation7], %s586
        %s588 = sand.u32 %s112, 1
        %s589 = smul.addr %s588, 4
        %s590 = scalar_lea.vmem [#allocation6], %s589
        // Predicated region
        $region89: #{tpu_custom_call.1} parent=83 // pred_check
          %p591 = pneg %p125
        $region90: #{tpu_custom_call.1} parent=83 // pred_check_branch
          %593 = sbr.rel (%p591) target = $region92
        $region91: #{tpu_custom_call.1} parent=83 // pred_region
          %594 = dma.done %s587, 64
        $region92: #{tpu_custom_call.1} parent=83 // pred_fallthru
          _
        // Predicated region
        $region93: #{tpu_custom_call.1} parent=83 // pred_check
          %p595 = pneg %p193
        $region94: #{tpu_custom_call.1} parent=83 // pred_check_branch
          %597 = sbr.rel (%p595) target = $region96
        $region95: #{tpu_custom_call.1} parent=83 // pred_region
          %598 = dma.done [#allocation7], 16
        $region96: #{tpu_custom_call.1} parent=83 // pred_fallthru
          _
        // Predicated region
        $region97: #{tpu_custom_call.1} parent=83 // pred_check
          %p599 = pneg %p235
        $region98: #{tpu_custom_call.1} parent=83 // pred_check_branch
          %601 = sbr.rel (%p599) target = $region100
        $region99: #{tpu_custom_call.1} parent=83 // pred_region
          %602 = dma.done [#allocation10], 16
        $region100: #{tpu_custom_call.1} parent=83 // pred_fallthru
          _
        // Predicated region
        $region101: #{tpu_custom_call.1} parent=83 // pred_check
          %p603 = pneg %p256
        $region102: #{tpu_custom_call.1} parent=83 // pred_check_branch
          %605 = sbr.rel (%p603) target = $region104
        $region103: #{tpu_custom_call.1} parent=83 // pred_region
          %606 = dma.done [#allocation10], 16
        $region104: #{tpu_custom_call.1} parent=83 // pred_fallthru
          _
        // Predicated region
        $region105: #{tpu_custom_call.1} parent=83 // pred_check
          %p607 = pneg %p277
        $region106: #{tpu_custom_call.1} parent=83 // pred_check_branch
          %609 = sbr.rel (%p607) target = $region108
        $region107: #{tpu_custom_call.1} parent=83 // pred_region
          %610 = dma.done [#allocation13], 16
        $region108: #{tpu_custom_call.1} parent=83 // pred_fallthru
          _
        %p611 = scmp.lt.s32.totalorder %s42, 1
        %s612 = scalar_select %p611, %s42, 1
        %p613 = scmp.lt.s32.totalorder %s43, 0
        %s614 = scalar_select %p613, %s43, 0
        %s615 = sadd.s32 %s614, %s612
        %s616 = smul.addr %s615, 8
        %s617 = scalar_lea.vmem %s0, %s616
        %p618 = pneg %p73
        %p619 = pneg %p70
        %s620 = sand.u32 %s86, 1
        %s621 = scalar_lea.sflag [#allocation4], %s620
        %s622 = sand.u32 %s86, 1
        %s623 = smul.addr %s622, 4
        %s624 = scalar_lea.vmem [#allocation3], %s623
        %p625 = pneg %p99
        %p626 = pneg %p96
        %s627 = sand.u32 %s38, 1
        %s628 = scalar_lea.sflag [#allocation7], %s627
        %s629 = sand.u32 %s112, 1
        %s630 = smul.addr %s629, 4
        %s631 = scalar_lea.vmem [#allocation6], %s630
        %p632 = pneg %p125
        %p633 = pneg %p122
        %p634 = scmp.lt.s32.totalorder %s42, 1
        %s635 = scalar_select %p634, %s42, 1
        %s636 = scalar_lea.vmem %s3, %s635
        %p637 = pneg %p151
        %p638 = pneg %p148
        %p639 = pneg %p172
        %p640 = pneg %p169
        %p641 = pneg %p193
        %p642 = pneg %p190
        %p643 = pneg %p214
        %p644 = pneg %p211
        %p645 = pneg %p235
        %p646 = pneg %p232
        %p647 = pneg %p256
        %p648 = pneg %p253
        %p649 = pneg %p277
        %p650 = pneg %p274
        %p651 = pneg %p298
        %p652 = pneg %p295
        %p653 = pneg %p319
        %p654 = pneg %p316
        %p655 = pneg %p340
        %p656 = pneg %p337
        %p657 = pneg %p361
        %p658 = pneg %p358
        %p659 = pneg %p382
        %p660 = pneg %p379
        %p661 = pneg %p403
        %p662 = pneg %p400
        %p663 = pneg %p431
        %p664 = pneg %p428
        %s665 = sand.u32 %s418, 1
        %s666 = scalar_lea.sflag [#allocation5], %s665
        %s667 = sand.u32 %s418, 1
        %s668 = smul.addr %s667, 8
        %s669 = scalar_lea.vmem [#allocation14], %s668
        %p670 = scmp.lt.s32.totalorder %s42, 1
        %s671 = scalar_select %p670, %s42, 1
        %p672 = scmp.lt.s32.totalorder %s43, 0
        %s673 = scalar_select %p672, %s43, 0
        %s674 = sadd.s32 %s673, %s671
        %s675 = smul.addr %s674, 8
        %s676 = scalar_lea.vmem %s0, %s675
        %p677 = scmp.lt.s32.totalorder %s42, 1
        %s678 = scalar_select %p677, %s42, 1
        %s679 = scalar_lea.vmem %s3, %s678
        %v681 = vld [vmem:[%s676] sm:$0xff]
        %v682 = vpack.c.bf16 %v681, %v681
        %v683 = vld [vmem:[%s4] sm:$0xf]
        %v684 = vld [vmem:[%s4 + $0x4] sm:$0xf]
        %v685 = vld [vmem:[%s4 + $0x8] sm:$0xf]
        %v686 = vld [vmem:[%s4 + $0xc] sm:$0xf]
        %v687 = vld [vmem:[#allocation8] sm:$0x1]
        %v689 = vlaneseq
        %v690 = vshrl.u32 %v689, 7
        %v691 = vsub.s32 0, %v690
        %v692 = vrot.slane %v687, %v691
        %v698 = vunpack.c.l.b16 %v683
        %v699 = vunpack.c.l.b16 %v684
        %v700 = vunpack.c.l.b16 %v685
        %v701 = vunpack.c.l.b16 %v686
        %v702 = vpack.c.b16 %v699, %v698
        %v703 = vpack.c.b16 %v701, %v700
        %vm706 = vcmask 261120
        %v708 = vsel %vm706, %v682, 0
        %710 = vmatprep.subr.bf16.mxu0 0
        %711 = vmatpush1.bf16.msra.mxu0 %v702
        %712 = vmatprep.subr.bf16.mxu0 0
        %713 = vmatpush1.bf16.msra.mxu0 %v703
        %714 = vmatprep.subr.bf16.mxu0 0
        %715 = vmatpush1.bf16.msra.mxu0 0
        %716 = vmatprep.subr.bf16.mxu0 0
        %717 = vmatpush1.bf16.msra.mxu0 0
        %718 = vmatprep.subr.bf16.mxu0 0
        %719 = vmatpush1.bf16.msra.mxu0 0
        %720 = vmatprep.subr.bf16.mxu0 0
        %721 = vmatpush1.bf16.msra.mxu0 0
        %722 = vmatprep.subr.bf16.mxu0 0
        %723 = vmatpush1.bf16.msra.mxu0 0
        %724 = vmatprep.subr.bf16.mxu0 0
        %725 = vmatpush1.bf16.msra.mxu0 0
        %726 = vmatprep.subr.bf16.mxu0 0
        %727 = vmatpush1.bf16.msra.mxu0 0
        %728 = vmatprep.subr.bf16.mxu0 0
        %729 = vmatpush1.bf16.msra.mxu0 0
        %730 = vmatprep.subr.bf16.mxu0 0
        %731 = vmatpush1.bf16.msra.mxu0 0
        %732 = vmatprep.subr.bf16.mxu0 0
        %733 = vmatpush1.bf16.msra.mxu0 0
        %734 = vmatprep.subr.bf16.mxu0 0
        %735 = vmatpush1.bf16.msra.mxu0 0
        %736 = vmatprep.subr.bf16.mxu0 0
        %737 = vmatpush1.bf16.msra.mxu0 0
        %738 = vmatprep.subr.bf16.mxu0 0
        %739 = vmatpush1.bf16.msra.mxu0 0
        %740 = vmatprep.subr.bf16.mxu0 0
        %741 = vmatpush1.bf16.msra.mxu0 0
        %742 = vmatprep.mubr.bf16.mxu0 0
        %743 = vmatmul.mubr.bf16.gmra.mrb[0].mxu0 %v708
        %v744 = vpop.f32.mrb[0].mxu0
        %v745 = vadd.f32 %v692, %v744
        %v746 = vpop.f32.mrb[0].mxu0
        %v747 = vpop.f32.mrb[0].mxu0
        %v748 = vpop.f32.mrb[0].mxu0
        %749 = vdwg.mxu0
        %v750 = vmul.f32 %v745, 0.35355338
        %v751 = vpack.c.bf16 %v750, %v750
        %v752 = vld [vmem:[%s679] sm:$0x1]
        %v754 = vlaneseq
        %v755 = vshrl.u32 %v754, 7
        %v756 = vsub.s32 0, %v755
        %v757 = vrot.slane %v752, %v756
        %v759 = vld [vmem:[%s581] sm:$0xf]
        %v760 = vld [vmem:[%s590] sm:$0xf]
        %vm761 = vcmask 64512
        %v763 = vsel %vm761, %v751, 0
        %v766 = vsel %vm761, %v759, 0
        %768 = vmatprep.subr.bf16.mxu0 0
        %769 = vmatpush1.bf16.xpose.msra.mxu0 %v766
        %770 = vmatprep.subr.bf16.mxu0 0
        %771 = vmatpush1.bf16.xpose.msra.mxu0 0
        %772 = vmatprep.subr.bf16.mxu0 0
        %773 = vmatpush1.bf16.xpose.msra.mxu0 0
        %774 = vmatprep.subr.bf16.mxu0 0
        %775 = vmatpush1.bf16.xpose.msra.mxu0 0
        %776 = vmatprep.subr.bf16.mxu0 0
        %777 = vmatpush1.bf16.xpose.msra.mxu0 0
        %778 = vmatprep.subr.bf16.mxu0 0
        %779 = vmatpush1.bf16.xpose.msra.mxu0 0
        %780 = vmatprep.subr.bf16.mxu0 0
        %781 = vmatpush1.bf16.xpose.msra.mxu0 0
        %782 = vmatprep.subr.bf16.mxu0 0
        %783 = vmatpush1.bf16.xpose.msra.mxu0 0
        %784 = vmatprep.subr.bf16.mxu0 0
        %785 = vmatpush1.bf16.xpose.msra.mxu0 0
        %786 = vmatprep.subr.bf16.mxu0 0
        %787 = vmatpush1.bf16.xpose.msra.mxu0 0
        %788 = vmatprep.subr.bf16.mxu0 0
        %789 = vmatpush1.bf16.xpose.msra.mxu0 0
        %790 = vmatprep.subr.bf16.mxu0 0
        %791 = vmatpush1.bf16.xpose.msra.mxu0 0
        %792 = vmatprep.subr.bf16.mxu0 0
        %793 = vmatpush1.bf16.xpose.msra.mxu0 0
        %794 = vmatprep.subr.bf16.mxu0 0
        %795 = vmatpush1.bf16.xpose.msra.mxu0 0
        %796 = vmatprep.subr.bf16.mxu0 0
        %797 = vmatpush1.bf16.xpose.msra.mxu0 0
        %798 = vmatprep.subr.bf16.mxu0 0
        %799 = vmatpush1.bf16.xpose.msra.mxu0 0
        %800 = vmatprep.mubr.bf16.mxu0 0
        %801 = vmatmul.mubr.bf16.gmra.mrb[0].mxu0 %v763
        %v802 = vpop.f32.mrb[0].mxu0
        %v803 = vadd.f32 %v757, %v802
        %v804 = vpop.f32.mrb[0].mxu0
        %v805 = vpop.f32.mrb[0].mxu0
        %v806 = vpop.f32.mrb[0].mxu0
        %807 = vdwg.mxu0
        %v808 = vsel %vm761, %v803, -inf
        %809 = vmax.xlane.f32.xlu0 %v808
        %v810 = vpop.xlane.xlu0 %809
        %v811 = vsub.f32 %v803, %v810
        %v812 = vmul.f32 %v811, 1.442695
        %v813 = vpow.pop %v812
        %v814 = vsel %vm761, %v813, 0.0
        %815 = vadd.xlane.f32.xlu0 %v814
        %v816 = vpop.xlane.xlu0 %815
        %v817 = vrcp.pop %v816
        %v818 = vmul.f32 %v813, %v817
        %v819 = vpack.c.bf16 %v818, %v818
        %v821 = vsel %vm761, %v819, 0
        %vm823 = vcmask 1043456
        %v825 = vsel %vm823, %v760, 0
        %827 = vmatprep.subr.bf16.mxu0 0
        %828 = vmatpush1.bf16.msra.mxu0 %v825
        %829 = vmatprep.subr.bf16.mxu0 0
        %830 = vmatpush1.bf16.msra.mxu0 0
        %831 = vmatprep.subr.bf16.mxu0 0
        %832 = vmatpush1.bf16.msra.mxu0 0
        %833 = vmatprep.subr.bf16.mxu0 0
        %834 = vmatpush1.bf16.msra.mxu0 0
        %835 = vmatprep.subr.bf16.mxu0 0
        %836 = vmatpush1.bf16.msra.mxu0 0
        %837 = vmatprep.subr.bf16.mxu0 0
        %838 = vmatpush1.bf16.msra.mxu0 0
        %839 = vmatprep.subr.bf16.mxu0 0
        %840 = vmatpush1.bf16.msra.mxu0 0
        %841 = vmatprep.subr.bf16.mxu0 0
        %842 = vmatpush1.bf16.msra.mxu0 0
        %843 = vmatprep.subr.bf16.mxu0 0
        %844 = vmatpush1.bf16.msra.mxu0 0
        %845 = vmatprep.subr.bf16.mxu0 0
        %846 = vmatpush1.bf16.msra.mxu0 0
        %847 = vmatprep.subr.bf16.mxu0 0
        %848 = vmatpush1.bf16.msra.mxu0 0
        %849 = vmatprep.subr.bf16.mxu0 0
        %850 = vmatpush1.bf16.msra.mxu0 0
        %851 = vmatprep.subr.bf16.mxu0 0
        %852 = vmatpush1.bf16.msra.mxu0 0
        %853 = vmatprep.subr.bf16.mxu0 0
        %854 = vmatpush1.bf16.msra.mxu0 0
        %855 = vmatprep.subr.bf16.mxu0 0
        %856 = vmatpush1.bf16.msra.mxu0 0
        %857 = vmatprep.subr.bf16.mxu0 0
        %858 = vmatpush1.bf16.msra.mxu0 0
        %859 = vmatprep.mubr.bf16.mxu0 0
        %860 = vmatmul.mubr.bf16.gmra.mrb[0].mxu0 %v821
        %v861 = vpop.f32.mrb[0].mxu0
        %v862 = vadd.f32 0.0, %v861
        %v863 = vpop.f32.mrb[0].mxu0
        %v864 = vpop.f32.mrb[0].mxu0
        %v865 = vpop.f32.mrb[0].mxu0
        %866 = vdwg.mxu0
        %v867 = vpack.c.bf16 %v862, %v862
        %v868 = vld [vmem:[%s6] sm:$0xf]
        %870 = vrot.lane.b32.xlu0 %v751, 120
        %v871 = vpop.permute.xlu0 %870
        %v873 = vunpack.c.l.b16 %v759
        %v874 = vpack.c.b16 %v873, %v873
        %875 = vrot.lane.b32.xlu0 %v874, 120
        %v876 = vpop.permute.xlu0 %875
        %v878 = vsel %vm761, %v871, 0
        %v881 = vsel %vm761, %v876, 0
        %883 = vmatprep.subr.bf16.mxu0 0
        %884 = vmatpush1.bf16.xpose.msra.mxu0 %v881
        %885 = vmatprep.subr.bf16.mxu0 0
        %886 = vmatpush1.bf16.xpose.msra.mxu0 0
        %887 = vmatprep.subr.bf16.mxu0 0
        %888 = vmatpush1.bf16.xpose.msra.mxu0 0
        %889 = vmatprep.subr.bf16.mxu0 0
        %890 = vmatpush1.bf16.xpose.msra.mxu0 0
        %891 = vmatprep.subr.bf16.mxu0 0
        %892 = vmatpush1.bf16.xpose.msra.mxu0 0
        %893 = vmatprep.subr.bf16.mxu0 0
        %894 = vmatpush1.bf16.xpose.msra.mxu0 0
        %895 = vmatprep.subr.bf16.mxu0 0
        %896 = vmatpush1.bf16.xpose.msra.mxu0 0
        %897 = vmatprep.subr.bf16.mxu0 0
        %898 = vmatpush1.bf16.xpose.msra.mxu0 0
        %899 = vmatprep.subr.bf16.mxu0 0
        %900 = vmatpush1.bf16.xpose.msra.mxu0 0
        %901 = vmatprep.subr.bf16.mxu0 0
        %902 = vmatpush1.bf16.xpose.msra.mxu0 0
        %903 = vmatprep.subr.bf16.mxu0 0
        %904 = vmatpush1.bf16.xpose.msra.mxu0 0
        %905 = vmatprep.subr.bf16.mxu0 0
        %906 = vmatpush1.bf16.xpose.msra.mxu0 0
        %907 = vmatprep.subr.bf16.mxu0 0
        %908 = vmatpush1.bf16.xpose.msra.mxu0 0
        %909 = vmatprep.subr.bf16.mxu0 0
        %910 = vmatpush1.bf16.xpose.msra.mxu0 0
        %911 = vmatprep.subr.bf16.mxu0 0
        %912 = vmatpush1.bf16.xpose.msra.mxu0 0
        %913 = vmatprep.subr.bf16.mxu0 0
        %914 = vmatpush1.bf16.xpose.msra.mxu0 0
        %915 = vmatprep.mubr.bf16.mxu0 0
        %916 = vmatmul.mubr.bf16.gmra.mrb[0].mxu0 %v878
        %v917 = vpop.f32.mrb[0].mxu0
        %v918 = vadd.f32 %v757, %v917
        %v919 = vpop.f32.mrb[0].mxu0
        %v920 = vpop.f32.mrb[0].mxu0
        %v921 = vpop.f32.mrb[0].mxu0
        %922 = vdwg.mxu0
        %v923 = vsel %vm761, %v918, -inf
        %924 = vmax.xlane.f32.xlu0 %v923
        %v925 = vpop.xlane.xlu0 %924
        %v926 = vsub.f32 %v918, %v925
        %v927 = vmul.f32 %v926, 1.442695
        %v928 = vpow.pop %v927
        %v929 = vsel %vm761, %v928, 0.0
        %930 = vadd.xlane.f32.xlu0 %v929
        %v931 = vpop.xlane.xlu0 %930
        %v932 = vrcp.pop %v931
        %v933 = vmul.f32 %v928, %v932
        %v934 = vpack.c.bf16 %v933, %v933
        %v936 = vunpack.c.l.b16 %v760
        %v937 = vpack.c.b16 %v936, %v936
        %938 = vrot.lane.b32.xlu0 %v937, 120
        %v939 = vpop.permute.xlu0 %938
        %v941 = vsel %vm761, %v934, 0
        %v944 = vsel %vm823, %v939, 0
        %946 = vmatprep.subr.bf16.mxu0 0
        %947 = vmatpush1.bf16.msra.mxu0 %v944
        %948 = vmatprep.subr.bf16.mxu0 0
        %949 = vmatpush1.bf16.msra.mxu0 0
        %950 = vmatprep.subr.bf16.mxu0 0
        %951 = vmatpush1.bf16.msra.mxu0 0
        %952 = vmatprep.subr.bf16.mxu0 0
        %953 = vmatpush1.bf16.msra.mxu0 0
        %954 = vmatprep.subr.bf16.mxu0 0
        %955 = vmatpush1.bf16.msra.mxu0 0
        %956 = vmatprep.subr.bf16.mxu0 0
        %957 = vmatpush1.bf16.msra.mxu0 0
        %958 = vmatprep.subr.bf16.mxu0 0
        %959 = vmatpush1.bf16.msra.mxu0 0
        %960 = vmatprep.subr.bf16.mxu0 0
        %961 = vmatpush1.bf16.msra.mxu0 0
        %962 = vmatprep.subr.bf16.mxu0 0
        %963 = vmatpush1.bf16.msra.mxu0 0
        %964 = vmatprep.subr.bf16.mxu0 0
        %965 = vmatpush1.bf16.msra.mxu0 0
        %966 = vmatprep.subr.bf16.mxu0 0
        %967 = vmatpush1.bf16.msra.mxu0 0
        %968 = vmatprep.subr.bf16.mxu0 0
        %969 = vmatpush1.bf16.msra.mxu0 0
        %970 = vmatprep.subr.bf16.mxu0 0
        %971 = vmatpush1.bf16.msra.mxu0 0
        %972 = vmatprep.subr.bf16.mxu0 0
        %973 = vmatpush1.bf16.msra.mxu0 0
        %974 = vmatprep.subr.bf16.mxu0 0
        %975 = vmatpush1.bf16.msra.mxu0 0
        %976 = vmatprep.subr.bf16.mxu0 0
        %977 = vmatpush1.bf16.msra.mxu0 0
        %978 = vmatprep.mubr.bf16.mxu0 0
        %979 = vmatmul.mubr.bf16.gmra.mrb[0].mxu0 %v941
        %v980 = vpop.f32.mrb[0].mxu0
        %v981 = vadd.f32 0.0, %v980
        %v982 = vpop.f32.mrb[0].mxu0
        %v983 = vpop.f32.mrb[0].mxu0
        %v984 = vpop.f32.mrb[0].mxu0
        %985 = vdwg.mxu0
        %v986 = vpack.c.bf16 %v981, %v981
        %s987 = scalar_lea.vmem %s6, 4
        %v988 = vld [vmem:[%s987] sm:$0xf]
        %v990 = vsel %vm761, %v986, 0
        %v993 = vsel %vm823, %v988, 0
        %995 = vmatprep.subr.bf16.mxu0 0
        %996 = vmatpush1.bf16.msra.mxu0 %v993
        %997 = vmatprep.subr.bf16.mxu0 0
        %998 = vmatpush1.bf16.msra.mxu0 0
        %999 = vmatprep.subr.bf16.mxu0 0
        %1000 = vmatpush1.bf16.msra.mxu0 0
        %1001 = vmatprep.subr.bf16.mxu0 0
        %1002 = vmatpush1.bf16.msra.mxu0 0
        %1003 = vmatprep.subr.bf16.mxu0 0
        %1004 = vmatpush1.bf16.msra.mxu0 0
        %1005 = vmatprep.subr.bf16.mxu0 0
        %1006 = vmatpush1.bf16.msra.mxu0 0
        %1007 = vmatprep.subr.bf16.mxu0 0
        %1008 = vmatpush1.bf16.msra.mxu0 0
        %1009 = vmatprep.subr.bf16.mxu0 0
        %1010 = vmatpush1.bf16.msra.mxu0 0
        %1011 = vmatprep.subr.bf16.mxu0 0
        %1012 = vmatpush1.bf16.msra.mxu0 0
        %1013 = vmatprep.subr.bf16.mxu0 0
        %1014 = vmatpush1.bf16.msra.mxu0 0
        %1015 = vmatprep.subr.bf16.mxu0 0
        %1016 = vmatpush1.bf16.msra.mxu0 0
        %1017 = vmatprep.subr.bf16.mxu0 0
        %1018 = vmatpush1.bf16.msra.mxu0 0
        %1019 = vmatprep.subr.bf16.mxu0 0
        %1020 = vmatpush1.bf16.msra.mxu0 0
        %1021 = vmatprep.subr.bf16.mxu0 0
        %1022 = vmatpush1.bf16.msra.mxu0 0
        %1023 = vmatprep.subr.bf16.mxu0 0
        %1024 = vmatpush1.bf16.msra.mxu0 0
        %1025 = vmatprep.subr.bf16.mxu0 0
        %1026 = vmatpush1.bf16.msra.mxu0 0
        %1027 = vmatprep.mubr.bf16.mxu0 0
        %1028 = vmatmul.mubr.bf16.gmra.mrb[0].mxu0 %v990
        %v1029 = vpop.f32.mrb[0].mxu0
        %v1030 = vadd.f32 0.0, %v1029
        %v1031 = vpop.f32.mrb[0].mxu0
        %v1032 = vpop.f32.mrb[0].mxu0
        %v1033 = vpop.f32.mrb[0].mxu0
        %1034 = vdwg.mxu0
        %v1036 = vsel %vm761, %v867, 0
        %v1039 = vsel %vm823, %v868, 0
        %1041 = vmatprep.subr.bf16.mxu0 0
        %1042 = vmatpush1.bf16.msra.mxu0 %v1039
        %1043 = vmatprep.subr.bf16.mxu0 0
        %1044 = vmatpush1.bf16.msra.mxu0 0
        %1045 = vmatprep.subr.bf16.mxu0 0
        %1046 = vmatpush1.bf16.msra.mxu0 0
        %1047 = vmatprep.subr.bf16.mxu0 0
        %1048 = vmatpush1.bf16.msra.mxu0 0
        %1049 = vmatprep.subr.bf16.mxu0 0
        %1050 = vmatpush1.bf16.msra.mxu0 0
        %1051 = vmatprep.subr.bf16.mxu0 0
        %1052 = vmatpush1.bf16.msra.mxu0 0
        %1053 = vmatprep.subr.bf16.mxu0 0
        %1054 = vmatpush1.bf16.msra.mxu0 0
        %1055 = vmatprep.subr.bf16.mxu0 0
        %1056 = vmatpush1.bf16.msra.mxu0 0
        %1057 = vmatprep.subr.bf16.mxu0 0
        %1058 = vmatpush1.bf16.msra.mxu0 0
        %1059 = vmatprep.subr.bf16.mxu0 0
        %1060 = vmatpush1.bf16.msra.mxu0 0
        %1061 = vmatprep.subr.bf16.mxu0 0
        %1062 = vmatpush1.bf16.msra.mxu0 0
        %1063 = vmatprep.subr.bf16.mxu0 0
        %1064 = vmatpush1.bf16.msra.mxu0 0
        %1065 = vmatprep.subr.bf16.mxu0 0
        %1066 = vmatpush1.bf16.msra.mxu0 0
        %1067 = vmatprep.subr.bf16.mxu0 0
        %1068 = vmatpush1.bf16.msra.mxu0 0
        %1069 = vmatprep.subr.bf16.mxu0 0
        %1070 = vmatpush1.bf16.msra.mxu0 0
        %1071 = vmatprep.subr.bf16.mxu0 0
        %1072 = vmatpush1.bf16.msra.mxu0 0
        %1073 = vmatprep.mubr.bf16.mxu0 0
        %1074 = vmatmul.mubr.bf16.gmra.mrb[0].mxu0 %v1036
        %v1075 = vpop.f32.mrb[0].mxu0
        %v1076 = vadd.f32 %v1030, %v1075
        %v1077 = vpop.f32.mrb[0].mxu0
        %v1078 = vpop.f32.mrb[0].mxu0
        %v1079 = vpop.f32.mrb[0].mxu0
        %1080 = vdwg.mxu0
        %1081 = vrot.lane.b32.xlu0 %v751, 112
        %v1082 = vpop.permute.xlu0 %1081
        %1083 = vrot.lane.b32.xlu0 %v874, 112
        %v1084 = vpop.permute.xlu0 %1083
        %v1086 = vsel %vm761, %v1082, 0
        %v1089 = vsel %vm761, %v1084, 0
        %1091 = vmatprep.subr.bf16.mxu0 0
        %1092 = vmatpush1.bf16.xpose.msra.mxu0 %v1089
        %1093 = vmatprep.subr.bf16.mxu0 0
        %1094 = vmatpush1.bf16.xpose.msra.mxu0 0
        %1095 = vmatprep.subr.bf16.mxu0 0
        %1096 = vmatpush1.bf16.xpose.msra.mxu0 0
        %1097 = vmatprep.subr.bf16.mxu0 0
        %1098 = vmatpush1.bf16.xpose.msra.mxu0 0
        %1099 = vmatprep.subr.bf16.mxu0 0
        %1100 = vmatpush1.bf16.xpose.msra.mxu0 0
        %1101 = vmatprep.subr.bf16.mxu0 0
        %1102 = vmatpush1.bf16.xpose.msra.mxu0 0
        %1103 = vmatprep.subr.bf16.mxu0 0
        %1104 = vmatpush1.bf16.xpose.msra.mxu0 0
        %1105 = vmatprep.subr.bf16.mxu0 0
        %1106 = vmatpush1.bf16.xpose.msra.mxu0 0
        %1107 = vmatprep.subr.bf16.mxu0 0
        %1108 = vmatpush1.bf16.xpose.msra.mxu0 0
        %1109 = vmatprep.subr.bf16.mxu0 0
        %1110 = vmatpush1.bf16.xpose.msra.mxu0 0
        %1111 = vmatprep.subr.bf16.mxu0 0
        %1112 = vmatpush1.bf16.xpose.msra.mxu0 0
        %1113 = vmatprep.subr.bf16.mxu0 0
        %1114 = vmatpush1.bf16.xpose.msra.mxu0 0
        %1115 = vmatprep.subr.bf16.mxu0 0
        %1116 = vmatpush1.bf16.xpose.msra.mxu0 0
        %1117 = vmatprep.subr.bf16.mxu0 0
        %1118 = vmatpush1.bf16.xpose.msra.mxu0 0
        %1119 = vmatprep.subr.bf16.mxu0 0
        %1120 = vmatpush1.bf16.xpose.msra.mxu0 0
        %1121 = vmatprep.subr.bf16.mxu0 0
        %1122 = vmatpush1.bf16.xpose.msra.mxu0 0
        %1123 = vmatprep.mubr.bf16.mxu0 0
        %1124 = vmatmul.mubr.bf16.gmra.mrb[0].mxu0 %v1086
        %v1125 = vpop.f32.mrb[0].mxu0
        %v1126 = vadd.f32 %v757, %v1125
        %v1127 = vpop.f32.mrb[0].mxu0
        %v1128 = vpop.f32.mrb[0].mxu0
        %v1129 = vpop.f32.mrb[0].mxu0
        %1130 = vdwg.mxu0
        %v1131 = vsel %vm761, %v1126, -inf
        %1132 = vmax.xlane.f32.xlu0 %v1131
        %v1133 = vpop.xlane.xlu0 %1132
        %v1134 = vsub.f32 %v1126, %v1133
        %v1135 = vmul.f32 %v1134, 1.442695
        %v1136 = vpow.pop %v1135
        %v1137 = vsel %vm761, %v1136, 0.0
        %1138 = vadd.xlane.f32.xlu0 %v1137
        %v1139 = vpop.xlane.xlu0 %1138
        %v1140 = vrcp.pop %v1139
        %v1141 = vmul.f32 %v1136, %v1140
        %v1142 = vpack.c.bf16 %v1141, %v1141
        %1143 = vrot.lane.b32.xlu0 %v937, 112
        %v1144 = vpop.permute.xlu0 %1143
        %v1146 = vsel %vm761, %v1142, 0
        %v1149 = vsel %vm823, %v1144, 0
        %1151 = vmatprep.subr.bf16.mxu0 0
        %1152 = vmatpush1.bf16.msra.mxu0 %v1149
        %1153 = vmatprep.subr.bf16.mxu0 0
        %1154 = vmatpush1.bf16.msra.mxu0 0
        %1155 = vmatprep.subr.bf16.mxu0 0
        %1156 = vmatpush1.bf16.msra.mxu0 0
        %1157 = vmatprep.subr.bf16.mxu0 0
        %1158 = vmatpush1.bf16.msra.mxu0 0
        %1159 = vmatprep.subr.bf16.mxu0 0
        %1160 = vmatpush1.bf16.msra.mxu0 0
        %1161 = vmatprep.subr.bf16.mxu0 0
        %1162 = vmatpush1.bf16.msra.mxu0 0
        %1163 = vmatprep.subr.bf16.mxu0 0
        %1164 = vmatpush1.bf16.msra.mxu0 0
        %1165 = vmatprep.subr.bf16.mxu0 0
        %1166 = vmatpush1.bf16.msra.mxu0 0
        %1167 = vmatprep.subr.bf16.mxu0 0
        %1168 = vmatpush1.bf16.msra.mxu0 0
        %1169 = vmatprep.subr.bf16.mxu0 0
        %1170 = vmatpush1.bf16.msra.mxu0 0
        %1171 = vmatprep.subr.bf16.mxu0 0
        %1172 = vmatpush1.bf16.msra.mxu0 0
        %1173 = vmatprep.subr.bf16.mxu0 0
        %1174 = vmatpush1.bf16.msra.mxu0 0
        %1175 = vmatprep.subr.bf16.mxu0 0
        %1176 = vmatpush1.bf16.msra.mxu0 0
        %1177 = vmatprep.subr.bf16.mxu0 0
        %1178 = vmatpush1.bf16.msra.mxu0 0
        %1179 = vmatprep.subr.bf16.mxu0 0
        %1180 = vmatpush1.bf16.msra.mxu0 0
        %1181 = vmatprep.subr.bf16.mxu0 0
        %1182 = vmatpush1.bf16.msra.mxu0 0
        %1183 = vmatprep.mubr.bf16.mxu0 0
        %1184 = vmatmul.mubr.bf16.gmra.mrb[0].mxu0 %v1146
        %v1185 = vpop.f32.mrb[0].mxu0
        %v1186 = vadd.f32 0.0, %v1185
        %v1187 = vpop.f32.mrb[0].mxu0
        %v1188 = vpop.f32.mrb[0].mxu0
        %v1189 = vpop.f32.mrb[0].mxu0
        %1190 = vdwg.mxu0
        %v1191 = vpack.c.bf16 %v1186, %v1186
        %s1192 = scalar_lea.vmem %s6, 8
        %v1193 = vld [vmem:[%s1192] sm:$0xf]
        %v1195 = vsel %vm761, %v1191, 0
        %v1198 = vsel %vm823, %v1193, 0
        %1200 = vmatprep.subr.bf16.mxu0 0
        %1201 = vmatpush1.bf16.msra.mxu0 %v1198
        %1202 = vmatprep.subr.bf16.mxu0 0
        %1203 = vmatpush1.bf16.msra.mxu0 0
        %1204 = vmatprep.subr.bf16.mxu0 0
        %1205 = vmatpush1.bf16.msra.mxu0 0
        %1206 = vmatprep.subr.bf16.mxu0 0
        %1207 = vmatpush1.bf16.msra.mxu0 0
        %1208 = vmatprep.subr.bf16.mxu0 0
        %1209 = vmatpush1.bf16.msra.mxu0 0
        %1210 = vmatprep.subr.bf16.mxu0 0
        %1211 = vmatpush1.bf16.msra.mxu0 0
        %1212 = vmatprep.subr.bf16.mxu0 0
        %1213 = vmatpush1.bf16.msra.mxu0 0
        %1214 = vmatprep.subr.bf16.mxu0 0
        %1215 = vmatpush1.bf16.msra.mxu0 0
        %1216 = vmatprep.subr.bf16.mxu0 0
        %1217 = vmatpush1.bf16.msra.mxu0 0
        %1218 = vmatprep.subr.bf16.mxu0 0
        %1219 = vmatpush1.bf16.msra.mxu0 0
        %1220 = vmatprep.subr.bf16.mxu0 0
        %1221 = vmatpush1.bf16.msra.mxu0 0
        %1222 = vmatprep.subr.bf16.mxu0 0
        %1223 = vmatpush1.bf16.msra.mxu0 0
        %1224 = vmatprep.subr.bf16.mxu0 0
        %1225 = vmatpush1.bf16.msra.mxu0 0
        %1226 = vmatprep.subr.bf16.mxu0 0
        %1227 = vmatpush1.bf16.msra.mxu0 0
        %1228 = vmatprep.subr.bf16.mxu0 0
        %1229 = vmatpush1.bf16.msra.mxu0 0
        %1230 = vmatprep.subr.bf16.mxu0 0
        %1231 = vmatpush1.bf16.msra.mxu0 0
        %1232 = vmatprep.mubr.bf16.mxu0 0
        %1233 = vmatmul.mubr.bf16.gmra.mrb[0].mxu0 %v1195
        %v1234 = vpop.f32.mrb[0].mxu0
        %v1235 = vadd.f32 0.0, %v1234
        %v1236 = vpop.f32.mrb[0].mxu0
        %v1237 = vpop.f32.mrb[0].mxu0
        %v1238 = vpop.f32.mrb[0].mxu0
        %1239 = vdwg.mxu0
        %v1240 = vadd.f32 %v1076, %v1235
        %1241 = vrot.lane.b32.xlu0 %v751, 104
        %v1242 = vpop.permute.xlu0 %1241
        %1243 = vrot.lane.b32.xlu0 %v874, 104
        %v1244 = vpop.permute.xlu0 %1243
        %v1246 = vsel %vm761, %v1242, 0
        %v1249 = vsel %vm761, %v1244, 0
        %1251 = vmatprep.subr.bf16.mxu0 0
        %1252 = vmatpush1.bf16.xpose.msra.mxu0 %v1249
        %1253 = vmatprep.subr.bf16.mxu0 0
        %1254 = vmatpush1.bf16.xpose.msra.mxu0 0
        %1255 = vmatprep.subr.bf16.mxu0 0
        %1256 = vmatpush1.bf16.xpose.msra.mxu0 0
        %1257 = vmatprep.subr.bf16.mxu0 0
        %1258 = vmatpush1.bf16.xpose.msra.mxu0 0
        %1259 = vmatprep.subr.bf16.mxu0 0
        %1260 = vmatpush1.bf16.xpose.msra.mxu0 0
        %1261 = vmatprep.subr.bf16.mxu0 0
        %1262 = vmatpush1.bf16.xpose.msra.mxu0 0
        %1263 = vmatprep.subr.bf16.mxu0 0
        %1264 = vmatpush1.bf16.xpose.msra.mxu0 0
        %1265 = vmatprep.subr.bf16.mxu0 0
        %1266 = vmatpush1.bf16.xpose.msra.mxu0 0
        %1267 = vmatprep.subr.bf16.mxu0 0
        %1268 = vmatpush1.bf16.xpose.msra.mxu0 0
        %1269 = vmatprep.subr.bf16.mxu0 0
        %1270 = vmatpush1.bf16.xpose.msra.mxu0 0
        %1271 = vmatprep.subr.bf16.mxu0 0
        %1272 = vmatpush1.bf16.xpose.msra.mxu0 0
        %1273 = vmatprep.subr.bf16.mxu0 0
        %1274 = vmatpush1.bf16.xpose.msra.mxu0 0
        %1275 = vmatprep.subr.bf16.mxu0 0
        %1276 = vmatpush1.bf16.xpose.msra.mxu0 0
        %1277 = vmatprep.subr.bf16.mxu0 0
        %1278 = vmatpush1.bf16.xpose.msra.mxu0 0
        %1279 = vmatprep.subr.bf16.mxu0 0
        %1280 = vmatpush1.bf16.xpose.msra.mxu0 0
        %1281 = vmatprep.subr.bf16.mxu0 0
        %1282 = vmatpush1.bf16.xpose.msra.mxu0 0
        %1283 = vmatprep.mubr.bf16.mxu0 0
        %1284 = vmatmul.mubr.bf16.gmra.mrb[0].mxu0 %v1246
        %v1285 = vpop.f32.mrb[0].mxu0
        %v1286 = vadd.f32 %v757, %v1285
        %v1287 = vpop.f32.mrb[0].mxu0
        %v1288 = vpop.f32.mrb[0].mxu0
        %v1289 = vpop.f32.mrb[0].mxu0
        %1290 = vdwg.mxu0
        %v1291 = vsel %vm761, %v1286, -inf
        %1292 = vmax.xlane.f32.xlu0 %v1291
        %v1293 = vpop.xlane.xlu0 %1292
        %v1294 = vsub.f32 %v1286, %v1293
        %v1295 = vmul.f32 %v1294, 1.442695
        %v1296 = vpow.pop %v1295
        %v1297 = vsel %vm761, %v1296, 0.0
        %1298 = vadd.xlane.f32.xlu0 %v1297
        %v1299 = vpop.xlane.xlu0 %1298
        %v1300 = vrcp.pop %v1299
        %v1301 = vmul.f32 %v1296, %v1300
        %v1302 = vpack.c.bf16 %v1301, %v1301
        %1303 = vrot.lane.b32.xlu0 %v937, 104
        %v1304 = vpop.permute.xlu0 %1303
        %v1306 = vsel %vm761, %v1302, 0
        %v1309 = vsel %vm823, %v1304, 0
        %1311 = vmatprep.subr.bf16.mxu0 0
        %1312 = vmatpush1.bf16.msra.mxu0 %v1309
        %1313 = vmatprep.subr.bf16.mxu0 0
        %1314 = vmatpush1.bf16.msra.mxu0 0
        %1315 = vmatprep.subr.bf16.mxu0 0
        %1316 = vmatpush1.bf16.msra.mxu0 0
        %1317 = vmatprep.subr.bf16.mxu0 0
        %1318 = vmatpush1.bf16.msra.mxu0 0
        %1319 = vmatprep.subr.bf16.mxu0 0
        %1320 = vmatpush1.bf16.msra.mxu0 0
        %1321 = vmatprep.subr.bf16.mxu0 0
        %1322 = vmatpush1.bf16.msra.mxu0 0
        %1323 = vmatprep.subr.bf16.mxu0 0
        %1324 = vmatpush1.bf16.msra.mxu0 0
        %1325 = vmatprep.subr.bf16.mxu0 0
        %1326 = vmatpush1.bf16.msra.mxu0 0
        %1327 = vmatprep.subr.bf16.mxu0 0
        %1328 = vmatpush1.bf16.msra.mxu0 0
        %1329 = vmatprep.subr.bf16.mxu0 0
        %1330 = vmatpush1.bf16.msra.mxu0 0
        %1331 = vmatprep.subr.bf16.mxu0 0
        %1332 = vmatpush1.bf16.msra.mxu0 0
        %1333 = vmatprep.subr.bf16.mxu0 0
        %1334 = vmatpush1.bf16.msra.mxu0 0
        %1335 = vmatprep.subr.bf16.mxu0 0
        %1336 = vmatpush1.bf16.msra.mxu0 0
        %1337 = vmatprep.subr.bf16.mxu0 0
        %1338 = vmatpush1.bf16.msra.mxu0 0
        %1339 = vmatprep.subr.bf16.mxu0 0
        %1340 = vmatpush1.bf16.msra.mxu0 0
        %1341 = vmatprep.subr.bf16.mxu0 0
        %1342 = vmatpush1.bf16.msra.mxu0 0
        %1343 = vmatprep.mubr.bf16.mxu0 0
        %1344 = vmatmul.mubr.bf16.gmra.mrb[0].mxu0 %v1306
        %v1345 = vpop.f32.mrb[0].mxu0
        %v1346 = vadd.f32 0.0, %v1345
        %v1347 = vpop.f32.mrb[0].mxu0
        %v1348 = vpop.f32.mrb[0].mxu0
        %v1349 = vpop.f32.mrb[0].mxu0
        %1350 = vdwg.mxu0
        %v1351 = vpack.c.bf16 %v1346, %v1346
        %s1352 = scalar_lea.vmem %s6, 12
        %v1353 = vld [vmem:[%s1352] sm:$0xf]
        %v1355 = vsel %vm761, %v1351, 0
        %v1358 = vsel %vm823, %v1353, 0
        %1360 = vmatprep.subr.bf16.mxu0 0
        %1361 = vmatpush1.bf16.msra.mxu0 %v1358
        %1362 = vmatprep.subr.bf16.mxu0 0
        %1363 = vmatpush1.bf16.msra.mxu0 0
        %1364 = vmatprep.subr.bf16.mxu0 0
        %1365 = vmatpush1.bf16.msra.mxu0 0
        %1366 = vmatprep.subr.bf16.mxu0 0
        %1367 = vmatpush1.bf16.msra.mxu0 0
        %1368 = vmatprep.subr.bf16.mxu0 0
        %1369 = vmatpush1.bf16.msra.mxu0 0
        %1370 = vmatprep.subr.bf16.mxu0 0
        %1371 = vmatpush1.bf16.msra.mxu0 0
        %1372 = vmatprep.subr.bf16.mxu0 0
        %1373 = vmatpush1.bf16.msra.mxu0 0
        %1374 = vmatprep.subr.bf16.mxu0 0
        %1375 = vmatpush1.bf16.msra.mxu0 0
        %1376 = vmatprep.subr.bf16.mxu0 0
        %1377 = vmatpush1.bf16.msra.mxu0 0
        %1378 = vmatprep.subr.bf16.mxu0 0
        %1379 = vmatpush1.bf16.msra.mxu0 0
        %1380 = vmatprep.subr.bf16.mxu0 0
        %1381 = vmatpush1.bf16.msra.mxu0 0
        %1382 = vmatprep.subr.bf16.mxu0 0
        %1383 = vmatpush1.bf16.msra.mxu0 0
        %1384 = vmatprep.subr.bf16.mxu0 0
        %1385 = vmatpush1.bf16.msra.mxu0 0
        %1386 = vmatprep.subr.bf16.mxu0 0
        %1387 = vmatpush1.bf16.msra.mxu0 0
        %1388 = vmatprep.subr.bf16.mxu0 0
        %1389 = vmatpush1.bf16.msra.mxu0 0
        %1390 = vmatprep.subr.bf16.mxu0 0
        %1391 = vmatpush1.bf16.msra.mxu0 0
        %1392 = vmatprep.mubr.bf16.mxu0 0
        %1393 = vmatmul.mubr.bf16.gmra.mrb[0].mxu0 %v1355
        %v1394 = vpop.f32.mrb[0].mxu0
        %v1395 = vadd.f32 0.0, %v1394
        %v1396 = vpop.f32.mrb[0].mxu0
        %v1397 = vpop.f32.mrb[0].mxu0
        %v1398 = vpop.f32.mrb[0].mxu0
        %1399 = vdwg.mxu0
        %v1400 = vadd.f32 %v1240, %v1395
        %v1401 = vld [vmem:[#allocation9] sm:$0x1]
        %v1403 = vlaneseq
        %v1404 = vshrl.u32 %v1403, 7
        %v1405 = vsub.s32 0, %v1404
        %v1406 = vrot.slane %v1401, %v1405
        %v1408 = vadd.f32 %v1400, %v1406
        %v1409 = vadd.f32 %v681, %v1408
        %v1410 = vld [vmem:[#allocation11] sm:$0x1]
        %v1411 = vld [vmem:[#allocation12] sm:$0x1]
        %v1412 = vsel %vm706, %v1409, 0.0
        %1413 = vadd.xlane.f32.xlu0 %v1412
        %v1414 = vpop.xlane.xlu0 %1413
        %v1415 = vrcp.pop 32.0
        %v1416 = vmul.f32 %v1414, %v1415
        %v1417 = vsub.f32 %v1409, %v1416
        %v1418 = vmul.f32 %v1417, %v1417
        %v1419 = vsel %vm706, %v1418, 0.0
        %1420 = vadd.xlane.f32.xlu0 %v1419
        %v1421 = vpop.xlane.xlu0 %1420
        %v1422 = vmul.f32 %v1421, %v1415
        %v1423 = vadd.f32 %v1422, 1e-05
        %v1424 = vrsqrt.pop %v1423
        %v1425 = vmul.f32 %v1417, %v1424
        %v1427 = vlaneseq
        %v1428 = vshrl.u32 %v1427, 7
        %v1429 = vsub.s32 0, %v1428
        %v1430 = vrot.slane %v1410, %v1429
        %v1432 = vmul.f32 %v1425, %v1430
        %v1434 = vlaneseq
        %v1435 = vshrl.u32 %v1434, 7
        %v1436 = vsub.s32 0, %v1435
        %v1437 = vrot.slane %v1411, %v1436
        %v1439 = vadd.f32 %v1432, %v1437
        %v1440 = vpack.c.bf16 %v1439, %v1439
        %v1441 = vld [vmem:[%s10] sm:$0xf]
        %v1442 = vld [vmem:[%s10 + $0x4] sm:$0xf]
        %v1443 = vld [vmem:[%s10 + $0x8] sm:$0xf]
        %v1444 = vld [vmem:[%s10 + $0xc] sm:$0xf]
        %v1445 = vld [vmem:[%s11] sm:$0x1]
        %v1447 = vlaneseq
        %v1448 = vshrl.u32 %v1447, 7
        %v1449 = vsub.s32 0, %v1448
        %v1450 = vrot.slane %v1445, %v1449
        %v1456 = vunpack.c.l.b16 %v1441
        %v1457 = vunpack.c.l.b16 %v1442
        %v1458 = vunpack.c.l.b16 %v1443
        %v1459 = vunpack.c.l.b16 %v1444
        %v1460 = vpack.c.b16 %v1457, %v1456
        %v1461 = vpack.c.b16 %v1459, %v1458
        %v1465 = vsel %vm706, %v1440, 0
        %1467 = vmatprep.subr.bf16.mxu0 0
        %1468 = vmatpush1.bf16.msra.mxu0 %v1460
        %1469 = vmatprep.subr.bf16.mxu0 0
        %1470 = vmatpush1.bf16.msra.mxu0 %v1461
        %1471 = vmatprep.subr.bf16.mxu0 0
        %1472 = vmatpush1.bf16.msra.mxu0 0
        %1473 = vmatprep.subr.bf16.mxu0 0
        %1474 = vmatpush1.bf16.msra.mxu0 0
        %1475 = vmatprep.subr.bf16.mxu0 0
        %1476 = vmatpush1.bf16.msra.mxu0 0
        %1477 = vmatprep.subr.bf16.mxu0 0
        %1478 = vmatpush1.bf16.msra.mxu0 0
        %1479 = vmatprep.subr.bf16.mxu0 0
        %1480 = vmatpush1.bf16.msra.mxu0 0
        %1481 = vmatprep.subr.bf16.mxu0 0
        %1482 = vmatpush1.bf16.msra.mxu0 0
        %1483 = vmatprep.subr.bf16.mxu0 0
        %1484 = vmatpush1.bf16.msra.mxu0 0
        %1485 = vmatprep.subr.bf16.mxu0 0
        %1486 = vmatpush1.bf16.msra.mxu0 0
        %1487 = vmatprep.subr.bf16.mxu0 0
        %1488 = vmatpush1.bf16.msra.mxu0 0
        %1489 = vmatprep.subr.bf16.mxu0 0
        %1490 = vmatpush1.bf16.msra.mxu0 0
        %1491 = vmatprep.subr.bf16.mxu0 0
        %1492 = vmatpush1.bf16.msra.mxu0 0
        %1493 = vmatprep.subr.bf16.mxu0 0
        %1494 = vmatpush1.bf16.msra.mxu0 0
        %1495 = vmatprep.subr.bf16.mxu0 0
        %1496 = vmatpush1.bf16.msra.mxu0 0
        %1497 = vmatprep.subr.bf16.mxu0 0
        %1498 = vmatpush1.bf16.msra.mxu0 0
        %1499 = vmatprep.mubr.bf16.mxu0 0
        %1500 = vmatmul.mubr.bf16.gmra.mrb[0].mxu0 %v1465
        %v1501 = vpop.f32.mrb[0].mxu0
        %v1502 = vadd.f32 %v1450, %v1501
        %v1503 = vpop.f32.mrb[0].mxu0
        %v1504 = vpop.f32.mrb[0].mxu0
        %v1505 = vpop.f32.mrb[0].mxu0
        %1506 = vdwg.mxu0
        %v1507 = vmax.f32 %v1502, 0.0
        %v1508 = vpack.c.bf16 %v1507, %v1507
        %v1509 = vld [vmem:[%s12] sm:$0xf]
        %v1510 = vld [vmem:[%s12 + $0x4] sm:$0xf]
        %v1511 = vld [vmem:[%s12 + $0x8] sm:$0xf]
        %v1512 = vld [vmem:[%s12 + $0xc] sm:$0xf]
        %v1513 = vld [vmem:[%s12 + $0x10] sm:$0xf]
        %v1514 = vld [vmem:[%s12 + $0x14] sm:$0xf]
        %v1515 = vld [vmem:[%s12 + $0x18] sm:$0xf]
        %v1516 = vld [vmem:[%s12 + $0x1c] sm:$0xf]
        %v1517 = vld [vmem:[%s13] sm:$0x1]
        %v1519 = vlaneseq
        %v1520 = vshrl.u32 %v1519, 7
        %v1521 = vsub.s32 0, %v1520
        %v1522 = vrot.slane %v1517, %v1521
        %v1532 = vunpack.c.l.b16 %v1509
        %v1533 = vunpack.c.l.b16 %v1510
        %v1534 = vunpack.c.l.b16 %v1511
        %v1535 = vunpack.c.l.b16 %v1512
        %v1536 = vunpack.c.l.b16 %v1513
        %v1537 = vunpack.c.l.b16 %v1514
        %v1538 = vunpack.c.l.b16 %v1515
        %v1539 = vunpack.c.l.b16 %v1516
        %v1540 = vpack.c.b16 %v1533, %v1532
        %v1541 = vpack.c.b16 %v1535, %v1534
        %v1542 = vpack.c.b16 %v1537, %v1536
        %v1543 = vpack.c.b16 %v1539, %v1538
        %vm1548 = vcmask 523264
        %v1550 = vsel %vm1548, %v1508, 0
        %1552 = vmatprep.subr.bf16.mxu0 0
        %1553 = vmatpush1.bf16.msra.mxu0 %v1540
        %1554 = vmatprep.subr.bf16.mxu0 0
        %1555 = vmatpush1.bf16.msra.mxu0 %v1541
        %1556 = vmatprep.subr.bf16.mxu0 0
        %1557 = vmatpush1.bf16.msra.mxu0 %v1542
        %1558 = vmatprep.subr.bf16.mxu0 0
        %1559 = vmatpush1.bf16.msra.mxu0 %v1543
        %1560 = vmatprep.subr.bf16.mxu0 0
        %1561 = vmatpush1.bf16.msra.mxu0 0
        %1562 = vmatprep.subr.bf16.mxu0 0
        %1563 = vmatpush1.bf16.msra.mxu0 0
        %1564 = vmatprep.subr.bf16.mxu0 0
        %1565 = vmatpush1.bf16.msra.mxu0 0
        %1566 = vmatprep.subr.bf16.mxu0 0
        %1567 = vmatpush1.bf16.msra.mxu0 0
        %1568 = vmatprep.subr.bf16.mxu0 0
        %1569 = vmatpush1.bf16.msra.mxu0 0
        %1570 = vmatprep.subr.bf16.mxu0 0
        %1571 = vmatpush1.bf16.msra.mxu0 0
        %1572 = vmatprep.subr.bf16.mxu0 0
        %1573 = vmatpush1.bf16.msra.mxu0 0
        %1574 = vmatprep.subr.bf16.mxu0 0
        %1575 = vmatpush1.bf16.msra.mxu0 0
        %1576 = vmatprep.subr.bf16.mxu0 0
        %1577 = vmatpush1.bf16.msra.mxu0 0
        %1578 = vmatprep.subr.bf16.mxu0 0
        %1579 = vmatpush1.bf16.msra.mxu0 0
        %1580 = vmatprep.subr.bf16.mxu0 0
        %1581 = vmatpush1.bf16.msra.mxu0 0
        %1582 = vmatprep.subr.bf16.mxu0 0
        %1583 = vmatpush1.bf16.msra.mxu0 0
        %1584 = vmatprep.mubr.bf16.mxu0 0
        %1585 = vmatmul.mubr.bf16.gmra.mrb[0].mxu0 %v1550
        %v1586 = vpop.f32.mrb[0].mxu0
        %v1587 = vadd.f32 %v1522, %v1586
        %v1588 = vpop.f32.mrb[0].mxu0
        %v1589 = vpop.f32.mrb[0].mxu0
        %v1590 = vpop.f32.mrb[0].mxu0
        %1591 = vdwg.mxu0
        %v1592 = vadd.f32 %v1439, %v1587
        %v1593 = vld [vmem:[%s14] sm:$0x1]
        %v1594 = vld [vmem:[%s15] sm:$0x1]
        %v1595 = vsel %vm706, %v1592, 0.0
        %1596 = vadd.xlane.f32.xlu0 %v1595
        %v1597 = vpop.xlane.xlu0 %1596
        %v1598 = vmul.f32 %v1597, %v1415
        %v1599 = vsub.f32 %v1592, %v1598
        %v1600 = vmul.f32 %v1599, %v1599
        %v1601 = vsel %vm706, %v1600, 0.0
        %1602 = vadd.xlane.f32.xlu0 %v1601
        %v1603 = vpop.xlane.xlu0 %1602
        %v1604 = vmul.f32 %v1603, %v1415
        %v1605 = vadd.f32 %v1604, 1e-05
        %v1606 = vrsqrt.pop %v1605
        %v1607 = vmul.f32 %v1599, %v1606
        %v1609 = vlaneseq
        %v1610 = vshrl.u32 %v1609, 7
        %v1611 = vsub.s32 0, %v1610
        %v1612 = vrot.slane %v1593, %v1611
        %v1614 = vmul.f32 %v1607, %v1612
        %v1616 = vlaneseq
        %v1617 = vshrl.u32 %v1616, 7
        %v1618 = vsub.s32 0, %v1617
        %v1619 = vrot.slane %v1594, %v1618
        %v1621 = vadd.f32 %v1614, %v1619
        %1622 = vst.msk [vmem:[%s669] sm:$0xff] %vm706, %v1621
        %s1623 = sand.u32 %s418, 1
        %s1624 = scalar_lea.sflag [#allocation5], %s1623
        %s1625 = sand.u32 %s418, 1
        %s1626 = smul.addr %s1625, 8
        %s1627 = scalar_lea.vmem [#allocation14], %s1626
        // Predicated region
        $region109: #{tpu_custom_call.1} parent=83 // pred_check
          %p1628 = pneg %p428
        $region110: #{tpu_custom_call.1} parent=83 // pred_check_branch
          %1630 = sbr.rel (%p1628) target = $region112
        $region111: #{tpu_custom_call.1} parent=83 // pred_region
          %s1632 = ssub.s32 128, 128
          %1633 = vsyncadd %s1624, %s1632
          %s1634 = sadd.s32 %s43, %s42
          %s1635 = smul.addr %s1634, 128
          %s1636 = scalar_lea.hbm %s16, %s1635
          %s1638 = sshll.u32 %s1627, 4
          %s1639 = int_to_ptr.vmem [resolvable:$true] %s1638
          %1641 = dma.vmem_to_hbm [thread:$0]  %s1639, 128, %s1636, %s1624
        $region112: #{tpu_custom_call.1} parent=83 // pred_fallthru
          _
      $region84: #{tpu_custom_call.1} parent=5 // pred_fallthru
        _
      %p1642 = scmp.le.s32.totalorder 2, %s33
      // Predicated region
      $region113: #{tpu_custom_call.1} parent=5 // pred_check
        %p1643 = pneg %p1642
      $region114: #{tpu_custom_call.1} parent=5 // pred_check_branch
        %1645 = sbr.rel (%p1643) target = $region116
      $region115: #{tpu_custom_call.1} parent=5 // pred_region
        %s1646 = ssub.s32 %s33, 2
        // Predicated region
        $region117: #{tpu_custom_call.1} parent=115 // pred_check
          %p1647 = pneg %p434
        $region118: #{tpu_custom_call.1} parent=115 // pred_check_branch
          %1649 = sbr.rel (%p1647) target = $region120
        $region119: #{tpu_custom_call.1} parent=115 // pred_region
          %s1650 = sand.u32 %s419, 1
          %s1651 = scalar_lea.sflag [#allocation5], %s1650
          %s1652 = sand.u32 %s419, 1
          %s1653 = smul.addr %s1652, 8
          %s1654 = scalar_lea.vmem [#allocation14], %s1653
          %1655 = dma.done %s1651, 128
        $region120: #{tpu_custom_call.1} parent=115 // pred_fallthru
          _
      $region116: #{tpu_custom_call.1} parent=5 // pred_fallthru
        _
    $region6: #{tpu_custom_call.1} parent=1 // loop_footer
      %s37 = sadd.s32 1, %s33
    $region7: #{tpu_custom_call.1} parent=1 // loop_footer_branch
      %32 = sbr.rel target = $region3
    $region8: #{tpu_custom_call.1} parent=1 // loop_exit
      _
    %1656 = vsyncpa [#allocation4], 1
    %s1657 = scalar_lea.sflag [#allocation4], 1
    %1658 = vsyncpa %s1657, 1
    %1659 = vsyncpa [#allocation7], 1
    %s1660 = scalar_lea.sflag [#allocation7], 1
    %1661 = vsyncpa %s1660, 1
    %1662 = vsyncpa [#allocation10], 1
    %1663 = vsyncpa [#allocation13], 1
    %1664 = vsyncpa [#allocation5], 1
    %s1665 = scalar_lea.sflag [#allocation5], 1
    %1666 = vsyncpa %s1665, 1

// kernel: tpu_custom_call.1
$region0: #{tpu_custom_call.1}
  #allocation0 [shape = 'u32[]', space=smem, size = 0x4, offset = 0x4, fixed_abs, tag = 'smem constant byte address 0x4 - core index']
  #allocation1 [shape = 'u32[144,128]{1,0:T(1,128)}', space=vmem, size = 0x12000, scoped, tag = 'internal scratch']
  #allocation2 [shape = 'bf16[8,32]{1,0:T(8,128)(2,1)}', space=vmem, size = 0x800, scoped, tag = 'scratch operand']
  %s0 = inlined_call_operand.vmem [shape: f32[2,8,32], index: 0, kind: input, shape index: {}]
  %s1 = inlined_call_operand.hbm [shape: bf16[2,8,32], index: 1, kind: input, shape index: {}]
  %s2 = inlined_call_operand.hbm [shape: bf16[2,8,32], index: 2, kind: input, shape index: {}]
  %s3 = inlined_call_operand.vmem [shape: f32[2,1,8], index: 3, kind: input, shape index: {}]
  %s4 = inlined_call_operand.vmem [shape: bf16[32,32], index: 4, kind: input, shape index: {}]
  %s5 = inlined_call_operand.hbm [shape: f32[1,32], index: 5, kind: input, shape index: {}]
  %s6 = inlined_call_operand.vmem [shape: bf16[4,8,32], index: 6, kind: input, shape index: {}]
  %s7 = inlined_call_operand.hbm [shape: f32[1,32], index: 7, kind: input, shape index: {}]
  %s8 = inlined_call_operand.hbm [shape: f32[1,32], index: 8, kind: input, shape index: {}]
  %s9 = inlined_call_operand.hbm [shape: f32[1,32], index: 9, kind: input, shape index: {}]
  %s10 = inlined_call_operand.vmem [shape: bf16[32,64], index: 10, kind: input, shape index: {}]
  %s11 = inlined_call_operand.vmem [shape: f32[1,64], index: 11, kind: input, shape index: {}]
  %s12 = inlined_call_operand.vmem [shape: bf16[64,32], index: 12, kind: input, shape index: {}]
  %s13 = inlined_call_operand.vmem [shape: f32[1,32], index: 13, kind: input, shape index: {}]
  %s14 = inlined_call_operand.vmem [shape: f32[1,32], index: 14, kind: input, shape index: {}]
  %s15 = inlined_call_operand.vmem [shape: f32[1,32], index: 15, kind: input, shape index: {}]
  %s16 = inlined_call_operand.hbm [shape: f32[2,8,32], index: 16, kind: output, shape index: {}]
  %s17 = sld [smem:[#allocation0]]
  $region121: #{tpu_custom_call.1} parent=0
    _
  %s19 = ssub.s32 1, %s17
  %s20 = scalar_select 0, %s19, %s17
  $region1: #{tpu_custom_call.1} parent=0
    #allocation3 [shape = 'u8[4096]{0}', space=vmem, size = 0x1000, scoped, tag = 'input window, operand 1']
    #allocation4 [shape = 's32[2]{0}', space=sflag, size = 0x8, scoped, tag = 'scoped memory for tpu_custom_call.1']
    #allocation5 [shape = 's32[2]{0}', space=sflag, size = 0x8, scoped, tag = 'scoped memory for tpu_custom_call.1']
    #allocation6 [shape = 'u8[4096]{0}', space=vmem, size = 0x1000, scoped, tag = 'input window, operand 2']
    #allocation7 [shape = 's32[2]{0}', space=sflag, size = 0x8, scoped, tag = 'scoped memory for tpu_custom_call.1']
    #allocation8 [shape = 'u8[512]{0}', space=vmem, size = 0x400, scoped, tag = 'input window, operand 5, single buffered']
    #allocation9 [shape = 'u8[512]{0}', space=vmem, size = 0x400, scoped, tag = 'input window, operand 7, single buffered']
    #allocation10 [shape = 's32[1]{0}', space=sflag, size = 0x4, scoped, tag = 'scoped memory for tpu_custom_call.1']
    #allocation11 [shape = 'u8[512]{0}', space=vmem, size = 0x400, scoped, tag = 'input window, operand 8, single buffered']
    #allocation12 [shape = 'u8[512]{0}', space=vmem, size = 0x400, scoped, tag = 'input window, operand 9, single buffered']
    #allocation13 [shape = 's32[1]{0}', space=sflag, size = 0x4, scoped, tag = 'scoped memory for tpu_custom_call.1']
    #allocation14 [shape = 'u8[8192]{0}', space=vmem, size = 0x2000, scoped, tag = 'output window, operand 0']
    %21 = vsyncpa [#allocation4], 0
    %s22 = scalar_lea.sflag [#allocation4], 1
    %23 = vsyncpa %s22, 0
    %24 = vsyncpa [#allocation7], 0
    %s25 = scalar_lea.sflag [#allocation7], 1
    %26 = vsyncpa %s25, 0
    %27 = vsyncpa [#allocation10], 0
    %28 = vsyncpa [#allocation13], 0
    %29 = vsyncpa [#allocation5], 0
    %s30 = scalar_lea.sflag [#allocation5], 1
    %31 = vsyncpa %s30, 0
    loop: start=0, step=1, limit=4
    $region2: #{tpu_custom_call.1} parent=1 // loop_pre_header
      _
    $region3: #{tpu_custom_call.1} parent=1 // loop_header
      %s33 = sphi 0, %s37
      %p34 = scmp.ge.s32.totalorder %s33, 4
      %s40 = sphi 0, %s52
      %s41 = sphi 0, %s48
      %s42 = sphi 0, %s40
      %s43 = sphi 0, %s41
      %s44 = sphi 0, %s42
      %s45 = sphi 0, %s43
      %s57 = sphi 0, %s59
      %s60 = sphi 0, %s57
      %s61 = sphi 0, %s60
      %s77 = sphi 0, %s61
      %s83 = sphi 0, %s85
      %s86 = sphi 0, %s83
      %s87 = sphi 0, %s86
      %s103 = sphi 0, %s87
      %s109 = sphi 0, %s111
      %s112 = sphi 0, %s109
      %s113 = sphi 0, %s112
      %s129 = sphi 0, %s113
      %s135 = sphi 0, %s137
      %s138 = sphi 0, %s135
      %s139 = sphi 0, %s138
      %s155 = sphi 0, %s139
      %s159 = sphi 0, %s159
      %s161 = sphi 0, %s159
      %s162 = sphi 0, %s161
      %s176 = sphi 0, %s162
      %s180 = sphi 0, %s180
      %s182 = sphi 0, %s180
      %s183 = sphi 0, %s182
      %s197 = sphi 0, %s183
      %s201 = sphi 0, %s201
      %s203 = sphi 0, %s201
      %s204 = sphi 0, %s203
      %s218 = sphi 0, %s204
      %s222 = sphi 0, %s222
      %s224 = sphi 0, %s222
      %s225 = sphi 0, %s224
      %s239 = sphi 0, %s225
      %s243 = sphi 0, %s243
      %s245 = sphi 0, %s243
      %s246 = sphi 0, %s245
      %s260 = sphi 0, %s246
      %s264 = sphi 0, %s264
      %s266 = sphi 0, %s264
      %s267 = sphi 0, %s266
      %s281 = sphi 0, %s267
      %s285 = sphi 0, %s285
      %s287 = sphi 0, %s285
      %s288 = sphi 0, %s287
      %s302 = sphi 0, %s288
      %s306 = sphi 0, %s306
      %s308 = sphi 0, %s306
      %s309 = sphi 0, %s308
      %s323 = sphi 0, %s309
      %s327 = sphi 0, %s327
      %s329 = sphi 0, %s327
      %s330 = sphi 0, %s329
      %s344 = sphi 0, %s330
      %s348 = sphi 0, %s348
      %s350 = sphi 0, %s348
      %s351 = sphi 0, %s350
      %s365 = sphi 0, %s351
      %s369 = sphi 0, %s369
      %s371 = sphi 0, %s369
      %s372 = sphi 0, %s371
      %s386 = sphi 0, %s372
      %s390 = sphi 0, %s390
      %s392 = sphi 0, %s390
      %s393 = sphi 0, %s392
      %s407 = sphi 0, %s393
      %s415 = sphi 0, %s417
      %s418 = sphi 0, %s415
      %s419 = sphi 0, %s418
      %s435 = sphi 0, %s419
    $region4: #{tpu_custom_call.1} parent=1 // loop_header_branch
      %36 = sbr.rel (%p34) target = $region8
    $region5: #{tpu_custom_call.1} parent=1 // loop_body
      %s38 = ssub.s32 %s33, 1
      %s39 = ssub.s32 %s33, 2
      %s46 = sadd.s32 1, %s41
      %p47 = scmp.ge.s32.totalorder %s46, 1
      %s48 = scalar_select %p47, 0, %s46
      %s49 = sadd.s32 1, %s40
      %s50 = scalar_select %p47, %s49, %s40
      %p51 = scmp.ge.s32.totalorder %s50, 2
      %s52 = scalar_select %p51, 0, %s50
      %s53 = ssub.s32 %s40, %s52
      %s54 = ssub.s32 %s41, %s48
      %s55 = sor.u32 %s53, %s54
      %p56 = scmp.eq.s32.totalorder %s55, 0
      %s58 = sadd.s32 %s57, 1
      %s59 = scalar_select %p56, %s57, %s58
      %p62 = pneg %p56
      %p63 = scmp.eq.s32.totalorder %s33, 1
      %p64 = por %p62, %p63
      %p65 = scmp.ne.s32.totalorder %s57, %s60
      %p66 = scmp.eq.s32.totalorder %s33, 0
      %p67 = por %p65, %p66
      %p68 = scmp.ne.s32.totalorder %s57, %s60
      %p69 = scmp.eq.s32.totalorder %s38, 1
      %p70 = por %p68, %p69
      %p71 = scmp.ne.s32.totalorder %s60, %s61
      %p72 = scmp.eq.s32.totalorder %s38, 0
      %p73 = por %p71, %p72
      %p74 = scmp.ne.s32.totalorder %s60, %s61
      %p75 = scmp.eq.s32.totalorder %s39, 1
      %p76 = por %p74, %p75
      %p78 = scmp.ne.s32.totalorder %s61, %s77
      %p79 = scmp.eq.s32.totalorder %s39, 0
      %p80 = por %p78, %p79
      %s81 = ssub.s32 %s40, %s52
      %p82 = scmp.eq.s32.totalorder %s81, 0
      %s84 = sadd.s32 %s83, 1
      %s85 = scalar_select %p82, %s83, %s84
      %p88 = pneg %p82
      %p89 = scmp.eq.s32.totalorder %s33, 1
      %p90 = por %p88, %p89
      %p91 = scmp.ne.s32.totalorder %s83, %s86
      %p92 = scmp.eq.s32.totalorder %s33, 0
      %p93 = por %p91, %p92
      %p94 = scmp.ne.s32.totalorder %s83, %s86
      %p95 = scmp.eq.s32.totalorder %s38, 1
      %p96 = por %p94, %p95
      %p97 = scmp.ne.s32.totalorder %s86, %s87
      %p98 = scmp.eq.s32.totalorder %s38, 0
      %p99 = por %p97, %p98
      %p100 = scmp.ne.s32.totalorder %s86, %s87
      %p101 = scmp.eq.s32.totalorder %s39, 1
      %p102 = por %p100, %p101
      %p104 = scmp.ne.s32.totalorder %s87, %s103
      %p105 = scmp.eq.s32.totalorder %s39, 0
      %p106 = por %p104, %p105
      %s107 = ssub.s32 %s40, %s52
      %p108 = scmp.eq.s32.totalorder %s107, 0
      %s110 = sadd.s32 %s109, 1
      %s111 = scalar_select %p108, %s109, %s110
      %p114 = pneg %p108
      %p115 = scmp.eq.s32.totalorder %s33, 1
      %p116 = por %p114, %p115
      %p117 = scmp.ne.s32.totalorder %s109, %s112
      %p118 = scmp.eq.s32.totalorder %s33, 0
      %p119 = por %p117, %p118
      %p120 = scmp.ne.s32.totalorder %s109, %s112
      %p121 = scmp.eq.s32.totalorder %s38, 1
      %p122 = por %p120, %p121
      %p123 = scmp.ne.s32.totalorder %s112, %s113
      %p124 = scmp.eq.s32.totalorder %s38, 0
      %p125 = por %p123, %p124
      %p126 = scmp.ne.s32.totalorder %s112, %s113
      %p127 = scmp.eq.s32.totalorder %s39, 1
      %p128 = por %p126, %p127
      %p130 = scmp.ne.s32.totalorder %s113, %s129
      %p131 = scmp.eq.s32.totalorder %s39, 0
      %p132 = por %p130, %p131
      %s133 = ssub.s32 %s40, %s52
      %p134 = scmp.eq.s32.totalorder %s133, 0
      %s136 = sadd.s32 %s135, 1
      %s137 = scalar_select %p134, %s135, %s136
      %p140 = pneg %p134
      %p141 = scmp.eq.s32.totalorder %s33, 1
      %p142 = por %p140, %p141
      %p143 = scmp.ne.s32.totalorder %s135, %s138
      %p144 = scmp.eq.s32.totalorder %s33, 0
      %p145 = por %p143, %p144
      %p146 = scmp.ne.s32.totalorder %s135, %s138
      %p147 = scmp.eq.s32.totalorder %s38, 1
      %p148 = por %p146, %p147
      %p149 = scmp.ne.s32.totalorder %s138, %s139
      %p150 = scmp.eq.s32.totalorder %s38, 0
      %p151 = por %p149, %p150
      %p152 = scmp.ne.s32.totalorder %s138, %s139
      %p153 = scmp.eq.s32.totalorder %s39, 1
      %p154 = por %p152, %p153
      %p156 = scmp.ne.s32.totalorder %s139, %s155
      %p157 = scmp.eq.s32.totalorder %s39, 0
      %p158 = por %p156, %p157
      %s160 = sadd.s32 %s159, 1
      %p163 = scmp.eq.s32.totalorder %s33, 1
      %p164 = scmp.ne.s32.totalorder %s159, %s161
      %p165 = scmp.eq.s32.totalorder %s33, 0
      %p166 = por %p164, %p165
      %p167 = scmp.ne.s32.totalorder %s159, %s161
      %p168 = scmp.eq.s32.totalorder %s38, 1
      %p169 = por %p167, %p168
      %p170 = scmp.ne.s32.totalorder %s161, %s162
      %p171 = scmp.eq.s32.totalorder %s38, 0
      %p172 = por %p170, %p171
      %p173 = scmp.ne.s32.totalorder %s161, %s162
      %p174 = scmp.eq.s32.totalorder %s39, 1
      %p175 = por %p173, %p174
      %p177 = scmp.ne.s32.totalorder %s162, %s176
      %p178 = scmp.eq.s32.totalorder %s39, 0
      %p179 = por %p177, %p178
      %s181 = sadd.s32 %s180, 1
      %p184 = scmp.eq.s32.totalorder %s33, 1
      %p185 = scmp.ne.s32.totalorder %s180, %s182
      %p186 = scmp.eq.s32.totalorder %s33, 0
      %p187 = por %p185, %p186
      %p188 = scmp.ne.s32.totalorder %s180, %s182
      %p189 = scmp.eq.s32.totalorder %s38, 1
      %p190 = por %p188, %p189
      %p191 = scmp.ne.s32.totalorder %s182, %s183
      %p192 = scmp.eq.s32.totalorder %s38, 0
      %p193 = por %p191, %p192
      %p194 = scmp.ne.s32.totalorder %s182, %s183
      %p195 = scmp.eq.s32.totalorder %s39, 1
      %p196 = por %p194, %p195
      %p198 = scmp.ne.s32.totalorder %s183, %s197
      %p199 = scmp.eq.s32.totalorder %s39, 0
      %p200 = por %p198, %p199
      %s202 = sadd.s32 %s201, 1
      %p205 = scmp.eq.s32.totalorder %s33, 1
      %p206 = scmp.ne.s32.totalorder %s201, %s203
      %p207 = scmp.eq.s32.totalorder %s33, 0
      %p208 = por %p206, %p207
      %p209 = scmp.ne.s32.totalorder %s201, %s203
      %p210 = scmp.eq.s32.totalorder %s38, 1
      %p211 = por %p209, %p210
      %p212 = scmp.ne.s32.totalorder %s203, %s204
      %p213 = scmp.eq.s32.totalorder %s38, 0
      %p214 = por %p212, %p213
      %p215 = scmp.ne.s32.totalorder %s203, %s204
      %p216 = scmp.eq.s32.totalorder %s39, 1
      %p217 = por %p215, %p216
      %p219 = scmp.ne.s32.totalorder %s204, %s218
      %p220 = scmp.eq.s32.totalorder %s39, 0
      %p221 = por %p219, %p220
      %s223 = sadd.s32 %s222, 1
      %p226 = scmp.eq.s32.totalorder %s33, 1
      %p227 = scmp.ne.s32.totalorder %s222, %s224
      %p228 = scmp.eq.s32.totalorder %s33, 0
      %p229 = por %p227, %p228
      %p230 = scmp.ne.s32.totalorder %s222, %s224
      %p231 = scmp.eq.s32.totalorder %s38, 1
      %p232 = por %p230, %p231
      %p233 = scmp.ne.s32.totalorder %s224, %s225
      %p234 = scmp.eq.s32.totalorder %s38, 0
      %p235 = por %p233, %p234
      %p236 = scmp.ne.s32.totalorder %s224, %s225
      %p237 = scmp.eq.s32.totalorder %s39, 1
      %p238 = por %p236, %p237
      %p240 = scmp.ne.s32.totalorder %s225, %s239
      %p241 = scmp.eq.s32.totalorder %s39, 0
      %p242 = por %p240, %p241
      %s244 = sadd.s32 %s243, 1
      %p247 = scmp.eq.s32.totalorder %s33, 1
      %p248 = scmp.ne.s32.totalorder %s243, %s245
      %p249 = scmp.eq.s32.totalorder %s33, 0
      %p250 = por %p248, %p249
      %p251 = scmp.ne.s32.totalorder %s243, %s245
      %p252 = scmp.eq.s32.totalorder %s38, 1
      %p253 = por %p251, %p252
      %p254 = scmp.ne.s32.totalorder %s245, %s246
      %p255 = scmp.eq.s32.totalorder %s38, 0
      %p256 = por %p254, %p255
      %p257 = scmp.ne.s32.totalorder %s245, %s246
      %p258 = scmp.eq.s32.totalorder %s39, 1
      %p259 = por %p257, %p258
      %p261 = scmp.ne.s32.totalorder %s246, %s260
      %p262 = scmp.eq.s32.totalorder %s39, 0
      %p263 = por %p261, %p262
      %s265 = sadd.s32 %s264, 1
      %p268 = scmp.eq.s32.totalorder %s33, 1
      %p269 = scmp.ne.s32.totalorder %s264, %s266
      %p270 = scmp.eq.s32.totalorder %s33, 0
      %p271 = por %p269, %p270
      %p272 = scmp.ne.s32.totalorder %s264, %s266
      %p273 = scmp.eq.s32.totalorder %s38, 1
      %p274 = por %p272, %p273
      %p275 = scmp.ne.s32.totalorder %s266, %s267
      %p276 = scmp.eq.s32.totalorder %s38, 0
      %p277 = por %p275, %p276
      %p278 = scmp.ne.s32.totalorder %s266, %s267
      %p279 = scmp.eq.s32.totalorder %s39, 1
      %p280 = por %p278, %p279
      %p282 = scmp.ne.s32.totalorder %s267, %s281
      %p283 = scmp.eq.s32.totalorder %s39, 0
      %p284 = por %p282, %p283
      %s286 = sadd.s32 %s285, 1
      %p289 = scmp.eq.s32.totalorder %s33, 1
      %p290 = scmp.ne.s32.totalorder %s285, %s287
      %p291 = scmp.eq.s32.totalorder %s33, 0
      %p292 = por %p290, %p291
      %p293 = scmp.ne.s32.totalorder %s285, %s287
      %p294 = scmp.eq.s32.totalorder %s38, 1
      %p295 = por %p293, %p294
      %p296 = scmp.ne.s32.totalorder %s287, %s288
      %p297 = scmp.eq.s32.totalorder %s38, 0
      %p298 = por %p296, %p297
      %p299 = scmp.ne.s32.totalorder %s287, %s288
      %p300 = scmp.eq.s32.totalorder %s39, 1
      %p301 = por %p299, %p300
      %p303 = scmp.ne.s32.totalorder %s288, %s302
      %p304 = scmp.eq.s32.totalorder %s39, 0
      %p305 = por %p303, %p304
      %s307 = sadd.s32 %s306, 1
      %p310 = scmp.eq.s32.totalorder %s33, 1
      %p311 = scmp.ne.s32.totalorder %s306, %s308
      %p312 = scmp.eq.s32.totalorder %s33, 0
      %p313 = por %p311, %p312
      %p314 = scmp.ne.s32.totalorder %s306, %s308
      %p315 = scmp.eq.s32.totalorder %s38, 1
      %p316 = por %p314, %p315
      %p317 = scmp.ne.s32.totalorder %s308, %s309
      %p318 = scmp.eq.s32.totalorder %s38, 0
      %p319 = por %p317, %p318
      %p320 = scmp.ne.s32.totalorder %s308, %s309
      %p321 = scmp.eq.s32.totalorder %s39, 1
      %p322 = por %p320, %p321
      %p324 = scmp.ne.s32.totalorder %s309, %s323
      %p325 = scmp.eq.s32.totalorder %s39, 0
      %p326 = por %p324, %p325
      %s328 = sadd.s32 %s327, 1
      %p331 = scmp.eq.s32.totalorder %s33, 1
      %p332 = scmp.ne.s32.totalorder %s327, %s329
      %p333 = scmp.eq.s32.totalorder %s33, 0
      %p334 = por %p332, %p333
      %p335 = scmp.ne.s32.totalorder %s327, %s329
      %p336 = scmp.eq.s32.totalorder %s38, 1
      %p337 = por %p335, %p336
      %p338 = scmp.ne.s32.totalorder %s329, %s330
      %p339 = scmp.eq.s32.totalorder %s38, 0
      %p340 = por %p338, %p339
      %p341 = scmp.ne.s32.totalorder %s329, %s330
      %p342 = scmp.eq.s32.totalorder %s39, 1
      %p343 = por %p341, %p342
      %p345 = scmp.ne.s32.totalorder %s330, %s344
      %p346 = scmp.eq.s32.totalorder %s39, 0
      %p347 = por %p345, %p346
      %s349 = sadd.s32 %s348, 1
      %p352 = scmp.eq.s32.totalorder %s33, 1
      %p353 = scmp.ne.s32.totalorder %s348, %s350
      %p354 = scmp.eq.s32.totalorder %s33, 0
      %p355 = por %p353, %p354
      %p356 = scmp.ne.s32.totalorder %s348, %s350
      %p357 = scmp.eq.s32.totalorder %s38, 1
      %p358 = por %p356, %p357
      %p359 = scmp.ne.s32.totalorder %s350, %s351
      %p360 = scmp.eq.s32.totalorder %s38, 0
      %p361 = por %p359, %p360
      %p362 = scmp.ne.s32.totalorder %s350, %s351
      %p363 = scmp.eq.s32.totalorder %s39, 1
      %p364 = por %p362, %p363
      %p366 = scmp.ne.s32.totalorder %s351, %s365
      %p367 = scmp.eq.s32.totalorder %s39, 0
      %p368 = por %p366, %p367
      %s370 = sadd.s32 %s369, 1
      %p373 = scmp.eq.s32.totalorder %s33, 1
      %p374 = scmp.ne.s32.totalorder %s369, %s371
      %p375 = scmp.eq.s32.totalorder %s33, 0
      %p376 = por %p374, %p375
      %p377 = scmp.ne.s32.totalorder %s369, %s371
      %p378 = scmp.eq.s32.totalorder %s38, 1
      %p379 = por %p377, %p378
      %p380 = scmp.ne.s32.totalorder %s371, %s372
      %p381 = scmp.eq.s32.totalorder %s38, 0
      %p382 = por %p380, %p381
      %p383 = scmp.ne.s32.totalorder %s371, %s372
      %p384 = scmp.eq.s32.totalorder %s39, 1
      %p385 = por %p383, %p384
      %p387 = scmp.ne.s32.totalorder %s372, %s386
      %p388 = scmp.eq.s32.totalorder %s39, 0
      %p389 = por %p387, %p388
      %s391 = sadd.s32 %s390, 1
      %p394 = scmp.eq.s32.totalorder %s33, 1
      %p395 = scmp.ne.s32.totalorder %s390, %s392
      %p396 = scmp.eq.s32.totalorder %s33, 0
      %p397 = por %p395, %p396
      %p398 = scmp.ne.s32.totalorder %s390, %s392
      %p399 = scmp.eq.s32.totalorder %s38, 1
      %p400 = por %p398, %p399
      %p401 = scmp.ne.s32.totalorder %s392, %s393
      %p402 = scmp.eq.s32.totalorder %s38, 0
      %p403 = por %p401, %p402
      %p404 = scmp.ne.s32.totalorder %s392, %s393
      %p405 = scmp.eq.s32.totalorder %s39, 1
      %p406 = por %p404, %p405
      %p408 = scmp.ne.s32.totalorder %s393, %s407
      %p409 = scmp.eq.s32.totalorder %s39, 0
      %p410 = por %p408, %p409
      %s411 = ssub.s32 %s40, %s52
      %s412 = ssub.s32 %s41, %s48
      %s413 = sor.u32 %s411, %s412
      %p414 = scmp.eq.s32.totalorder %s413, 0
      %s416 = sadd.s32 %s415, 1
      %s417 = scalar_select %p414, %s415, %s416
      %p420 = pneg %p414
      %p421 = scmp.eq.s32.totalorder %s33, 1
      %p422 = por %p420, %p421
      %p423 = scmp.ne.s32.totalorder %s415, %s418
      %p424 = scmp.eq.s32.totalorder %s33, 0
      %p425 = por %p423, %p424
      %p426 = scmp.ne.s32.totalorder %s415, %s418
      %p427 = scmp.eq.s32.totalorder %s38, 1
      %p428 = por %p426, %p427
      %p429 = scmp.ne.s32.totalorder %s418, %s419
      %p430 = scmp.eq.s32.totalorder %s38, 0
      %p431 = por %p429, %p430
      %p432 = scmp.ne.s32.totalorder %s418, %s419
      %p433 = scmp.eq.s32.totalorder %s39, 1
      %p434 = por %p432, %p433
      %p436 = scmp.ne.s32.totalorder %s419, %s435
      %p437 = scmp.eq.s32.totalorder %s39, 0
      %p438 = por %p436, %p437
      %p439 = scmp.le.s32.totalorder 1, %s33
      %p440 = scmp.lt.s32.totalorder %s33, 3
      %p441 = pnand %p439, %p440
      %p442 = pneg %p441
      // Predicated region
      $region9: #{tpu_custom_call.1} parent=5 // pred_check
        _
      $region10: #{tpu_custom_call.1} parent=5 // pred_check_branch
        %444 = sbr.rel (%p441) target = $region12
      $region11: #{tpu_custom_call.1} parent=5 // pred_region
        %s445 = ssub.s32 %s33, 1
        // Predicated region
        $region13: #{tpu_custom_call.1} parent=11 // pred_check
          %p446 = pneg %p172
        $region14: #{tpu_custom_call.1} parent=11 // pred_check_branch
          %448 = sbr.rel (%p446) target = $region16
        $region15: #{tpu_custom_call.1} parent=11 // pred_region
          _
        $region16: #{tpu_custom_call.1} parent=11 // pred_fallthru
          _
        // Predicated region
        $region17: #{tpu_custom_call.1} parent=11 // pred_check
          %p449 = pneg %p193
        $region18: #{tpu_custom_call.1} parent=11 // pred_check_branch
          %451 = sbr.rel (%p449) target = $region20
        $region19: #{tpu_custom_call.1} parent=11 // pred_region
          %s453 = ssub.s32 16, 16
          %454 = vsyncadd [#allocation7], %s453
          %s456 = sshll.u32 [#allocation8], 4
          %s457 = int_to_ptr.vmem [resolvable:$true] %s456
          %459 = dma.hbm_to_vmem [thread:$0]  %s5, 16, %s457, [#allocation7]
        $region20: #{tpu_custom_call.1} parent=11 // pred_fallthru
          _
        // Predicated region
        $region21: #{tpu_custom_call.1} parent=11 // pred_check
          %p460 = pneg %p214
        $region22: #{tpu_custom_call.1} parent=11 // pred_check_branch
          %462 = sbr.rel (%p460) target = $region24
        $region23: #{tpu_custom_call.1} parent=11 // pred_region
          _
        $region24: #{tpu_custom_call.1} parent=11 // pred_fallthru
          _
        // Predicated region
        $region25: #{tpu_custom_call.1} parent=11 // pred_check
          %p463 = pneg %p235
        $region26: #{tpu_custom_call.1} parent=11 // pred_check_branch
          %465 = sbr.rel (%p463) target = $region28
        $region27: #{tpu_custom_call.1} parent=11 // pred_region
          %s467 = ssub.s32 16, 16
          %468 = vsyncadd [#allocation10], %s467
          %s470 = sshll.u32 [#allocation9], 4
          %s471 = int_to_ptr.vmem [resolvable:$true] %s470
          %473 = dma.hbm_to_vmem [thread:$0]  %s7, 16, %s471, [#allocation10]
        $region28: #{tpu_custom_call.1} parent=11 // pred_fallthru
          _
        // Predicated region
        $region29: #{tpu_custom_call.1} parent=11 // pred_check
          %p474 = pneg %p256
        $region30: #{tpu_custom_call.1} parent=11 // pred_check_branch
          %476 = sbr.rel (%p474) target = $region32
        $region31: #{tpu_custom_call.1} parent=11 // pred_region
          %s478 = ssub.s32 16, 16
          %479 = vsyncadd [#allocation10], %s478
          %s481 = sshll.u32 [#allocation11], 4
          %s482 = int_to_ptr.vmem [resolvable:$true] %s481
          %484 = dma.hbm_to_vmem [thread:$0]  %s8, 16, %s482, [#allocation10]
        $region32: #{tpu_custom_call.1} parent=11 // pred_fallthru
          _
        // Predicated region
        $region33: #{tpu_custom_call.1} parent=11 // pred_check
          %p485 = pneg %p277
        $region34: #{tpu_custom_call.1} parent=11 // pred_check_branch
          %487 = sbr.rel (%p485) target = $region36
        $region35: #{tpu_custom_call.1} parent=11 // pred_region
          %s489 = ssub.s32 16, 16
          %490 = vsyncadd [#allocation13], %s489
          %s492 = sshll.u32 [#allocation12], 4
          %s493 = int_to_ptr.vmem [resolvable:$true] %s492
          %495 = dma.hbm_to_vmem [thread:$0]  %s9, 16, %s493, [#allocation13]
        $region36: #{tpu_custom_call.1} parent=11 // pred_fallthru
          _
        // Predicated region
        $region37: #{tpu_custom_call.1} parent=11 // pred_check
          %p496 = pneg %p298
        $region38: #{tpu_custom_call.1} parent=11 // pred_check_branch
          %498 = sbr.rel (%p496) target = $region40
        $region39: #{tpu_custom_call.1} parent=11 // pred_region
          _
        $region40: #{tpu_custom_call.1} parent=11 // pred_fallthru
          _
        // Predicated region
        $region41: #{tpu_custom_call.1} parent=11 // pred_check
          %p499 = pneg %p319
        $region42: #{tpu_custom_call.1} parent=11 // pred_check_branch
          %501 = sbr.rel (%p499) target = $region44
        $region43: #{tpu_custom_call.1} parent=11 // pred_region
          _
        $region44: #{tpu_custom_call.1} parent=11 // pred_fallthru
          _
        // Predicated region
        $region45: #{tpu_custom_call.1} parent=11 // pred_check
          %p502 = pneg %p340
        $region46: #{tpu_custom_call.1} parent=11 // pred_check_branch
          %504 = sbr.rel (%p502) target = $region48
        $region47: #{tpu_custom_call.1} parent=11 // pred_region
          _
        $region48: #{tpu_custom_call.1} parent=11 // pred_fallthru
          _
        // Predicated region
        $region49: #{tpu_custom_call.1} parent=11 // pred_check
          %p505 = pneg %p361
        $region50: #{tpu_custom_call.1} parent=11 // pred_check_branch
          %507 = sbr.rel (%p505) target = $region52
        $region51: #{tpu_custom_call.1} parent=11 // pred_region
          _
        $region52: #{tpu_custom_call.1} parent=11 // pred_fallthru
          _
        // Predicated region
        $region53: #{tpu_custom_call.1} parent=11 // pred_check
          %p508 = pneg %p382
        $region54: #{tpu_custom_call.1} parent=11 // pred_check_branch
          %510 = sbr.rel (%p508) target = $region56
        $region55: #{tpu_custom_call.1} parent=11 // pred_region
          _
        $region56: #{tpu_custom_call.1} parent=11 // pred_fallthru
          _
        // Predicated region
        $region57: #{tpu_custom_call.1} parent=11 // pred_check
          %p511 = pneg %p403
        $region58: #{tpu_custom_call.1} parent=11 // pred_check_branch
          %513 = sbr.rel (%p511) target = $region60
        $region59: #{tpu_custom_call.1} parent=11 // pred_region
          _
        $region60: #{tpu_custom_call.1} parent=11 // pred_fallthru
          _
      $region12: #{tpu_custom_call.1} parent=5 // pred_fallthru
        _
      %p514 = scmp.lt.s32.totalorder %s33, 2
      // Predicated region
      $region61: #{tpu_custom_call.1} parent=5 // pred_check
        %p515 = pneg %p514
      $region62: #{tpu_custom_call.1} parent=5 // pred_check_branch
        %517 = sbr.rel (%p515) target = $region64
      $region63: #{tpu_custom_call.1} parent=5 // pred_region
        // Predicated region
        $region65: #{tpu_custom_call.1} parent=63 // pred_check
          %p518 = pneg %p67
        $region66: #{tpu_custom_call.1} parent=63 // pred_check_branch
          %520 = sbr.rel (%p518) target = $region68
        $region67: #{tpu_custom_call.1} parent=63 // pred_region
          %p521 = scmp.lt.s32.totalorder %s40, 1
          %s522 = scalar_select %p521, %s40, 1
          %p523 = scmp.lt.s32.totalorder %s41, 0
          %s524 = scalar_select %p523, %s41, 0
          %s525 = sadd.s32 %s524, %s522
          %s526 = smul.addr %s525, 8
          %s527 = scalar_lea.vmem %s0, %s526
        $region68: #{tpu_custom_call.1} parent=63 // pred_fallthru
          _
        // Predicated region
        $region69: #{tpu_custom_call.1} parent=63 // pred_check
          %p528 = pneg %p93
        $region70: #{tpu_custom_call.1} parent=63 // pred_check_branch
          %530 = sbr.rel (%p528) target = $region72
        $region71: #{tpu_custom_call.1} parent=63 // pred_region
          %s531 = sand.u32 %s83, 1
          %s532 = scalar_lea.sflag [#allocation4], %s531
          %s533 = sand.u32 %s83, 1
          %s534 = smul.addr %s533, 4
          %s535 = scalar_lea.vmem [#allocation3], %s534
          %s537 = ssub.s32 64, 64
          %538 = vsyncadd %s532, %s537
          %s539 = smul.addr %s40, 64
          %s540 = scalar_lea.hbm %s1, %s539
          %s542 = sshll.u32 %s535, 4
          %s543 = int_to_ptr.vmem [resolvable:$true] %s542
          %545 = dma.hbm_to_vmem [thread:$0]  %s540, 64, %s543, %s532
        $region72: #{tpu_custom_call.1} parent=63 // pred_fallthru
          _
        // Predicated region
        $region73: #{tpu_custom_call.1} parent=63 // pred_check
          %p546 = pneg %p119
        $region74: #{tpu_custom_call.1} parent=63 // pred_check_branch
          %548 = sbr.rel (%p546) target = $region76
        $region75: #{tpu_custom_call.1} parent=63 // pred_region
          %s549 = sand.u32 %s33, 1
          %s550 = scalar_lea.sflag [#allocation7], %s549
          %s551 = sand.u32 %s109, 1
          %s552 = smul.addr %s551, 4
          %s553 = scalar_lea.vmem [#allocation6], %s552
          %s555 = ssub.s32 64, 64
          %556 = vsyncadd %s550, %s555
          %s557 = smul.addr %s40, 64
          %s558 = scalar_lea.hbm %s2, %s557
          %s560 = sshll.u32 %s553, 4
          %s561 = int_to_ptr.vmem [resolvable:$true] %s560
          %563 = dma.hbm_to_vmem [thread:$0]  %s558, 64, %s561, %s550
        $region76: #{tpu_custom_call.1} parent=63 // pred_fallthru
          _
        // Predicated region
        $region77: #{tpu_custom_call.1} parent=63 // pred_check
          %p564 = pneg %p145
        $region78: #{tpu_custom_call.1} parent=63 // pred_check_branch
          %566 = sbr.rel (%p564) target = $region80
        $region79: #{tpu_custom_call.1} parent=63 // pred_region
          %p567 = scmp.lt.s32.totalorder %s40, 1
          %s568 = scalar_select %p567, %s40, 1
          %s569 = scalar_lea.vmem %s3, %s568
        $region80: #{tpu_custom_call.1} parent=63 // pred_fallthru
          _
      $region64: #{tpu_custom_call.1} parent=5 // pred_fallthru
        _
      %p570 = scmp.le.s32.totalorder 1, %s33
      %p571 = scmp.lt.s32.totalorder %s33, 3
      %p572 = pnand %p570, %p571
      %p573 = pneg %p572
      // Predicated region
      $region81: #{tpu_custom_call.1} parent=5 // pred_check
        _
      $region82: #{tpu_custom_call.1} parent=5 // pred_check_branch
        %575 = sbr.rel (%p572) target = $region84
      $region83: #{tpu_custom_call.1} parent=5 // pred_region
        %s576 = ssub.s32 %s33, 1
        %s577 = sand.u32 %s86, 1
        %s578 = scalar_lea.sflag [#allocation4], %s577
        %s579 = sand.u32 %s86, 1
        %s580 = smul.addr %s579, 4
        %s581 = scalar_lea.vmem [#allocation3], %s580
        // Predicated region
        $region85: #{tpu_custom_call.1} parent=83 // pred_check
          %p582 = pneg %p99
        $region86: #{tpu_custom_call.1} parent=83 // pred_check_branch
          %584 = sbr.rel (%p582) target = $region88
        $region87: #{tpu_custom_call.1} parent=83 // pred_region
          %585 = dma.done %s578, 64
        $region88: #{tpu_custom_call.1} parent=83 // pred_fallthru
          _
        %s586 = sand.u32 %s38, 1
        %s587 = scalar_lea.sflag [#allocation7], %s586
        %s588 = sand.u32 %s112, 1
        %s589 = smul.addr %s588, 4
        %s590 = scalar_lea.vmem [#allocation6], %s589
        // Predicated region
        $region89: #{tpu_custom_call.1} parent=83 // pred_check
          %p591 = pneg %p125
        $region90: #{tpu_custom_call.1} parent=83 // pred_check_branch
          %593 = sbr.rel (%p591) target = $region92
        $region91: #{tpu_custom_call.1} parent=83 // pred_region
          %594 = dma.done %s587, 64
        $region92: #{tpu_custom_call.1} parent=83 // pred_fallthru
          _
        // Predicated region
        $region93: #{tpu_custom_call.1} parent=83 // pred_check
          %p595 = pneg %p193
        $region94: #{tpu_custom_call.1} parent=83 // pred_check_branch
          %597 = sbr.rel (%p595) target = $region96
        $region95: #{tpu_custom_call.1} parent=83 // pred_region
          %598 = dma.done [#allocation7], 16
        $region96: #{tpu_custom_call.1} parent=83 // pred_fallthru
          _
        // Predicated region
        $region97: #{tpu_custom_call.1} parent=83 // pred_check
          %p599 = pneg %p235
        $region98: #{tpu_custom_call.1} parent=83 // pred_check_branch
          %601 = sbr.rel (%p599) target = $region100
        $region99: #{tpu_custom_call.1} parent=83 // pred_region
          %602 = dma.done [#allocation10], 16
        $region100: #{tpu_custom_call.1} parent=83 // pred_fallthru
          _
        // Predicated region
        $region101: #{tpu_custom_call.1} parent=83 // pred_check
          %p603 = pneg %p256
        $region102: #{tpu_custom_call.1} parent=83 // pred_check_branch
          %605 = sbr.rel (%p603) target = $region104
        $region103: #{tpu_custom_call.1} parent=83 // pred_region
          %606 = dma.done [#allocation10], 16
        $region104: #{tpu_custom_call.1} parent=83 // pred_fallthru
          _
        // Predicated region
        $region105: #{tpu_custom_call.1} parent=83 // pred_check
          %p607 = pneg %p277
        $region106: #{tpu_custom_call.1} parent=83 // pred_check_branch
          %609 = sbr.rel (%p607) target = $region108
        $region107: #{tpu_custom_call.1} parent=83 // pred_region
          %610 = dma.done [#allocation13], 16
        $region108: #{tpu_custom_call.1} parent=83 // pred_fallthru
          _
        %p611 = scmp.lt.s32.totalorder %s42, 1
        %s612 = scalar_select %p611, %s42, 1
        %p613 = scmp.lt.s32.totalorder %s43, 0
        %s614 = scalar_select %p613, %s43, 0
        %s615 = sadd.s32 %s614, %s612
        %s616 = smul.addr %s615, 8
        %s617 = scalar_lea.vmem %s0, %s616
        %p618 = pneg %p73
        %p619 = pneg %p70
        %s620 = sand.u32 %s86, 1
        %s621 = scalar_lea.sflag [#allocation4], %s620
        %s622 = sand.u32 %s86, 1
        %s623 = smul.addr %s622, 4
        %s624 = scalar_lea.vmem [#allocation3], %s623
        %p625 = pneg %p99
        %p626 = pneg %p96
        %s627 = sand.u32 %s38, 1
        %s628 = scalar_lea.sflag [#allocation7], %s627
        %s629 = sand.u32 %s112, 1
        %s630 = smul.addr %s629, 4
        %s631 = scalar_lea.vmem [#allocation6], %s630
        %p632 = pneg %p125
        %p633 = pneg %p122
        %p634 = scmp.lt.s32.totalorder %s42, 1
        %s635 = scalar_select %p634, %s42, 1
        %s636 = scalar_lea.vmem %s3, %s635
        %p637 = pneg %p151
        %p638 = pneg %p148
        %p639 = pneg %p172
        %p640 = pneg %p169
        %p641 = pneg %p193
        %p642 = pneg %p190
        %p643 = pneg %p214
        %p644 = pneg %p211
        %p645 = pneg %p235
        %p646 = pneg %p232
        %p647 = pneg %p256
        %p648 = pneg %p253
        %p649 = pneg %p277
        %p650 = pneg %p274
        %p651 = pneg %p298
        %p652 = pneg %p295
        %p653 = pneg %p319
        %p654 = pneg %p316
        %p655 = pneg %p340
        %p656 = pneg %p337
        %p657 = pneg %p361
        %p658 = pneg %p358
        %p659 = pneg %p382
        %p660 = pneg %p379
        %p661 = pneg %p403
        %p662 = pneg %p400
        %p663 = pneg %p431
        %p664 = pneg %p428
        %s665 = sand.u32 %s418, 1
        %s666 = scalar_lea.sflag [#allocation5], %s665
        %s667 = sand.u32 %s418, 1
        %s668 = smul.addr %s667, 8
        %s669 = scalar_lea.vmem [#allocation14], %s668
        %p670 = scmp.lt.s32.totalorder %s42, 1
        %s671 = scalar_select %p670, %s42, 1
        %p672 = scmp.lt.s32.totalorder %s43, 0
        %s673 = scalar_select %p672, %s43, 0
        %s674 = sadd.s32 %s673, %s671
        %s675 = smul.addr %s674, 8
        %s676 = scalar_lea.vmem %s0, %s675
        %p677 = scmp.lt.s32.totalorder %s42, 1
        %s678 = scalar_select %p677, %s42, 1
        %s679 = scalar_lea.vmem %s3, %s678
        %v681 = vld [vmem:[%s676] sm:$0xff]
        %v682 = vpack.c.bf16 %v681, %v681
        %v683 = vld [vmem:[%s4] sm:$0xf]
        %v684 = vld [vmem:[%s4 + $0x4] sm:$0xf]
        %v685 = vld [vmem:[%s4 + $0x8] sm:$0xf]
        %v686 = vld [vmem:[%s4 + $0xc] sm:$0xf]
        %v687 = vld [vmem:[#allocation8] sm:$0x1]
        %v689 = vlaneseq
        %v690 = vshrl.u32 %v689, 7
        %v691 = vsub.s32 0, %v690
        %v692 = vrot.slane %v687, %v691
        %v698 = vunpack.c.l.b16 %v683
        %v699 = vunpack.c.l.b16 %v684
        %v700 = vunpack.c.l.b16 %v685
        %v701 = vunpack.c.l.b16 %v686
        %v702 = vpack.c.b16 %v699, %v698
        %v703 = vpack.c.b16 %v701, %v700
        %vm706 = vcmask 261120
        %v708 = vsel %vm706, %v682, 0
        %710 = vmatprep.subr.bf16.mxu0 0
        %711 = vmatpush1.bf16.msra.mxu0 %v702
        %712 = vmatprep.subr.bf16.mxu0 0
        %713 = vmatpush1.bf16.msra.mxu0 %v703
        %714 = vmatprep.subr.bf16.mxu0 0
        %715 = vmatpush1.bf16.msra.mxu0 0
        %716 = vmatprep.subr.bf16.mxu0 0
        %717 = vmatpush1.bf16.msra.mxu0 0
        %718 = vmatprep.subr.bf16.mxu0 0
        %719 = vmatpush1.bf16.msra.mxu0 0
        %720 = vmatprep.subr.bf16.mxu0 0
        %721 = vmatpush1.bf16.msra.mxu0 0
        %722 = vmatprep.subr.bf16.mxu0 0
        %723 = vmatpush1.bf16.msra.mxu0 0
        %724 = vmatprep.subr.bf16.mxu0 0
        %725 = vmatpush1.bf16.msra.mxu0 0
        %726 = vmatprep.subr.bf16.mxu0 0
        %727 = vmatpush1.bf16.msra.mxu0 0
        %728 = vmatprep.subr.bf16.mxu0 0
        %729 = vmatpush1.bf16.msra.mxu0 0
        %730 = vmatprep.subr.bf16.mxu0 0
        %731 = vmatpush1.bf16.msra.mxu0 0
        %732 = vmatprep.subr.bf16.mxu0 0
        %733 = vmatpush1.bf16.msra.mxu0 0
        %734 = vmatprep.subr.bf16.mxu0 0
        %735 = vmatpush1.bf16.msra.mxu0 0
        %736 = vmatprep.subr.bf16.mxu0 0
        %737 = vmatpush1.bf16.msra.mxu0 0
        %738 = vmatprep.subr.bf16.mxu0 0
        %739 = vmatpush1.bf16.msra.mxu0 0
        %740 = vmatprep.subr.bf16.mxu0 0
        %741 = vmatpush1.bf16.msra.mxu0 0
        %742 = vmatprep.mubr.bf16.mxu0 0
        %743 = vmatmul.mubr.bf16.gmra.mrb[0].mxu0 %v708
        %v744 = vpop.f32.mrb[0].mxu0
        %v745 = vadd.f32 %v692, %v744
        %v746 = vpop.f32.mrb[0].mxu0
        %v747 = vpop.f32.mrb[0].mxu0
        %v748 = vpop.f32.mrb[0].mxu0
        %749 = vdwg.mxu0
        %v750 = vmul.f32 %v745, 0.35355338
        %v751 = vpack.c.bf16 %v750, %v750
        %v752 = vld [vmem:[%s679] sm:$0x1]
        %v754 = vlaneseq
        %v755 = vshrl.u32 %v754, 7
        %v756 = vsub.s32 0, %v755
        %v757 = vrot.slane %v752, %v756
        %v759 = vld [vmem:[%s581] sm:$0xf]
        %v760 = vld [vmem:[%s590] sm:$0xf]
        %vm761 = vcmask 64512
        %v763 = vsel %vm761, %v751, 0
        %v766 = vsel %vm761, %v759, 0
        %768 = vmatprep.subr.bf16.mxu0 0
        %769 = vmatpush1.bf16.xpose.msra.mxu0 %v766
        %770 = vmatprep.subr.bf16.mxu0 0
        %771 = vmatpush1.bf16.xpose.msra.mxu0 0
        %772 = vmatprep.subr.bf16.mxu0 0
        %773 = vmatpush1.bf16.xpose.msra.mxu0 0
        %774 = vmatprep.subr.bf16.mxu0 0
        %775 = vmatpush1.bf16.xpose.msra.mxu0 0
        %776 = vmatprep.subr.bf16.mxu0 0
        %777 = vmatpush1.bf16.xpose.msra.mxu0 0
        %778 = vmatprep.subr.bf16.mxu0 0
        %779 = vmatpush1.bf16.xpose.msra.mxu0 0
        %780 = vmatprep.subr.bf16.mxu0 0
        %781 = vmatpush1.bf16.xpose.msra.mxu0 0
        %782 = vmatprep.subr.bf16.mxu0 0
        %783 = vmatpush1.bf16.xpose.msra.mxu0 0
        %784 = vmatprep.subr.bf16.mxu0 0
        %785 = vmatpush1.bf16.xpose.msra.mxu0 0
        %786 = vmatprep.subr.bf16.mxu0 0
        %787 = vmatpush1.bf16.xpose.msra.mxu0 0
        %788 = vmatprep.subr.bf16.mxu0 0
        %789 = vmatpush1.bf16.xpose.msra.mxu0 0
        %790 = vmatprep.subr.bf16.mxu0 0
        %791 = vmatpush1.bf16.xpose.msra.mxu0 0
        %792 = vmatprep.subr.bf16.mxu0 0
        %793 = vmatpush1.bf16.xpose.msra.mxu0 0
        %794 = vmatprep.subr.bf16.mxu0 0
        %795 = vmatpush1.bf16.xpose.msra.mxu0 0
        %796 = vmatprep.subr.bf16.mxu0 0
        %797 = vmatpush1.bf16.xpose.msra.mxu0 0
        %798 = vmatprep.subr.bf16.mxu0 0
        %799 = vmatpush1.bf16.xpose.msra.mxu0 0
        %800 = vmatprep.mubr.bf16.mxu0 0
        %801 = vmatmul.mubr.bf16.gmra.mrb[0].mxu0 %v763
        %v802 = vpop.f32.mrb[0].mxu0
        %v803 = vadd.f32 %v757, %v802
        %v804 = vpop.f32.mrb[0].mxu0
        %v805 = vpop.f32.mrb[0].mxu0
        %v806 = vpop.f32.mrb[0].mxu0
        %807 = vdwg.mxu0
        %v808 = vsel %vm761, %v803, -inf
        %809 = vmax.xlane.f32.xlu0 %v808
        %v810 = vpop.xlane.xlu0 %809
        %v811 = vsub.f32 %v803, %v810
        %v812 = vmul.f32 %v811, 1.442695
        %v813 = vpow.pop %v812
        %v814 = vsel %vm761, %v813, 0.0
        %815 = vadd.xlane.f32.xlu0 %v814
        %v816 = vpop.xlane.xlu0 %815
        %v817 = vrcp.pop %v816
        %v818 = vmul.f32 %v813, %v817
        %v819 = vpack.c.bf16 %v818, %v818
        %v821 = vsel %vm761, %v819, 0
        %vm823 = vcmask 1043456
        %v825 = vsel %vm823, %v760, 0
        %827 = vmatprep.subr.bf16.mxu0 0
        %828 = vmatpush1.bf16.msra.mxu0 %v825
        %829 = vmatprep.subr.bf16.mxu0 0
        %830 = vmatpush1.bf16.msra.mxu0 0
        %831 = vmatprep.subr.bf16.mxu0 0
        %832 = vmatpush1.bf16.msra.mxu0 0
        %833 = vmatprep.subr.bf16.mxu0 0
        %834 = vmatpush1.bf16.msra.mxu0 0
        %835 = vmatprep.subr.bf16.mxu0 0
        %836 = vmatpush1.bf16.msra.mxu0 0
        %837 = vmatprep.subr.bf16.mxu0 0
        %838 = vmatpush1.bf16.msra.mxu0 0
        %839 = vmatprep.subr.bf16.mxu0 0
        %840 = vmatpush1.bf16.msra.mxu0 0
        %841 = vmatprep.subr.bf16.mxu0 0
        %842 = vmatpush1.bf16.msra.mxu0 0
        %843 = vmatprep.subr.bf16.mxu0 0
        %844 = vmatpush1.bf16.msra.mxu0 0
        %845 = vmatprep.subr.bf16.mxu0 0
        %846 = vmatpush1.bf16.msra.mxu0 0
        %847 = vmatprep.subr.bf16.mxu0 0
        %848 = vmatpush1.bf16.msra.mxu0 0
        %849 = vmatprep.subr.bf16.mxu0 0
        %850 = vmatpush1.bf16.msra.mxu0 0
        %851 = vmatprep.subr.bf16.mxu0 0
        %852 = vmatpush1.bf16.msra.mxu0 0
        %853 = vmatprep.subr.bf16.mxu0 0
        %854 = vmatpush1.bf16.msra.mxu0 0
        %855 = vmatprep.subr.bf16.mxu0 0
        %856 = vmatpush1.bf16.msra.mxu0 0
        %857 = vmatprep.subr.bf16.mxu0 0
        %858 = vmatpush1.bf16.msra.mxu0 0
        %859 = vmatprep.mubr.bf16.mxu0 0
        %860 = vmatmul.mubr.bf16.gmra.mrb[0].mxu0 %v821
        %v861 = vpop.f32.mrb[0].mxu0
        %v862 = vadd.f32 0.0, %v861
        %v863 = vpop.f32.mrb[0].mxu0
        %v864 = vpop.f32.mrb[0].mxu0
        %v865 = vpop.f32.mrb[0].mxu0
        %866 = vdwg.mxu0
        %v867 = vpack.c.bf16 %v862, %v862
        %v868 = vld [vmem:[%s6] sm:$0xf]
        %870 = vrot.lane.b32.xlu0 %v751, 120
        %v871 = vpop.permute.xlu0 %870
        %v873 = vunpack.c.l.b16 %v759
        %v874 = vpack.c.b16 %v873, %v873
        %875 = vrot.lane.b32.xlu0 %v874, 120
        %v876 = vpop.permute.xlu0 %875
        %v878 = vsel %vm761, %v871, 0
        %v881 = vsel %vm761, %v876, 0
        %883 = vmatprep.subr.bf16.mxu0 0
        %884 = vmatpush1.bf16.xpose.msra.mxu0 %v881
        %885 = vmatprep.subr.bf16.mxu0 0
        %886 = vmatpush1.bf16.xpose.msra.mxu0 0
        %887 = vmatprep.subr.bf16.mxu0 0
        %888 = vmatpush1.bf16.xpose.msra.mxu0 0
        %889 = vmatprep.subr.bf16.mxu0 0
        %890 = vmatpush1.bf16.xpose.msra.mxu0 0
        %891 = vmatprep.subr.bf16.mxu0 0
        %892 = vmatpush1.bf16.xpose.msra.mxu0 0
        %893 = vmatprep.subr.bf16.mxu0 0
        %894 = vmatpush1.bf16.xpose.msra.mxu0 0
        %895 = vmatprep.subr.bf16.mxu0 0
        %896 = vmatpush1.bf16.xpose.msra.mxu0 0
        %897 = vmatprep.subr.bf16.mxu0 0
        %898 = vmatpush1.bf16.xpose.msra.mxu0 0
        %899 = vmatprep.subr.bf16.mxu0 0
        %900 = vmatpush1.bf16.xpose.msra.mxu0 0
        %901 = vmatprep.subr.bf16.mxu0 0
        %902 = vmatpush1.bf16.xpose.msra.mxu0 0
        %903 = vmatprep.subr.bf16.mxu0 0
        %904 = vmatpush1.bf16.xpose.msra.mxu0 0
        %905 = vmatprep.subr.bf16.mxu0 0
        %906 = vmatpush1.bf16.xpose.msra.mxu0 0
        %907 = vmatprep.subr.bf16.mxu0 0
        %908 = vmatpush1.bf16.xpose.msra.mxu0 0
        %909 = vmatprep.subr.bf16.mxu0 0
        %910 = vmatpush1.bf16.xpose.msra.mxu0 0
        %911 = vmatprep.subr.bf16.mxu0 0
        %912 = vmatpush1.bf16.xpose.msra.mxu0 0
        %913 = vmatprep.subr.bf16.mxu0 0
        %914 = vmatpush1.bf16.xpose.msra.mxu0 0
        %915 = vmatprep.mubr.bf16.mxu0 0
        %916 = vmatmul.mubr.bf16.gmra.mrb[0].mxu0 %v878
        %v917 = vpop.f32.mrb[0].mxu0
        %v918 = vadd.f32 %v757, %v917
        %v919 = vpop.f32.mrb[0].mxu0
        %v920 = vpop.f32.mrb[0].mxu0
        %v921 = vpop.f32.mrb[0].mxu0
        %922 = vdwg.mxu0
        %v923 = vsel %vm761, %v918, -inf
        %924 = vmax.xlane.f32.xlu0 %v923
        %v925 = vpop.xlane.xlu0 %924
        %v926 = vsub.f32 %v918, %v925
        %v927 = vmul.f32 %v926, 1.442695
        %v928 = vpow.pop %v927
        %v929 = vsel %vm761, %v928, 0.0
        %930 = vadd.xlane.f32.xlu0 %v929
        %v931 = vpop.xlane.xlu0 %930
        %v932 = vrcp.pop %v931
        %v933 = vmul.f32 %v928, %v932
        %v934 = vpack.c.bf16 %v933, %v933
        %v936 = vunpack.c.l.b16 %v760
        %v937 = vpack.c.b16 %v936, %v936
        %938 = vrot.lane.b32.xlu0 %v937, 120
        %v939 = vpop.permute.xlu0 %938
        %v941 = vsel %vm761, %v934, 0
        %v944 = vsel %vm823, %v939, 0
        %946 = vmatprep.subr.bf16.mxu0 0
        %947 = vmatpush1.bf16.msra.mxu0 %v944
        %948 = vmatprep.subr.bf16.mxu0 0
        %949 = vmatpush1.bf16.msra.mxu0 0
        %950 = vmatprep.subr.bf16.mxu0 0
        %951 = vmatpush1.bf16.msra.mxu0 0
        %952 = vmatprep.subr.bf16.mxu0 0
        %953 = vmatpush1.bf16.msra.mxu0 0
        %954 = vmatprep.subr.bf16.mxu0 0
        %955 = vmatpush1.bf16.msra.mxu0 0
        %956 = vmatprep.subr.bf16.mxu0 0
        %957 = vmatpush1.bf16.msra.mxu0 0
        %958 = vmatprep.subr.bf16.mxu0 0
        %959 = vmatpush1.bf16.msra.mxu0 0
        %960 = vmatprep.subr.bf16.mxu0 0
        %961 = vmatpush1.bf16.msra.mxu0 0
        %962 = vmatprep.subr.bf16.mxu0 0
        %963 = vmatpush1.bf16.msra.mxu0 0
        %964 = vmatprep.subr.bf16.mxu0 0
        %965 = vmatpush1.bf16.msra.mxu0 0
        %966 = vmatprep.subr.bf16.mxu0 0
        %967 = vmatpush1.bf16.msra.mxu0 0
        %968 = vmatprep.subr.bf16.mxu0 0
        %969 = vmatpush1.bf16.msra.mxu0 0
        %970 = vmatprep.subr.bf16.mxu0 0
        %971 = vmatpush1.bf16.msra.mxu0 0
        %972 = vmatprep.subr.bf16.mxu0 0
        %973 = vmatpush1.bf16.msra.mxu0 0
        %974 = vmatprep.subr.bf16.mxu0 0
        %975 = vmatpush1.bf16.msra.mxu0 0
        %976 = vmatprep.subr.bf16.mxu0 0
        %977 = vmatpush1.bf16.msra.mxu0 0
        %978 = vmatprep.mubr.bf16.mxu0 0
        %979 = vmatmul.mubr.bf16.gmra.mrb[0].mxu0 %v941
        %v980 = vpop.f32.mrb[0].mxu0
        %v981 = vadd.f32 0.0, %v980
        %v982 = vpop.f32.mrb[0].mxu0
        %v983 = vpop.f32.mrb[0].mxu0
        %v984 = vpop.f32.mrb[0].mxu0
        %985 = vdwg.mxu0
        %v986 = vpack.c.bf16 %v981, %v981
        %s987 = scalar_lea.vmem %s6, 4
        %v988 = vld [vmem:[%s987] sm:$0xf]
        %v990 = vsel %vm761, %v986, 0
        %v993 = vsel %vm823, %v988, 0
        %995 = vmatprep.subr.bf16.mxu0 0
        %996 = vmatpush1.bf16.msra.mxu0 %v993
        %997 = vmatprep.subr.bf16.mxu0 0
        %998 = vmatpush1.bf16.msra.mxu0 0
        %999 = vmatprep.subr.bf16.mxu0 0
        %1000 = vmatpush1.bf16.msra.mxu0 0
        %1001 = vmatprep.subr.bf16.mxu0 0
        %1002 = vmatpush1.bf16.msra.mxu0 0
        %1003 = vmatprep.subr.bf16.mxu0 0
        %1004 = vmatpush1.bf16.msra.mxu0 0
        %1005 = vmatprep.subr.bf16.mxu0 0
        %1006 = vmatpush1.bf16.msra.mxu0 0
        %1007 = vmatprep.subr.bf16.mxu0 0
        %1008 = vmatpush1.bf16.msra.mxu0 0
        %1009 = vmatprep.subr.bf16.mxu0 0
        %1010 = vmatpush1.bf16.msra.mxu0 0
        %1011 = vmatprep.subr.bf16.mxu0 0
        %1012 = vmatpush1.bf16.msra.mxu0 0
        %1013 = vmatprep.subr.bf16.mxu0 0
        %1014 = vmatpush1.bf16.msra.mxu0 0
        %1015 = vmatprep.subr.bf16.mxu0 0
        %1016 = vmatpush1.bf16.msra.mxu0 0
        %1017 = vmatprep.subr.bf16.mxu0 0
        %1018 = vmatpush1.bf16.msra.mxu0 0
        %1019 = vmatprep.subr.bf16.mxu0 0
        %1020 = vmatpush1.bf16.msra.mxu0 0
        %1021 = vmatprep.subr.bf16.mxu0 0
        %1022 = vmatpush1.bf16.msra.mxu0 0
        %1023 = vmatprep.subr.bf16.mxu0 0
        %1024 = vmatpush1.bf16.msra.mxu0 0
        %1025 = vmatprep.subr.bf16.mxu0 0
        %1026 = vmatpush1.bf16.msra.mxu0 0
        %1027 = vmatprep.mubr.bf16.mxu0 0
        %1028 = vmatmul.mubr.bf16.gmra.mrb[0].mxu0 %v990
        %v1029 = vpop.f32.mrb[0].mxu0
        %v1030 = vadd.f32 0.0, %v1029
        %v1031 = vpop.f32.mrb[0].mxu0
        %v1032 = vpop.f32.mrb[0].mxu0
        %v1033 = vpop.f32.mrb[0].mxu0
        %1034 = vdwg.mxu0
        %v1036 = vsel %vm761, %v867, 0
        %v1039 = vsel %vm823, %v868, 0
        %1041 = vmatprep.subr.bf16.mxu0 0
        %1042 = vmatpush1.bf16.msra.mxu0 %v1039
        %1043 = vmatprep.subr.bf16.mxu0 0
        %1044 = vmatpush1.bf16.msra.mxu0 0
        %1045 = vmatprep.subr.bf16.mxu0 0
        %1046 = vmatpush1.bf16.msra.mxu0 0
        %1047 = vmatprep.subr.bf16.mxu0 0
        %1048 = vmatpush1.bf16.msra.mxu0 0
        %1049 = vmatprep.subr.bf16.mxu0 0
        %1050 = vmatpush1.bf16.msra.mxu0 0
        %1051 = vmatprep.subr.bf16.mxu0 0
        %1052 = vmatpush1.bf16.msra.mxu0 0
        %1053 = vmatprep.subr.bf16.mxu0 0
        %1054 = vmatpush1.bf16.msra.mxu0 0
        %1055 = vmatprep.subr.bf16.mxu0 0
        %1056 = vmatpush1.bf16.msra.mxu0 0
        %1057 = vmatprep.subr.bf16.mxu0 0
        %1058 = vmatpush1.bf16.msra.mxu0 0
        %1059 = vmatprep.subr.bf16.mxu0 0
        %1060 = vmatpush1.bf16.msra.mxu0 0
        %1061 = vmatprep.subr.bf16.mxu0 0
        %1062 = vmatpush1.bf16.msra.mxu0 0
        %1063 = vmatprep.subr.bf16.mxu0 0
        %1064 = vmatpush1.bf16.msra.mxu0 0
        %1065 = vmatprep.subr.bf16.mxu0 0
        %1066 = vmatpush1.bf16.msra.mxu0 0
        %1067 = vmatprep.subr.bf16.mxu0 0
        %1068 = vmatpush1.bf16.msra.mxu0 0
        %1069 = vmatprep.subr.bf16.mxu0 0
        %1070 = vmatpush1.bf16.msra.mxu0 0
        %1071 = vmatprep.subr.bf16.mxu0 0
        %1072 = vmatpush1.bf16.msra.mxu0 0
        %1073 = vmatprep.mubr.bf16.mxu0 0
        %1074 = vmatmul.mubr.bf16.gmra.mrb[0].mxu0 %v1036
        %v1075 = vpop.f32.mrb[0].mxu0
        %v1076 = vadd.f32 %v1030, %v1075
        %v1077 = vpop.f32.mrb[0].mxu0
        %v1078 = vpop.f32.mrb[0].mxu0
        %v1079 = vpop.f32.mrb[0].mxu0
        %1080 = vdwg.mxu0
        %1081 = vrot.lane.b32.xlu0 %v751, 112
        %v1082 = vpop.permute.xlu0 %1081
        %1083 = vrot.lane.b32.xlu0 %v874, 112
        %v1084 = vpop.permute.xlu0 %1083
        %v1086 = vsel %vm761, %v1082, 0
        %v1089 = vsel %vm761, %v1084, 0
        %1091 = vmatprep.subr.bf16.mxu0 0
        %1092 = vmatpush1.bf16.xpose.msra.mxu0 %v1089
        %1093 = vmatprep.subr.bf16.mxu0 0
        %1094 = vmatpush1.bf16.xpose.msra.mxu0 0
        %1095 = vmatprep.subr.bf16.mxu0 0
        %1096 = vmatpush1.bf16.xpose.msra.mxu0 0
        %1097 = vmatprep.subr.bf16.mxu0 0
        %1098 = vmatpush1.bf16.xpose.msra.mxu0 0
        %1099 = vmatprep.subr.bf16.mxu0 0
        %1100 = vmatpush1.bf16.xpose.msra.mxu0 0
        %1101 = vmatprep.subr.bf16.mxu0 0
        %1102 = vmatpush1.bf16.xpose.msra.mxu0 0
        %1103 = vmatprep.subr.bf16.mxu0 0
        %1104 = vmatpush1.bf16.xpose.msra.mxu0 0
        %1105 = vmatprep.subr.bf16.mxu0 0
        %1106 = vmatpush1.bf16.xpose.msra.mxu0 0
        %1107 = vmatprep.subr.bf16.mxu0 0
        %1108 = vmatpush1.bf16.xpose.msra.mxu0 0
        %1109 = vmatprep.subr.bf16.mxu0 0
        %1110 = vmatpush1.bf16.xpose.msra.mxu0 0
        %1111 = vmatprep.subr.bf16.mxu0 0
        %1112 = vmatpush1.bf16.xpose.msra.mxu0 0
        %1113 = vmatprep.subr.bf16.mxu0 0
        %1114 = vmatpush1.bf16.xpose.msra.mxu0 0
        %1115 = vmatprep.subr.bf16.mxu0 0
        %1116 = vmatpush1.bf16.xpose.msra.mxu0 0
        %1117 = vmatprep.subr.bf16.mxu0 0
        %1118 = vmatpush1.bf16.xpose.msra.mxu0 0
        %1119 = vmatprep.subr.bf16.mxu0 0
        %1120 = vmatpush1.bf16.xpose.msra.mxu0 0
        %1121 = vmatprep.subr.bf16.mxu0 0
        %1122 = vmatpush1.bf16.xpose.msra.mxu0 0
        %1123 = vmatprep.mubr.bf16.mxu0 0
        %1124 = vmatmul.mubr.bf16.gmra.mrb[0].mxu0 %v1086
        %v1125 = vpop.f32.mrb[0].mxu0
        %v1126 = vadd.f32 %v757, %v1125
        %v1127 = vpop.f32.mrb[0].mxu0
        %v1128 = vpop.f32.mrb[0].mxu0
        %v1129 = vpop.f32.mrb[0].mxu0
        %1130 = vdwg.mxu0
        %v1131 = vsel %vm761, %v1126, -inf
        %1132 = vmax.xlane.f32.xlu0 %v1131
        %v1133 = vpop.xlane.xlu0 %1132
        %v1134 = vsub.f32 %v1126, %v1133
        %v1135 = vmul.f32 %v1134, 1.442695
        %v1136 = vpow.pop %v1135
        %v1137 = vsel %vm761, %v1136, 0.0
        %1138 = vadd.xlane.f32.xlu0 %v1137
        %v1139 = vpop.xlane.xlu0 %1138
        %v1140 = vrcp.pop %v1139
        %v1141 = vmul.f32 %v1136, %v1140
        %v1142 = vpack.c.bf16 %v1141, %v1141
        %1143 = vrot.lane.b32.xlu0 %v937, 112
        %v1144 = vpop.permute.xlu0 %1143
        %v1146 = vsel %vm761, %v1142, 0
        %v1149 = vsel %vm823, %v1144, 0
        %1151 = vmatprep.subr.bf16.mxu0 0
        %1152 = vmatpush1.bf16.msra.mxu0 %v1149
        %1153 = vmatprep.subr.bf16.mxu0 0
        %1154 = vmatpush1.bf16.msra.mxu0 0
        %1155 = vmatprep.subr.bf16.mxu0 0
        %1156 = vmatpush1.bf16.msra.mxu0 0
        %1157 = vmatprep.subr.bf16.mxu0 0
        %1158 = vmatpush1.bf16.msra.mxu0 0
        %1159 = vmatprep.subr.bf16.mxu0 0
        %1160 = vmatpush1.bf16.msra.mxu0 0
        %1161 = vmatprep.subr.bf16.mxu0 0
        %1162 = vmatpush1.bf16.msra.mxu0 0
        %1163 = vmatprep.subr.bf16.mxu0 0
        %1164 = vmatpush1.bf16.msra.mxu0 0
        %1165 = vmatprep.subr.bf16.mxu0 0
        %1166 = vmatpush1.bf16.msra.mxu0 0
        %1167 = vmatprep.subr.bf16.mxu0 0
        %1168 = vmatpush1.bf16.msra.mxu0 0
        %1169 = vmatprep.subr.bf16.mxu0 0
        %1170 = vmatpush1.bf16.msra.mxu0 0
        %1171 = vmatprep.subr.bf16.mxu0 0
        %1172 = vmatpush1.bf16.msra.mxu0 0
        %1173 = vmatprep.subr.bf16.mxu0 0
        %1174 = vmatpush1.bf16.msra.mxu0 0
        %1175 = vmatprep.subr.bf16.mxu0 0
        %1176 = vmatpush1.bf16.msra.mxu0 0
        %1177 = vmatprep.subr.bf16.mxu0 0
        %1178 = vmatpush1.bf16.msra.mxu0 0
        %1179 = vmatprep.subr.bf16.mxu0 0
        %1180 = vmatpush1.bf16.msra.mxu0 0
        %1181 = vmatprep.subr.bf16.mxu0 0
        %1182 = vmatpush1.bf16.msra.mxu0 0
        %1183 = vmatprep.mubr.bf16.mxu0 0
        %1184 = vmatmul.mubr.bf16.gmra.mrb[0].mxu0 %v1146
        %v1185 = vpop.f32.mrb[0].mxu0
        %v1186 = vadd.f32 0.0, %v1185
        %v1187 = vpop.f32.mrb[0].mxu0
        %v1188 = vpop.f32.mrb[0].mxu0
        %v1189 = vpop.f32.mrb[0].mxu0
        %1190 = vdwg.mxu0
        %v1191 = vpack.c.bf16 %v1186, %v1186
        %s1192 = scalar_lea.vmem %s6, 8
        %v1193 = vld [vmem:[%s1192] sm:$0xf]
        %v1195 = vsel %vm761, %v1191, 0
        %v1198 = vsel %vm823, %v1193, 0
        %1200 = vmatprep.subr.bf16.mxu0 0
        %1201 = vmatpush1.bf16.msra.mxu0 %v1198
        %1202 = vmatprep.subr.bf16.mxu0 0
        %1203 = vmatpush1.bf16.msra.mxu0 0
        %1204 = vmatprep.subr.bf16.mxu0 0
        %1205 = vmatpush1.bf16.msra.mxu0 0
        %1206 = vmatprep.subr.bf16.mxu0 0
        %1207 = vmatpush1.bf16.msra.mxu0 0
        %1208 = vmatprep.subr.bf16.mxu0 0
        %1209 = vmatpush1.bf16.msra.mxu0 0
        %1210 = vmatprep.subr.bf16.mxu0 0
        %1211 = vmatpush1.bf16.msra.mxu0 0
        %1212 = vmatprep.subr.bf16.mxu0 0
        %1213 = vmatpush1.bf16.msra.mxu0 0
        %1214 = vmatprep.subr.bf16.mxu0 0
        %1215 = vmatpush1.bf16.msra.mxu0 0
        %1216 = vmatprep.subr.bf16.mxu0 0
        %1217 = vmatpush1.bf16.msra.mxu0 0
        %1218 = vmatprep.subr.bf16.mxu0 0
        %1219 = vmatpush1.bf16.msra.mxu0 0
        %1220 = vmatprep.subr.bf16.mxu0 0
        %1221 = vmatpush1.bf16.msra.mxu0 0
        %1222 = vmatprep.subr.bf16.mxu0 0
        %1223 = vmatpush1.bf16.msra.mxu0 0
        %1224 = vmatprep.subr.bf16.mxu0 0
        %1225 = vmatpush1.bf16.msra.mxu0 0
        %1226 = vmatprep.subr.bf16.mxu0 0
        %1227 = vmatpush1.bf16.msra.mxu0 0
        %1228 = vmatprep.subr.bf16.mxu0 0
        %1229 = vmatpush1.bf16.msra.mxu0 0
        %1230 = vmatprep.subr.bf16.mxu0 0
        %1231 = vmatpush1.bf16.msra.mxu0 0
        %1232 = vmatprep.mubr.bf16.mxu0 0
        %1233 = vmatmul.mubr.bf16.gmra.mrb[0].mxu0 %v1195
        %v1234 = vpop.f32.mrb[0].mxu0
        %v1235 = vadd.f32 0.0, %v1234
        %v1236 = vpop.f32.mrb[0].mxu0
        %v1237 = vpop.f32.mrb[0].mxu0
        %v1238 = vpop.f32.mrb[0].mxu0
        %1239 = vdwg.mxu0
        %v1240 = vadd.f32 %v1076, %v1235
        %1241 = vrot.lane.b32.xlu0 %v751, 104
        %v1242 = vpop.permute.xlu0 %1241
        %1243 = vrot.lane.b32.xlu0 %v874, 104
        %v1244 = vpop.permute.xlu0 %1243
        %v1246 = vsel %vm761, %v1242, 0
        %v1249 = vsel %vm761, %v1244, 0
        %1251 = vmatprep.subr.bf16.mxu0 0
        %1252 = vmatpush1.bf16.xpose.msra.mxu0 %v1249
        %1253 = vmatprep.subr.bf16.mxu0 0
        %1254 = vmatpush1.bf16.xpose.msra.mxu0 0
        %1255 = vmatprep.subr.bf16.mxu0 0
        %1256 = vmatpush1.bf16.xpose.msra.mxu0 0
        %1257 = vmatprep.subr.bf16.mxu0 0
        %1258 = vmatpush1.bf16.xpose.msra.mxu0 0
        %1259 = vmatprep.subr.bf16.mxu0 0
        %1260 = vmatpush1.bf16.xpose.msra.mxu0 0
        %1261 = vmatprep.subr.bf16.mxu0 0
        %1262 = vmatpush1.bf16.xpose.msra.mxu0 0
        %1263 = vmatprep.subr.bf16.mxu0 0
        %1264 = vmatpush1.bf16.xpose.msra.mxu0 0
        %1265 = vmatprep.subr.bf16.mxu0 0
        %1266 = vmatpush1.bf16.xpose.msra.mxu0 0
        %1267 = vmatprep.subr.bf16.mxu0 0
        %1268 = vmatpush1.bf16.xpose.msra.mxu0 0
        %1269 = vmatprep.subr.bf16.mxu0 0
        %1270 = vmatpush1.bf16.xpose.msra.mxu0 0
        %1271 = vmatprep.subr.bf16.mxu0 0
        %1272 = vmatpush1.bf16.xpose.msra.mxu0 0
        %1273 = vmatprep.subr.bf16.mxu0 0
        %1274 = vmatpush1.bf16.xpose.msra.mxu0 0
        %1275 = vmatprep.subr.bf16.mxu0 0
        %1276 = vmatpush1.bf16.xpose.msra.mxu0 0
        %1277 = vmatprep.subr.bf16.mxu0 0
        %1278 = vmatpush1.bf16.xpose.msra.mxu0 0
        %1279 = vmatprep.subr.bf16.mxu0 0
        %1280 = vmatpush1.bf16.xpose.msra.mxu0 0
        %1281 = vmatprep.subr.bf16.mxu0 0
        %1282 = vmatpush1.bf16.xpose.msra.mxu0 0
        %1283 = vmatprep.mubr.bf16.mxu0 0
        %1284 = vmatmul.mubr.bf16.gmra.mrb[0].mxu0 %v1246
        %v1285 = vpop.f32.mrb[0].mxu0
        %v1286 = vadd.f32 %v757, %v1285
        %v1287 = vpop.f32.mrb[0].mxu0
        %v1288 = vpop.f32.mrb[0].mxu0
        %v1289 = vpop.f32.mrb[0].mxu0
        %1290 = vdwg.mxu0
        %v1291 = vsel %vm761, %v1286, -inf
        %1292 = vmax.xlane.f32.xlu0 %v1291
        %v1293 = vpop.xlane.xlu0 %1292
        %v1294 = vsub.f32 %v1286, %v1293
        %v1295 = vmul.f32 %v1294, 1.442695
        %v1296 = vpow.pop %v1295
        %v1297 = vsel %vm761, %v1296, 0.0
        %1298 = vadd.xlane.f32.xlu0 %v1297
        %v1299 = vpop.xlane.xlu0 %1298
        %v1300 = vrcp.pop %v1299
        %v1301 = vmul.f32 %v1296, %v1300
        %v1302 = vpack.c.bf16 %v1301, %v1301
        %1303 = vrot.lane.b32.xlu0 %v937, 104
        %v1304 = vpop.permute.xlu0 %1303
        %v1306 = vsel %vm761, %v1302, 0
        %v1309 = vsel %vm823, %v1304, 0
        %1311 = vmatprep.subr.bf16.mxu0 0
        %1312 = vmatpush1.bf16.msra.mxu0 %v1309
        %1313 = vmatprep.subr.bf16.mxu0 0
        %1314 = vmatpush1.bf16.msra.mxu0 0
        %1315 = vmatprep.subr.bf16.mxu0 0
        %1316 = vmatpush1.bf16.msra.mxu0 0
        %1317 = vmatprep.subr.bf16.mxu0 0
        %1318 = vmatpush1.bf16.msra.mxu0 0
        %1319 = vmatprep.subr.bf16.mxu0 0
        %1320 = vmatpush1.bf16.msra.mxu0 0
        %1321 = vmatprep.subr.bf16.mxu0 0
        %1322 = vmatpush1.bf16.msra.mxu0 0
        %1323 = vmatprep.subr.bf16.mxu0 0
        %1324 = vmatpush1.bf16.msra.mxu0 0
        %1325 = vmatprep.subr.bf16.mxu0 0
        %1326 = vmatpush1.bf16.msra.mxu0 0
        %1327 = vmatprep.subr.bf16.mxu0 0
        %1328 = vmatpush1.bf16.msra.mxu0 0
        %1329 = vmatprep.subr.bf16.mxu0 0
        %1330 = vmatpush1.bf16.msra.mxu0 0
        %1331 = vmatprep.subr.bf16.mxu0 0
        %1332 = vmatpush1.bf16.msra.mxu0 0
        %1333 = vmatprep.subr.bf16.mxu0 0
        %1334 = vmatpush1.bf16.msra.mxu0 0
        %1335 = vmatprep.subr.bf16.mxu0 0
        %1336 = vmatpush1.bf16.msra.mxu0 0
        %1337 = vmatprep.subr.bf16.mxu0 0
        %1338 = vmatpush1.bf16.msra.mxu0 0
        %1339 = vmatprep.subr.bf16.mxu0 0
        %1340 = vmatpush1.bf16.msra.mxu0 0
        %1341 = vmatprep.subr.bf16.mxu0 0
        %1342 = vmatpush1.bf16.msra.mxu0 0
        %1343 = vmatprep.mubr.bf16.mxu0 0
        %1344 = vmatmul.mubr.bf16.gmra.mrb[0].mxu0 %v1306
        %v1345 = vpop.f32.mrb[0].mxu0
        %v1346 = vadd.f32 0.0, %v1345
        %v1347 = vpop.f32.mrb[0].mxu0
        %v1348 = vpop.f32.mrb[0].mxu0
        %v1349 = vpop.f32.mrb[0].mxu0
        %1350 = vdwg.mxu0
        %v1351 = vpack.c.bf16 %v1346, %v1346
        %s1352 = scalar_lea.vmem %s6, 12
        %v1353 = vld [vmem:[%s1352] sm:$0xf]
        %v1355 = vsel %vm761, %v1351, 0
        %v1358 = vsel %vm823, %v1353, 0
        %1360 = vmatprep.subr.bf16.mxu0 0
        %1361 = vmatpush1.bf16.msra.mxu0 %v1358
        %1362 = vmatprep.subr.bf16.mxu0 0
        %1363 = vmatpush1.bf16.msra.mxu0 0
        %1364 = vmatprep.subr.bf16.mxu0 0
        %1365 = vmatpush1.bf16.msra.mxu0 0
        %1366 = vmatprep.subr.bf16.mxu0 0
        %1367 = vmatpush1.bf16.msra.mxu0 0
        %1368 = vmatprep.subr.bf16.mxu0 0
        %1369 = vmatpush1.bf16.msra.mxu0 0
        %1370 = vmatprep.subr.bf16.mxu0 0
        %1371 = vmatpush1.bf16.msra.mxu0 0
        %1372 = vmatprep.subr.bf16.mxu0 0
        %1373 = vmatpush1.bf16.msra.mxu0 0
        %1374 = vmatprep.subr.bf16.mxu0 0
        %1375 = vmatpush1.bf16.msra.mxu0 0
        %1376 = vmatprep.subr.bf16.mxu0 0
        %1377 = vmatpush1.bf16.msra.mxu0 0
        %1378 = vmatprep.subr.bf16.mxu0 0
        %1379 = vmatpush1.bf16.msra.mxu0 0
        %1380 = vmatprep.subr.bf16.mxu0 0
        %1381 = vmatpush1.bf16.msra.mxu0 0
        %1382 = vmatprep.subr.bf16.mxu0 0
        %1383 = vmatpush1.bf16.msra.mxu0 0
        %1384 = vmatprep.subr.bf16.mxu0 0
        %1385 = vmatpush1.bf16.msra.mxu0 0
        %1386 = vmatprep.subr.bf16.mxu0 0
        %1387 = vmatpush1.bf16.msra.mxu0 0
        %1388 = vmatprep.subr.bf16.mxu0 0
        %1389 = vmatpush1.bf16.msra.mxu0 0
        %1390 = vmatprep.subr.bf16.mxu0 0
        %1391 = vmatpush1.bf16.msra.mxu0 0
        %1392 = vmatprep.mubr.bf16.mxu0 0
        %1393 = vmatmul.mubr.bf16.gmra.mrb[0].mxu0 %v1355
        %v1394 = vpop.f32.mrb[0].mxu0
        %v1395 = vadd.f32 0.0, %v1394
        %v1396 = vpop.f32.mrb[0].mxu0
        %v1397 = vpop.f32.mrb[0].mxu0
        %v1398 = vpop.f32.mrb[0].mxu0
        %1399 = vdwg.mxu0
        %v1400 = vadd.f32 %v1240, %v1395
        %v1401 = vld [vmem:[#allocation9] sm:$0x1]
        %v1403 = vlaneseq
        %v1404 = vshrl.u32 %v1403, 7
        %v1405 = vsub.s32 0, %v1404
        %v1406 = vrot.slane %v1401, %v1405
        %v1408 = vadd.f32 %v1400, %v1406
        %v1409 = vadd.f32 %v681, %v1408
        %v1410 = vld [vmem:[#allocation11] sm:$0x1]
        %v1411 = vld [vmem:[#allocation12] sm:$0x1]
        %v1412 = vsel %vm706, %v1409, 0.0
        %1413 = vadd.xlane.f32.xlu0 %v1412
        %v1414 = vpop.xlane.xlu0 %1413
        %v1415 = vrcp.pop 32.0
        %v1416 = vmul.f32 %v1414, %v1415
        %v1417 = vsub.f32 %v1409, %v1416
        %v1418 = vmul.f32 %v1417, %v1417
        %v1419 = vsel %vm706, %v1418, 0.0
        %1420 = vadd.xlane.f32.xlu0 %v1419
        %v1421 = vpop.xlane.xlu0 %1420
        %v1422 = vmul.f32 %v1421, %v1415
        %v1423 = vadd.f32 %v1422, 1e-05
        %v1424 = vrsqrt.pop %v1423
        %v1425 = vmul.f32 %v1417, %v1424
        %v1427 = vlaneseq
        %v1428 = vshrl.u32 %v1427, 7
        %v1429 = vsub.s32 0, %v1428
        %v1430 = vrot.slane %v1410, %v1429
        %v1432 = vmul.f32 %v1425, %v1430
        %v1434 = vlaneseq
        %v1435 = vshrl.u32 %v1434, 7
        %v1436 = vsub.s32 0, %v1435
        %v1437 = vrot.slane %v1411, %v1436
        %v1439 = vadd.f32 %v1432, %v1437
        %v1440 = vpack.c.bf16 %v1439, %v1439
        %v1441 = vld [vmem:[%s10] sm:$0xf]
        %v1442 = vld [vmem:[%s10 + $0x4] sm:$0xf]
        %v1443 = vld [vmem:[%s10 + $0x8] sm:$0xf]
        %v1444 = vld [vmem:[%s10 + $0xc] sm:$0xf]
        %v1445 = vld [vmem:[%s11] sm:$0x1]
        %v1447 = vlaneseq
        %v1448 = vshrl.u32 %v1447, 7
        %v1449 = vsub.s32 0, %v1448
        %v1450 = vrot.slane %v1445, %v1449
        %v1456 = vunpack.c.l.b16 %v1441
        %v1457 = vunpack.c.l.b16 %v1442
        %v1458 = vunpack.c.l.b16 %v1443
        %v1459 = vunpack.c.l.b16 %v1444
        %v1460 = vpack.c.b16 %v1457, %v1456
        %v1461 = vpack.c.b16 %v1459, %v1458
        %v1465 = vsel %vm706, %v1440, 0
        %1467 = vmatprep.subr.bf16.mxu0 0
        %1468 = vmatpush1.bf16.msra.mxu0 %v1460
        %1469 = vmatprep.subr.bf16.mxu0 0
        %1470 = vmatpush1.bf16.msra.mxu0 %v1461
        %1471 = vmatprep.subr.bf16.mxu0 0
        %1472 = vmatpush1.bf16.msra.mxu0 0
        %1473 = vmatprep.subr.bf16.mxu0 0
        %1474 = vmatpush1.bf16.msra.mxu0 0
        %1475 = vmatprep.subr.bf16.mxu0 0
        %1476 = vmatpush1.bf16.msra.mxu0 0
        %1477 = vmatprep.subr.bf16.mxu0 0
        %1478 = vmatpush1.bf16.msra.mxu0 0
        %1479 = vmatprep.subr.bf16.mxu0 0
        %1480 = vmatpush1.bf16.msra.mxu0 0
        %1481 = vmatprep.subr.bf16.mxu0 0
        %1482 = vmatpush1.bf16.msra.mxu0 0
        %1483 = vmatprep.subr.bf16.mxu0 0
        %1484 = vmatpush1.bf16.msra.mxu0 0
        %1485 = vmatprep.subr.bf16.mxu0 0
        %1486 = vmatpush1.bf16.msra.mxu0 0
        %1487 = vmatprep.subr.bf16.mxu0 0
        %1488 = vmatpush1.bf16.msra.mxu0 0
        %1489 = vmatprep.subr.bf16.mxu0 0
        %1490 = vmatpush1.bf16.msra.mxu0 0
        %1491 = vmatprep.subr.bf16.mxu0 0
        %1492 = vmatpush1.bf16.msra.mxu0 0
        %1493 = vmatprep.subr.bf16.mxu0 0
        %1494 = vmatpush1.bf16.msra.mxu0 0
        %1495 = vmatprep.subr.bf16.mxu0 0
        %1496 = vmatpush1.bf16.msra.mxu0 0
        %1497 = vmatprep.subr.bf16.mxu0 0
        %1498 = vmatpush1.bf16.msra.mxu0 0
        %1499 = vmatprep.mubr.bf16.mxu0 0
        %1500 = vmatmul.mubr.bf16.gmra.mrb[0].mxu0 %v1465
        %v1501 = vpop.f32.mrb[0].mxu0
        %v1502 = vadd.f32 %v1450, %v1501
        %v1503 = vpop.f32.mrb[0].mxu0
        %v1504 = vpop.f32.mrb[0].mxu0
        %v1505 = vpop.f32.mrb[0].mxu0
        %1506 = vdwg.mxu0
        %v1507 = vmax.f32 %v1502, 0.0
        %v1508 = vpack.c.bf16 %v1507, %v1507
        %v1509 = vld [vmem:[%s12] sm:$0xf]
        %v1510 = vld [vmem:[%s12 + $0x4] sm:$0xf]
        %v1511 = vld [vmem:[%s12 + $0x8] sm:$0xf]
        %v1512 = vld [vmem:[%s12 + $0xc] sm:$0xf]
        %v1513 = vld [vmem:[%s12 + $0x10] sm:$0xf]
        %v1514 = vld [vmem:[%s12 + $0x14] sm:$0xf]
        %v1515 = vld [vmem:[%s12 + $0x18] sm:$0xf]
        %v1516 = vld [vmem:[%s12 + $0x1c] sm:$0xf]
        %v1517 = vld [vmem:[%s13] sm:$0x1]
        %v1519 = vlaneseq
        %v1520 = vshrl.u32 %v1519, 7
        %v1521 = vsub.s32 0, %v1520
        %v1522 = vrot.slane %v1517, %v1521
        %v1532 = vunpack.c.l.b16 %v1509
        %v1533 = vunpack.c.l.b16 %v1510
        %v1534 = vunpack.c.l.b16 %v1511
        %v1535 = vunpack.c.l.b16 %v1512
        %v1536 = vunpack.c.l.b16 %v1513
        %v1537 = vunpack.c.l.b16 %v1514
        %v1538 = vunpack.c.l.b16 %v1515
        %v1539 = vunpack.c.l.b16 %v1516
        %v1540 = vpack.c.b16 %v1533, %v1532
        %v1541 = vpack.c.b16 %v1535, %v1534
        %v1542 = vpack.c.b16 %v1537, %v1536
        %v1543 = vpack.c.b16 %v1539, %v1538
        %vm1548 = vcmask 523264
        %v1550 = vsel %vm1548, %v1508, 0
        %1552 = vmatprep.subr.bf16.mxu0 0
        %1553 = vmatpush1.bf16.msra.mxu0 %v1540
        %1554 = vmatprep.subr.bf16.mxu0 0
        %1555 = vmatpush1.bf16.msra.mxu0 %v1541
        %1556 = vmatprep.subr.bf16.mxu0 0
        %1557 = vmatpush1.bf16.msra.mxu0 %v1542
        %1558 = vmatprep.subr.bf16.mxu0 0
        %1559 = vmatpush1.bf16.msra.mxu0 %v1543
        %1560 = vmatprep.subr.bf16.mxu0 0
        %1561 = vmatpush1.bf16.msra.mxu0 0
        %1562 = vmatprep.subr.bf16.mxu0 0
        %1563 = vmatpush1.bf16.msra.mxu0 0
        %1564 = vmatprep.subr.bf16.mxu0 0
        %1565 = vmatpush1.bf16.msra.mxu0 0
        %1566 = vmatprep.subr.bf16.mxu0 0
        %1567 = vmatpush1.bf16.msra.mxu0 0
        %1568 = vmatprep.subr.bf16.mxu0 0
        %1569 = vmatpush1.bf16.msra.mxu0 0
        %1570 = vmatprep.subr.bf16.mxu0 0
        %1571 = vmatpush1.bf16.msra.mxu0 0
        %1572 = vmatprep.subr.bf16.mxu0 0
        %1573 = vmatpush1.bf16.msra.mxu0 0
        %1574 = vmatprep.subr.bf16.mxu0 0
        %1575 = vmatpush1.bf16.msra.mxu0 0
        %1576 = vmatprep.subr.bf16.mxu0 0
        %1577 = vmatpush1.bf16.msra.mxu0 0
        %1578 = vmatprep.subr.bf16.mxu0 0
        %1579 = vmatpush1.bf16.msra.mxu0 0
        %1580 = vmatprep.subr.bf16.mxu0 0
        %1581 = vmatpush1.bf16.msra.mxu0 0
        %1582 = vmatprep.subr.bf16.mxu0 0
        %1583 = vmatpush1.bf16.msra.mxu0 0
        %1584 = vmatprep.mubr.bf16.mxu0 0
        %1585 = vmatmul.mubr.bf16.gmra.mrb[0].mxu0 %v1550
        %v1586 = vpop.f32.mrb[0].mxu0
        %v1587 = vadd.f32 %v1522, %v1586
        %v1588 = vpop.f32.mrb[0].mxu0
        %v1589 = vpop.f32.mrb[0].mxu0
        %v1590 = vpop.f32.mrb[0].mxu0
        %1591 = vdwg.mxu0
        %v1592 = vadd.f32 %v1439, %v1587
        %v1593 = vld [vmem:[%s14] sm:$0x1]
        %v1594 = vld [vmem:[%s15] sm:$0x1]
        %v1595 = vsel %vm706, %v1592, 0.0
        %1596 = vadd.xlane.f32.xlu0 %v1595
        %v1597 = vpop.xlane.xlu0 %1596
        %v1598 = vmul.f32 %v1597, %v1415
        %v1599 = vsub.f32 %v1592, %v1598
        %v1600 = vmul.f32 %v1599, %v1599
        %v1601 = vsel %vm706, %v1600, 0.0
        %1602 = vadd.xlane.f32.xlu0 %v1601
        %v1603 = vpop.xlane.xlu0 %1602
        %v1604 = vmul.f32 %v1603, %v1415
        %v1605 = vadd.f32 %v1604, 1e-05
        %v1606 = vrsqrt.pop %v1605
        %v1607 = vmul.f32 %v1599, %v1606
        %v1609 = vlaneseq
        %v1610 = vshrl.u32 %v1609, 7
        %v1611 = vsub.s32 0, %v1610
        %v1612 = vrot.slane %v1593, %v1611
        %v1614 = vmul.f32 %v1607, %v1612
        %v1616 = vlaneseq
        %v1617 = vshrl.u32 %v1616, 7
        %v1618 = vsub.s32 0, %v1617
        %v1619 = vrot.slane %v1594, %v1618
        %v1621 = vadd.f32 %v1614, %v1619
        %1622 = vst.msk [vmem:[%s669] sm:$0xff] %vm706, %v1621
        %s1623 = sand.u32 %s418, 1
        %s1624 = scalar_lea.sflag [#allocation5], %s1623
        %s1625 = sand.u32 %s418, 1
        %s1626 = smul.addr %s1625, 8
        %s1627 = scalar_lea.vmem [#allocation14], %s1626
        // Predicated region
        $region109: #{tpu_custom_call.1} parent=83 // pred_check
          %p1628 = pneg %p428
        $region110: #{tpu_custom_call.1} parent=83 // pred_check_branch
          %1630 = sbr.rel (%p1628) target = $region112
        $region111: #{tpu_custom_call.1} parent=83 // pred_region
          %s1632 = ssub.s32 128, 128
          %1633 = vsyncadd %s1624, %s1632
          %s1634 = sadd.s32 %s43, %s42
          %s1635 = smul.addr %s1634, 128
          %s1636 = scalar_lea.hbm %s16, %s1635
          %s1638 = sshll.u32 %s1627, 4
          %s1639 = int_to_ptr.vmem [resolvable:$true] %s1638
          %1641 = dma.vmem_to_hbm [thread:$0]  %s1639, 128, %s1636, %s1624
        $region112: #{tpu_custom_call.1} parent=83 // pred_fallthru
          _
      $region84: #{tpu_custom_call.1} parent=5 // pred_fallthru
        _
      %p1642 = scmp.le.s32.totalorder 2, %s33
      // Predicated region
      $region113: #{tpu_custom_call.1} parent=5 // pred_check
        %p1643 = pneg %p1642
      $region114: #{tpu_custom_call.1} parent=5 // pred_check_branch
        %1645 = sbr.rel (%p1643) target = $region116
      $region115: #{tpu_custom_call.1} parent=5 // pred_region
        %s1646 = ssub.s32 %s33, 2
        // Predicated region
        $region117: #{tpu_custom_call.1} parent=115 // pred_check
          %p1647 = pneg %p434
        $region118: #{tpu_custom_call.1} parent=115 // pred_check_branch
          %1649 = sbr.rel (%p1647) target = $region120
        $region119: #{tpu_custom_call.1} parent=115 // pred_region
          %s1650 = sand.u32 %s419, 1
          %s1651 = scalar_lea.sflag [#allocation5], %s1650
          %s1652 = sand.u32 %s419, 1
          %s1653 = smul.addr %s1652, 8
          %s1654 = scalar_lea.vmem [#allocation14], %s1653
          %1655 = dma.done %s1651, 128
        $region120: #{tpu_custom_call.1} parent=115 // pred_fallthru
          _
      $region116: #{tpu_custom_call.1} parent=5 // pred_fallthru
        _
    $region6: #{tpu_custom_call.1} parent=1 // loop_footer
      %s37 = sadd.s32 1, %s33
    $region7: #{tpu_custom_call.1} parent=1 // loop_footer_branch
      %32 = sbr.rel target = $region3
    $region8: #{tpu_custom_call.1} parent=1 // loop_exit
      _
    %1656 = vsyncpa [#allocation4], 1
    %s1657 = scalar_lea.sflag [#allocation4], 1
    %1658 = vsyncpa %s1657, 1
    %1659 = vsyncpa [#allocation7], 1
    %s1660 = scalar_lea.sflag [#allocation7], 1
    %1661 = vsyncpa %s1660, 1
    %1662 = vsyncpa [#allocation10], 1
    %1663 = vsyncpa [#allocation13], 1
    %1664 = vsyncpa [#allocation5], 1
    %s1665 = scalar_lea.sflag [#allocation5], 1
    %1666 = vsyncpa %s1665, 1

</llo_original>
